<compile_context>
chip_gen: v7x
topology: tpu7x:2x2x1
jax: 0.10.0
libtpu: 0.0.40
codegen_flags: <defaults>
</compile_context>

<pallas_src>
import functools

import jax
import jax.numpy as jnp
from jax.experimental import pallas as pl
from jax.experimental.pallas import tpu as pltpu


def _round_up(x, m):
    return (x + m - 1) // m * m


def _fused_encoder_classifier_kernel(xflat_ref, wtap_ref, bconv_ref, pool_ref,
                                     wcls_ref, bcls_ref, out_ref, *, ns, wp):
    """Fused conv3x3(pad=1) + bias + ReLU + global-avg-pool + linear head.

    xflat_ref : (n_flat, C)          f32  zero-padded NHWC input flattened as
                                          row = b*Hp*Wp + h2*Wp + w2
    wtap_ref  : (9, C, FEAT_PAD)     bf16 per-tap conv weights
    bconv_ref : (1, FEAT_PAD)        f32
    pool_ref  : (B_PAD, ns)          f32  1/HW at each batch's valid pixel rows
    wcls_ref  : (FEAT_PAD, CLS_PAD)  f32
    bcls_ref  : (1, CLS_PAD)         f32
    out_ref   : (B_PAD, CLS_PAD)     f32  lane-dense logits slab
    """
    x = xflat_ref[...]                                        # (n_flat, C) f32

    # ---- conv as 9 shifted-view matmuls (im2col never materialized in HBM).
    #      bf16 MXU inputs, f32 accumulation.
    feat_pad = wtap_ref.shape[-1]
    acc = jnp.zeros((ns, feat_pad), jnp.float32)
    for t in range(9):
        kh, kw = divmod(t, 3)
        off = kh * wp + kw                                    # static shift
        xt = x[off:off + ns, :]                               # shifted view (VMEM)
        acc = acc + jnp.dot(xt.astype(jnp.bfloat16), wtap_ref[t],
                            preferred_element_type=jnp.float32)

    # ---- bias + ReLU in f32 on full-width (128-lane) vregs.
    act = jnp.maximum(acc + bconv_ref[...], 0.0)              # (ns, FEAT_PAD)

    # ---- global average pool as an MXU matmul; 1/HW is folded into pool_ref
    #      and junk rows (padding / inter-batch) carry zero weight.
    pooled = jnp.dot(pool_ref[...], act,
                     preferred_element_type=jnp.float32)      # (B_PAD, FEAT_PAD)

    # ---- linear classifier: one batched matmul, lane-dense padded output.
    logits = jnp.dot(pooled, wcls_ref[...],
                     preferred_element_type=jnp.float32) + bcls_ref[...]
    out_ref[...] = logits.astype(out_ref.dtype)


@jax.jit
def linear_eval_forward(x, w_conv, b_conv, w_cls, b_cls):
    """Forward pass of LinearEvaluationProtocol (synthetic encoder + linear head).

    x      : (B, C, H, W)  float32, NCHW (PyTorch convention)
    w_conv : (FEAT, C, 3, 3)
    b_conv : (FEAT,)
    w_cls  : (CLS, FEAT)      (PyTorch nn.Linear weight layout)
    b_cls  : (CLS,)
    returns logits (B, CLS)
    """
    B, C, H, W = x.shape
    FEAT = w_conv.shape[0]
    CLS = w_cls.shape[0]
    Hp, Wp = H + 2, W + 2
    HW = H * W

    n_base = B * Hp * Wp                       # rows of the padded NHWC grid
    off_max = 2 * Wp + 2                       # largest tap shift (kh=kw=2)
    NS = _round_up(n_base - off_max, 8)        # rows covered by the conv matmul
    n_flat = _round_up(NS + off_max, 8)        # padded flattened-input length
    FEAT_PAD = _round_up(max(FEAT, 128), 128)  # lane-dense feature width
    CLS_PAD = _round_up(max(CLS, 128), 128)    # lane-dense output width
    B_PAD = _round_up(max(B, 8), 8)            # sublane-aligned batch rows

    # -- zero-padded NHWC input, flattened to (n_flat, C): a single copy in HBM
    #    (no 9x im2col expansion; tap shifts are done in VMEM inside the kernel).
    xp = jnp.pad(x, ((0, 0), (0, 0), (1, 1), (1, 1)))          # (B, C, Hp, Wp)
    xflat = xp.transpose(0, 2, 3, 1).reshape(n_base, C).astype(jnp.float32)
    xflat = jnp.pad(xflat, ((0, n_flat - n_base), (0, 0)))

    # -- per-tap conv weights (9, C, FEAT_PAD), bf16 for the MXU.
    wtap = w_conv.transpose(2, 3, 1, 0).reshape(9, C, FEAT)    # [t=(kh*3+kw), c, f]
    wtap = jnp.pad(wtap, ((0, 0), (0, 0), (0, FEAT_PAD - FEAT))).astype(jnp.bfloat16)
    bconv = jnp.pad(b_conv, (0, FEAT_PAD - FEAT)).reshape(1, FEAT_PAD).astype(jnp.float32)

    # -- pooling matrix for the MXU pool: 1/HW at each batch's valid pixel rows.
    bb, hh, ww = jnp.meshgrid(jnp.arange(B), jnp.arange(H), jnp.arange(W),
                              indexing="ij")
    rows = (bb * (Hp * Wp) + hh * Wp + ww).reshape(-1)         # (B*HW,)
    pool = jnp.zeros((B_PAD, NS), jnp.float32)
    pool = pool.at[jnp.repeat(jnp.arange(B), HW), rows].set(1.0 / HW)

    # -- classifier weights, zero-padded to a lane-dense (128-wide) slab.
    wcls = jnp.zeros((FEAT_PAD, CLS_PAD), jnp.float32).at[:FEAT, :CLS].set(w_cls.T)
    bcls = jnp.zeros((1, CLS_PAD), jnp.float32).at[0, :CLS].set(b_cls)

    flops = int(2 * 9 * NS * C * FEAT_PAD
                + 2 * B_PAD * NS * FEAT_PAD
                + 2 * B_PAD * FEAT_PAD * CLS_PAD)
    bytes_accessed = int(xflat.size * 4 + wtap.size * 2 + bconv.size * 4
                         + pool.size * 4 + wcls.size * 4 + bcls.size * 4
                         + B_PAD * CLS_PAD * 4)

    kernel = functools.partial(_fused_encoder_classifier_kernel, ns=NS, wp=Wp)

    # TODO(synk): at real backbone sizes (HW ~ 50K) tile NS over an additional
    # grid axis (budgeting VMEM for v7x's 64 MiB) and keep an even parallel
    # split for megacore; at this toy size a single grid step is optimal.
    out = pl.pallas_call(
        kernel,
        out_shape=jax.ShapeDtypeStruct((B_PAD, CLS_PAD), jnp.float32),
        grid_spec=pltpu.PrefetchScalarGridSpec(
            num_scalar_prefetch=0,
            grid=(1,),                                  # whole batch, one step
            in_specs=[
                pl.BlockSpec((n_flat, C), lambda i: (0, 0)),
                pl.BlockSpec((9, C, FEAT_PAD), lambda i: (0, 0, 0)),
                pl.BlockSpec((1, FEAT_PAD), lambda i: (0, 0)),
                pl.BlockSpec((B_PAD, NS), lambda i: (0, 0)),
                pl.BlockSpec((FEAT_PAD, CLS_PAD), lambda i: (0, 0)),
                pl.BlockSpec((1, CLS_PAD), lambda i: (0, 0)),
            ],
            out_specs=pl.BlockSpec((B_PAD, CLS_PAD), lambda i: (0, 0)),
        ),
        compiler_params=pltpu.CompilerParams(
            dimension_semantics=("arbitrary",),
            vmem_limit_bytes=16 * 1024 * 1024),
        cost_estimate=pl.CostEstimate(flops=flops, transcendentals=0,
                                      bytes_accessed=bytes_accessed),
    )(xflat, wtap, bconv, pool, wcls, bcls)

    return out[:B, :CLS]


def _reference_forward(x, w_conv, b_conv, w_cls, b_cls):
    """Pure-JAX f32 reference (XLA conv) for correctness checking."""
    conv = jax.lax.conv_general_dilated(
        x, w_conv, window_strides=(1, 1), padding=((1, 1), (1, 1)),
        dimension_numbers=("NCHW", "OIHW", "NCHW"))
    conv = conv + b_conv.reshape(1, -1, 1, 1)
    act = jnp.maximum(conv, 0.0)
    h = jnp.mean(act, axis=(2, 3))                             # (B, FEAT)
    return h @ w_cls.T + b_cls


if __name__ == "__main__":
    B, C, H, W = 2, 4, 16, 16     # input (NCHW, PyTorch convention)
    FEAT = 32                     # encoder.fc.in_features
    CLS = 10                      # args.class_num

    key = jax.random.PRNGKey(0)
    kx, kwc, kbc, kwl, kbl = jax.random.split(key, 5)

    x = jax.random.normal(kx, (B, C, H, W), dtype=jnp.float32)
    w_conv = jax.random.normal(kwc, (FEAT, C, 3, 3), dtype=jnp.float32) * 0.1
    b_conv = jax.random.normal(kbc, (FEAT,), dtype=jnp.float32) * 0.1
    w_cls = jax.random.normal(kwl, (CLS, FEAT), dtype=jnp.float32) * 0.1
    b_cls = jax.random.normal(kbl, (CLS,), dtype=jnp.float32) * 0.1

    y = jax.block_until_ready(linear_eval_forward(x, w_conv, b_conv, w_cls, b_cls))
    y_ref = jax.block_until_ready(_reference_forward(x, w_conv, b_conv, w_cls, b_cls))

    assert y.shape == (B, CLS)
    # bf16 MXU inputs on the conv -> relaxed tolerance vs the f32 XLA reference.
    assert jnp.allclose(y, y_ref, atol=1e-2, rtol=1e-2), "mismatch vs reference"

    # TODO(synk): optimizer init (Adam), fit/eval loops, top-k accuracy and
    # checkpointing are training-host logic, not part of the forward-pass kernel.
    print("KERNEL_OK")
</pallas_src>

<mosaic_0001>
module attributes {stable_mosaic.version = 11 : i64} {
  func.func @_fused_encoder_classifier_kernel(%arg0: i32, %arg1: memref<656x4xf32, #tpu.memory_space<vmem>>, %arg2: memref<9x4x128xbf16, #tpu.memory_space<vmem>>, %arg3: memref<1x128xf32, #tpu.memory_space<vmem>>, %arg4: memref<8x616xf32, #tpu.memory_space<vmem>>, %arg5: memref<128x128xf32, #tpu.memory_space<vmem>>, %arg6: memref<1x128xf32, #tpu.memory_space<vmem>>, %arg7: memref<8x128xf32, #tpu.memory_space<vmem>>) attributes {dimension_semantics = [#tpu.dimension_semantics<arbitrary>], iteration_bounds = array<i64: 1>, scalar_prefetch = 0 : i64, scratch_operands = 0 : i64, tpu.core_type = #tpu.core_type<tc>, window_params = [{pipeline_mode = #tpu.pipeline_mode<synchronous>, transform_indices = @transform_0, window_bounds = array<i64: 656, 4>}, {pipeline_mode = #tpu.pipeline_mode<synchronous>, transform_indices = @transform_1, window_bounds = array<i64: 9, 4, 128>}, {pipeline_mode = #tpu.pipeline_mode<synchronous>, transform_indices = @transform_2, window_bounds = array<i64: 1, 128>}, {pipeline_mode = #tpu.pipeline_mode<synchronous>, transform_indices = @transform_3, window_bounds = array<i64: 8, 616>}, {pipeline_mode = #tpu.pipeline_mode<synchronous>, transform_indices = @transform_4, window_bounds = array<i64: 128, 128>}, {pipeline_mode = #tpu.pipeline_mode<synchronous>, transform_indices = @transform_5, window_bounds = array<i64: 1, 128>}, {pipeline_mode = #tpu.pipeline_mode<synchronous>, transform_indices = @transform_6, window_bounds = array<i64: 8, 128>}]} {
    %c0 = arith.constant 0 : index
    %c0_0 = arith.constant 0 : index
    %0 = vector.load %arg1[%c0, %c0_0] : memref<656x4xf32, #tpu.memory_space<vmem>>, vector<656x4xf32>
    %cst = arith.constant 0.000000e+00 : f32
    %1 = vector.broadcast %cst : f32 to vector<616x128xf32>
    %2 = vector.extract_strided_slice %0 {offsets = [0, 0], sizes = [616, 4], strides = [1, 1]} : vector<656x4xf32> to vector<616x4xf32>
    %3 = arith.truncf %2 : vector<616x4xf32> to vector<616x4xbf16>
    %c0_1 = arith.constant 0 : index
    %c0_2 = arith.constant 0 : index
    %c0_3 = arith.constant 0 : index
    %4 = vector.load %arg2[%c0_1, %c0_2, %c0_3] : memref<9x4x128xbf16, #tpu.memory_space<vmem>>, vector<1x4x128xbf16>
    %5 = vector.shape_cast %4 : vector<1x4x128xbf16> to vector<4x128xbf16>
    %cst_4 = arith.constant dense<0.000000e+00> : vector<616x128xf32>
    %6 = tpu.matmul %3, %5, %cst_4 {dimension_numbers = #tpu.dot_dimension_numbers<[1], [0], [0], [1], [0, 0, 1, 1], [], []>} : vector<616x4xbf16>, vector<4x128xbf16>, vector<616x128xf32> -> vector<616x128xf32>
    %7 = arith.addf %1, %6 : vector<616x128xf32>
    %8 = vector.extract_strided_slice %0 {offsets = [1, 0], sizes = [616, 4], strides = [1, 1]} : vector<656x4xf32> to vector<616x4xf32>
    %9 = arith.truncf %8 : vector<616x4xf32> to vector<616x4xbf16>
    %c1 = arith.constant 1 : index
    %c0_5 = arith.constant 0 : index
    %c0_6 = arith.constant 0 : index
    %10 = vector.load %arg2[%c1, %c0_5, %c0_6] : memref<9x4x128xbf16, #tpu.memory_space<vmem>>, vector<1x4x128xbf16>
    %11 = vector.shape_cast %10 : vector<1x4x128xbf16> to vector<4x128xbf16>
    %cst_7 = arith.constant dense<0.000000e+00> : vector<616x128xf32>
    %12 = tpu.matmul %9, %11, %cst_7 {dimension_numbers = #tpu.dot_dimension_numbers<[1], [0], [0], [1], [0, 0, 1, 1], [], []>} : vector<616x4xbf16>, vector<4x128xbf16>, vector<616x128xf32> -> vector<616x128xf32>
    %13 = arith.addf %7, %12 : vector<616x128xf32>
    %14 = vector.extract_strided_slice %0 {offsets = [2, 0], sizes = [616, 4], strides = [1, 1]} : vector<656x4xf32> to vector<616x4xf32>
    %15 = arith.truncf %14 : vector<616x4xf32> to vector<616x4xbf16>
    %c2 = arith.constant 2 : index
    %c0_8 = arith.constant 0 : index
    %c0_9 = arith.constant 0 : index
    %16 = vector.load %arg2[%c2, %c0_8, %c0_9] : memref<9x4x128xbf16, #tpu.memory_space<vmem>>, vector<1x4x128xbf16>
    %17 = vector.shape_cast %16 : vector<1x4x128xbf16> to vector<4x128xbf16>
    %cst_10 = arith.constant dense<0.000000e+00> : vector<616x128xf32>
    %18 = tpu.matmul %15, %17, %cst_10 {dimension_numbers = #tpu.dot_dimension_numbers<[1], [0], [0], [1], [0, 0, 1, 1], [], []>} : vector<616x4xbf16>, vector<4x128xbf16>, vector<616x128xf32> -> vector<616x128xf32>
    %19 = arith.addf %13, %18 : vector<616x128xf32>
    %20 = vector.extract_strided_slice %0 {offsets = [18, 0], sizes = [616, 4], strides = [1, 1]} : vector<656x4xf32> to vector<616x4xf32>
    %21 = arith.truncf %20 : vector<616x4xf32> to vector<616x4xbf16>
    %c3 = arith.constant 3 : index
    %c0_11 = arith.constant 0 : index
    %c0_12 = arith.constant 0 : index
    %22 = vector.load %arg2[%c3, %c0_11, %c0_12] : memref<9x4x128xbf16, #tpu.memory_space<vmem>>, vector<1x4x128xbf16>
    %23 = vector.shape_cast %22 : vector<1x4x128xbf16> to vector<4x128xbf16>
    %cst_13 = arith.constant dense<0.000000e+00> : vector<616x128xf32>
    %24 = tpu.matmul %21, %23, %cst_13 {dimension_numbers = #tpu.dot_dimension_numbers<[1], [0], [0], [1], [0, 0, 1, 1], [], []>} : vector<616x4xbf16>, vector<4x128xbf16>, vector<616x128xf32> -> vector<616x128xf32>
    %25 = arith.addf %19, %24 : vector<616x128xf32>
    %26 = vector.extract_strided_slice %0 {offsets = [19, 0], sizes = [616, 4], strides = [1, 1]} : vector<656x4xf32> to vector<616x4xf32>
    %27 = arith.truncf %26 : vector<616x4xf32> to vector<616x4xbf16>
    %c4 = arith.constant 4 : index
    %c0_14 = arith.constant 0 : index
    %c0_15 = arith.constant 0 : index
    %28 = vector.load %arg2[%c4, %c0_14, %c0_15] : memref<9x4x128xbf16, #tpu.memory_space<vmem>>, vector<1x4x128xbf16>
    %29 = vector.shape_cast %28 : vector<1x4x128xbf16> to vector<4x128xbf16>
    %cst_16 = arith.constant dense<0.000000e+00> : vector<616x128xf32>
    %30 = tpu.matmul %27, %29, %cst_16 {dimension_numbers = #tpu.dot_dimension_numbers<[1], [0], [0], [1], [0, 0, 1, 1], [], []>} : vector<616x4xbf16>, vector<4x128xbf16>, vector<616x128xf32> -> vector<616x128xf32>
    %31 = arith.addf %25, %30 : vector<616x128xf32>
    %32 = vector.extract_strided_slice %0 {offsets = [20, 0], sizes = [616, 4], strides = [1, 1]} : vector<656x4xf32> to vector<616x4xf32>
    %33 = arith.truncf %32 : vector<616x4xf32> to vector<616x4xbf16>
    %c5 = arith.constant 5 : index
    %c0_17 = arith.constant 0 : index
    %c0_18 = arith.constant 0 : index
    %34 = vector.load %arg2[%c5, %c0_17, %c0_18] : memref<9x4x128xbf16, #tpu.memory_space<vmem>>, vector<1x4x128xbf16>
    %35 = vector.shape_cast %34 : vector<1x4x128xbf16> to vector<4x128xbf16>
    %cst_19 = arith.constant dense<0.000000e+00> : vector<616x128xf32>
    %36 = tpu.matmul %33, %35, %cst_19 {dimension_numbers = #tpu.dot_dimension_numbers<[1], [0], [0], [1], [0, 0, 1, 1], [], []>} : vector<616x4xbf16>, vector<4x128xbf16>, vector<616x128xf32> -> vector<616x128xf32>
    %37 = arith.addf %31, %36 : vector<616x128xf32>
    %38 = vector.extract_strided_slice %0 {offsets = [36, 0], sizes = [616, 4], strides = [1, 1]} : vector<656x4xf32> to vector<616x4xf32>
    %39 = arith.truncf %38 : vector<616x4xf32> to vector<616x4xbf16>
    %c6 = arith.constant 6 : index
    %c0_20 = arith.constant 0 : index
    %c0_21 = arith.constant 0 : index
    %40 = vector.load %arg2[%c6, %c0_20, %c0_21] : memref<9x4x128xbf16, #tpu.memory_space<vmem>>, vector<1x4x128xbf16>
    %41 = vector.shape_cast %40 : vector<1x4x128xbf16> to vector<4x128xbf16>
    %cst_22 = arith.constant dense<0.000000e+00> : vector<616x128xf32>
    %42 = tpu.matmul %39, %41, %cst_22 {dimension_numbers = #tpu.dot_dimension_numbers<[1], [0], [0], [1], [0, 0, 1, 1], [], []>} : vector<616x4xbf16>, vector<4x128xbf16>, vector<616x128xf32> -> vector<616x128xf32>
    %43 = arith.addf %37, %42 : vector<616x128xf32>
    %44 = vector.extract_strided_slice %0 {offsets = [37, 0], sizes = [616, 4], strides = [1, 1]} : vector<656x4xf32> to vector<616x4xf32>
    %45 = arith.truncf %44 : vector<616x4xf32> to vector<616x4xbf16>
    %c7 = arith.constant 7 : index
    %c0_23 = arith.constant 0 : index
    %c0_24 = arith.constant 0 : index
    %46 = vector.load %arg2[%c7, %c0_23, %c0_24] : memref<9x4x128xbf16, #tpu.memory_space<vmem>>, vector<1x4x128xbf16>
    %47 = vector.shape_cast %46 : vector<1x4x128xbf16> to vector<4x128xbf16>
    %cst_25 = arith.constant dense<0.000000e+00> : vector<616x128xf32>
    %48 = tpu.matmul %45, %47, %cst_25 {dimension_numbers = #tpu.dot_dimension_numbers<[1], [0], [0], [1], [0, 0, 1, 1], [], []>} : vector<616x4xbf16>, vector<4x128xbf16>, vector<616x128xf32> -> vector<616x128xf32>
    %49 = arith.addf %43, %48 : vector<616x128xf32>
    %50 = vector.extract_strided_slice %0 {offsets = [38, 0], sizes = [616, 4], strides = [1, 1]} : vector<656x4xf32> to vector<616x4xf32>
    %51 = arith.truncf %50 : vector<616x4xf32> to vector<616x4xbf16>
    %c8 = arith.constant 8 : index
    %c0_26 = arith.constant 0 : index
    %c0_27 = arith.constant 0 : index
    %52 = vector.load %arg2[%c8, %c0_26, %c0_27] : memref<9x4x128xbf16, #tpu.memory_space<vmem>>, vector<1x4x128xbf16>
    %53 = vector.shape_cast %52 : vector<1x4x128xbf16> to vector<4x128xbf16>
    %cst_28 = arith.constant dense<0.000000e+00> : vector<616x128xf32>
    %54 = tpu.matmul %51, %53, %cst_28 {dimension_numbers = #tpu.dot_dimension_numbers<[1], [0], [0], [1], [0, 0, 1, 1], [], []>} : vector<616x4xbf16>, vector<4x128xbf16>, vector<616x128xf32> -> vector<616x128xf32>
    %55 = arith.addf %49, %54 : vector<616x128xf32>
    %c0_29 = arith.constant 0 : index
    %c0_30 = arith.constant 0 : index
    %56 = vector.load %arg3[%c0_29, %c0_30] : memref<1x128xf32, #tpu.memory_space<vmem>>, vector<1x128xf32>
    %57 = vector.broadcast %56 : vector<1x128xf32> to vector<616x128xf32>
    %58 = arith.addf %55, %57 : vector<616x128xf32>
    %cst_31 = arith.constant 0.000000e+00 : f32
    %59 = vector.broadcast %cst_31 : f32 to vector<616x128xf32>
    %60 = arith.maximumf %58, %59 : vector<616x128xf32>
    %c0_32 = arith.constant 0 : index
    %c0_33 = arith.constant 0 : index
    %61 = vector.load %arg4[%c0_32, %c0_33] : memref<8x616xf32, #tpu.memory_space<vmem>>, vector<8x616xf32>
    %cst_34 = arith.constant dense<0.000000e+00> : vector<8x128xf32>
    %62 = tpu.matmul %61, %60, %cst_34 {dimension_numbers = #tpu.dot_dimension_numbers<[1], [0], [0], [1], [0, 0, 1, 1], [], []>} : vector<8x616xf32>, vector<616x128xf32>, vector<8x128xf32> -> vector<8x128xf32>
    %c0_35 = arith.constant 0 : index
    %c0_36 = arith.constant 0 : index
    %63 = vector.load %arg5[%c0_35, %c0_36] : memref<128x128xf32, #tpu.memory_space<vmem>>, vector<128x128xf32>
    %cst_37 = arith.constant dense<0.000000e+00> : vector<8x128xf32>
    %64 = tpu.matmul %62, %63, %cst_37 {dimension_numbers = #tpu.dot_dimension_numbers<[1], [0], [0], [1], [0, 0, 1, 1], [], []>} : vector<8x128xf32>, vector<128x128xf32>, vector<8x128xf32> -> vector<8x128xf32>
    %c0_38 = arith.constant 0 : index
    %c0_39 = arith.constant 0 : index
    %65 = vector.load %arg6[%c0_38, %c0_39] : memref<1x128xf32, #tpu.memory_space<vmem>>, vector<1x128xf32>
    %66 = vector.broadcast %65 : vector<1x128xf32> to vector<8x128xf32>
    %67 = arith.addf %64, %66 : vector<8x128xf32>
    %c0_40 = arith.constant 0 : index
    %c0_41 = arith.constant 0 : index
    %68 = vector.load %arg7[%c0_40, %c0_41] : memref<8x128xf32, #tpu.memory_space<vmem>>, vector<8x128xf32>
    tpu.vector_store %arg7[%c0_40, %c0_41], %67 {strides = array<i32>} : memref<8x128xf32, #tpu.memory_space<vmem>>, vector<8x128xf32>,
    return
  }
  func.func @transform_0(%arg0: i32) -> (i32, i32) {
    %c0_i32 = arith.constant 0 : i32
    %c0_i32_0 = arith.constant 0 : i32
    %c0_i32_1 = arith.constant 0 : i32
    return %c0_i32, %c0_i32_0 : i32, i32
  }
  func.func @transform_1(%arg0: i32) -> (i32, i32, i32) {
    %c0_i32 = arith.constant 0 : i32
    %c0_i32_0 = arith.constant 0 : i32
    %c0_i32_1 = arith.constant 0 : i32
    %c0_i32_2 = arith.constant 0 : i32
    return %c0_i32, %c0_i32_0, %c0_i32_1 : i32, i32, i32
  }
  func.func @transform_2(%arg0: i32) -> (i32, i32) {
    %c0_i32 = arith.constant 0 : i32
    %c0_i32_0 = arith.constant 0 : i32
    %c0_i32_1 = arith.constant 0 : i32
    return %c0_i32, %c0_i32_0 : i32, i32
  }
  func.func @transform_3(%arg0: i32) -> (i32, i32) {
    %c0_i32 = arith.constant 0 : i32
    %c0_i32_0 = arith.constant 0 : i32
    %c0_i32_1 = arith.constant 0 : i32
    return %c0_i32, %c0_i32_0 : i32, i32
  }
  func.func @transform_4(%arg0: i32) -> (i32, i32) {
    %c0_i32 = arith.constant 0 : i32
    %c0_i32_0 = arith.constant 0 : i32
    %c0_i32_1 = arith.constant 0 : i32
    return %c0_i32, %c0_i32_0 : i32, i32
  }
  func.func @transform_5(%arg0: i32) -> (i32, i32) {
    %c0_i32 = arith.constant 0 : i32
    %c0_i32_0 = arith.constant 0 : i32
    %c0_i32_1 = arith.constant 0 : i32
    return %c0_i32, %c0_i32_0 : i32, i32
  }
  func.func @transform_6(%arg0: i32) -> (i32, i32) {
    %c0_i32 = arith.constant 0 : i32
    %c0_i32_0 = arith.constant 0 : i32
    %c0_i32_1 = arith.constant 0 : i32
    return %c0_i32, %c0_i32_0 : i32, i32
  }
}

</mosaic_0001>

<llo_original>
// kernel: linear_eval_forward.1
$region0: #{linear_eval_forward.1}
  #allocation0 [shape = 'u32[]', space=smem, size = 0x4, offset = 0x4, fixed_abs, tag = 'smem constant byte address 0x4 - core index']
  #allocation1 [shape = 'u32[144,128]{1,0:T(1,128)}', space=vmem, size = 0x12000, scoped, tag = 'internal scratch']
  %s0 = inlined_call_operand.vmem [shape: f32[656,4], index: 0, kind: input, shape index: {}]
  %s1 = inlined_call_operand.vmem [shape: bf16[9,4,128], index: 1, kind: input, shape index: {}]
  %s2 = inlined_call_operand.vmem [shape: f32[1,128], index: 2, kind: input, shape index: {}]
  %s3 = inlined_call_operand.vmem [shape: f32[8,616], index: 3, kind: input, shape index: {}]
  %s4 = inlined_call_operand.vmem [shape: f32[128,128], index: 4, kind: input, shape index: {}]
  %s5 = inlined_call_operand.vmem [shape: f32[1,128], index: 5, kind: input, shape index: {}]
  %s6 = inlined_call_operand.vmem [shape: f32[8,128], index: 6, kind: output, shape index: {}]
  %s7 = sld [smem:[#allocation0]]
  $region34: #{linear_eval_forward.1} parent=0
    _
  %s9 = ssub.s32 1, %s7
  %s10 = scalar_select 0, %s9, %s7
  // Predicated region
  $region2: #{linear_eval_forward.1} parent=0 // pred_check
    _
  $region3: #{linear_eval_forward.1} parent=0 // pred_check_branch
    %12 = sbr.rel (0) target = $region5
  $region4: #{linear_eval_forward.1} parent=0 // pred_region
    _
  $region5: #{linear_eval_forward.1} parent=0 // pred_fallthru
    _
  // Predicated region
  $region6: #{linear_eval_forward.1} parent=0 // pred_check
    _
  $region7: #{linear_eval_forward.1} parent=0 // pred_check_branch
    %14 = sbr.rel (0) target = $region9
  $region8: #{linear_eval_forward.1} parent=0 // pred_region
    _
  $region9: #{linear_eval_forward.1} parent=0 // pred_fallthru
    _
  // Predicated region
  $region10: #{linear_eval_forward.1} parent=0 // pred_check
    _
  $region11: #{linear_eval_forward.1} parent=0 // pred_check_branch
    %16 = sbr.rel (0) target = $region13
  $region12: #{linear_eval_forward.1} parent=0 // pred_region
    _
  $region13: #{linear_eval_forward.1} parent=0 // pred_fallthru
    _
  // Predicated region
  $region14: #{linear_eval_forward.1} parent=0 // pred_check
    _
  $region15: #{linear_eval_forward.1} parent=0 // pred_check_branch
    %18 = sbr.rel (0) target = $region17
  $region16: #{linear_eval_forward.1} parent=0 // pred_region
    _
  $region17: #{linear_eval_forward.1} parent=0 // pred_fallthru
    _
  // Predicated region
  $region18: #{linear_eval_forward.1} parent=0 // pred_check
    _
  $region19: #{linear_eval_forward.1} parent=0 // pred_check_branch
    %20 = sbr.rel (0) target = $region21
  $region20: #{linear_eval_forward.1} parent=0 // pred_region
    _
  $region21: #{linear_eval_forward.1} parent=0 // pred_fallthru
    _
  // Predicated region
  $region22: #{linear_eval_forward.1} parent=0 // pred_check
    _
  $region23: #{linear_eval_forward.1} parent=0 // pred_check_branch
    %22 = sbr.rel (0) target = $region25
  $region24: #{linear_eval_forward.1} parent=0 // pred_region
    _
  $region25: #{linear_eval_forward.1} parent=0 // pred_fallthru
    _
  %v24 = vld [vmem:[%s0] sm:$0xff]
  %v25 = vld [vmem:[%s0 + $0x8] sm:$0xff]
  %v26 = vld [vmem:[%s0 + $0x10] sm:$0xff]
  %v27 = vld [vmem:[%s0 + $0x18] sm:$0xff]
  %v28 = vld [vmem:[%s0 + $0x20] sm:$0xff]
  %v29 = vld [vmem:[%s0 + $0x28] sm:$0xff]
  %v30 = vld [vmem:[%s0 + $0x30] sm:$0xff]
  %v31 = vld [vmem:[%s0 + $0x38] sm:$0xff]
  %v32 = vld [vmem:[%s0 + $0x40] sm:$0xff]
  %v33 = vld [vmem:[%s0 + $0x48] sm:$0xff]
  %v34 = vld [vmem:[%s0 + $0x50] sm:$0xff]
  %v35 = vld [vmem:[%s0 + $0x58] sm:$0xff]
  %v36 = vld [vmem:[%s0 + $0x60] sm:$0xff]
  %v37 = vld [vmem:[%s0 + $0x68] sm:$0xff]
  %v38 = vld [vmem:[%s0 + $0x70] sm:$0xff]
  %v39 = vld [vmem:[%s0 + $0x78] sm:$0xff]
  %v40 = vld [vmem:[%s0 + $0x80] sm:$0xff]
  %v41 = vld [vmem:[%s0 + $0x88] sm:$0xff]
  %v42 = vld [vmem:[%s0 + $0x90] sm:$0xff]
  %v43 = vld [vmem:[%s0 + $0x98] sm:$0xff]
  %v44 = vld [vmem:[%s0 + $0xa0] sm:$0xff]
  %v45 = vld [vmem:[%s0 + $0xa8] sm:$0xff]
  %v46 = vld [vmem:[%s0 + $0xb0] sm:$0xff]
  %v47 = vld [vmem:[%s0 + $0xb8] sm:$0xff]
  %v48 = vld [vmem:[%s0 + $0xc0] sm:$0xff]
  %v49 = vld [vmem:[%s0 + $0xc8] sm:$0xff]
  %v50 = vld [vmem:[%s0 + $0xd0] sm:$0xff]
  %v51 = vld [vmem:[%s0 + $0xd8] sm:$0xff]
  %v52 = vld [vmem:[%s0 + $0xe0] sm:$0xff]
  %v53 = vld [vmem:[%s0 + $0xe8] sm:$0xff]
  %v54 = vld [vmem:[%s0 + $0xf0] sm:$0xff]
  %v55 = vld [vmem:[%s0 + $0xf8] sm:$0xff]
  %v56 = vld [vmem:[%s0 + $0x100] sm:$0xff]
  %v57 = vld [vmem:[%s0 + $0x108] sm:$0xff]
  %v58 = vld [vmem:[%s0 + $0x110] sm:$0xff]
  %v59 = vld [vmem:[%s0 + $0x118] sm:$0xff]
  %v60 = vld [vmem:[%s0 + $0x120] sm:$0xff]
  %v61 = vld [vmem:[%s0 + $0x128] sm:$0xff]
  %v62 = vld [vmem:[%s0 + $0x130] sm:$0xff]
  %v63 = vld [vmem:[%s0 + $0x138] sm:$0xff]
  %v64 = vld [vmem:[%s0 + $0x140] sm:$0xff]
  %v65 = vld [vmem:[%s0 + $0x148] sm:$0xff]
  %v66 = vld [vmem:[%s0 + $0x150] sm:$0xff]
  %v67 = vld [vmem:[%s0 + $0x158] sm:$0xff]
  %v68 = vld [vmem:[%s0 + $0x160] sm:$0xff]
  %v69 = vld [vmem:[%s0 + $0x168] sm:$0xff]
  %v70 = vld [vmem:[%s0 + $0x170] sm:$0xff]
  %v71 = vld [vmem:[%s0 + $0x178] sm:$0xff]
  %v72 = vld [vmem:[%s0 + $0x180] sm:$0xff]
  %v73 = vld [vmem:[%s0 + $0x188] sm:$0xff]
  %v74 = vld [vmem:[%s0 + $0x190] sm:$0xff]
  %v75 = vld [vmem:[%s0 + $0x198] sm:$0xff]
  %v76 = vld [vmem:[%s0 + $0x1a0] sm:$0xff]
  %v77 = vld [vmem:[%s0 + $0x1a8] sm:$0xff]
  %v78 = vld [vmem:[%s0 + $0x1b0] sm:$0xff]
  %v79 = vld [vmem:[%s0 + $0x1b8] sm:$0xff]
  %v80 = vld [vmem:[%s0 + $0x1c0] sm:$0xff]
  %v81 = vld [vmem:[%s0 + $0x1c8] sm:$0xff]
  %v82 = vld [vmem:[%s0 + $0x1d0] sm:$0xff]
  %v83 = vld [vmem:[%s0 + $0x1d8] sm:$0xff]
  %v84 = vld [vmem:[%s0 + $0x1e0] sm:$0xff]
  %v85 = vld [vmem:[%s0 + $0x1e8] sm:$0xff]
  %v86 = vld [vmem:[%s0 + $0x1f0] sm:$0xff]
  %v87 = vld [vmem:[%s0 + $0x1f8] sm:$0xff]
  %v88 = vld [vmem:[%s0 + $0x200] sm:$0xff]
  %v89 = vld [vmem:[%s0 + $0x208] sm:$0xff]
  %v90 = vld [vmem:[%s0 + $0x210] sm:$0xff]
  %v91 = vld [vmem:[%s0 + $0x218] sm:$0xff]
  %v92 = vld [vmem:[%s0 + $0x220] sm:$0xff]
  %v93 = vld [vmem:[%s0 + $0x228] sm:$0xff]
  %v94 = vld [vmem:[%s0 + $0x230] sm:$0xff]
  %v95 = vld [vmem:[%s0 + $0x238] sm:$0xff]
  %v96 = vld [vmem:[%s0 + $0x240] sm:$0xff]
  %v97 = vld [vmem:[%s0 + $0x248] sm:$0xff]
  %v98 = vld [vmem:[%s0 + $0x250] sm:$0xff]
  %v99 = vld [vmem:[%s0 + $0x258] sm:$0xff]
  %v100 = vld [vmem:[%s0 + $0x260] sm:$0xff]
  %v101 = vld [vmem:[%s0 + $0x268] sm:$0xff]
  %v102 = vld [vmem:[%s0 + $0x270] sm:$0xff]
  %v103 = vld [vmem:[%s0 + $0x278] sm:$0xff]
  %v104 = vld [vmem:[%s0 + $0x280] sm:$0xff]
  %v105 = vld [vmem:[%s0 + $0x288] sm:$0xff]
  %v106 = vpack.c.bf16 %v25, %v24
  %v107 = vpack.c.bf16 %v27, %v26
  %v108 = vpack.c.bf16 %v29, %v28
  %v109 = vpack.c.bf16 %v31, %v30
  %v110 = vpack.c.bf16 %v33, %v32
  %v111 = vpack.c.bf16 %v35, %v34
  %v112 = vpack.c.bf16 %v37, %v36
  %v113 = vpack.c.bf16 %v39, %v38
  %v114 = vpack.c.bf16 %v41, %v40
  %v115 = vpack.c.bf16 %v43, %v42
  %v116 = vpack.c.bf16 %v45, %v44
  %v117 = vpack.c.bf16 %v47, %v46
  %v118 = vpack.c.bf16 %v49, %v48
  %v119 = vpack.c.bf16 %v51, %v50
  %v120 = vpack.c.bf16 %v53, %v52
  %v121 = vpack.c.bf16 %v55, %v54
  %v122 = vpack.c.bf16 %v57, %v56
  %v123 = vpack.c.bf16 %v59, %v58
  %v124 = vpack.c.bf16 %v61, %v60
  %v125 = vpack.c.bf16 %v63, %v62
  %v126 = vpack.c.bf16 %v65, %v64
  %v127 = vpack.c.bf16 %v67, %v66
  %v128 = vpack.c.bf16 %v69, %v68
  %v129 = vpack.c.bf16 %v71, %v70
  %v130 = vpack.c.bf16 %v73, %v72
  %v131 = vpack.c.bf16 %v75, %v74
  %v132 = vpack.c.bf16 %v77, %v76
  %v133 = vpack.c.bf16 %v79, %v78
  %v134 = vpack.c.bf16 %v81, %v80
  %v135 = vpack.c.bf16 %v83, %v82
  %v136 = vpack.c.bf16 %v85, %v84
  %v137 = vpack.c.bf16 %v87, %v86
  %v138 = vpack.c.bf16 %v89, %v88
  %v139 = vpack.c.bf16 %v91, %v90
  %v140 = vpack.c.bf16 %v93, %v92
  %v141 = vpack.c.bf16 %v95, %v94
  %v142 = vpack.c.bf16 %v97, %v96
  %v143 = vpack.c.bf16 %v99, %v98
  %v144 = vpack.c.bf16 %v100, %v100
  %v145 = vld [vmem:[%s1] sm:$0x3]
  %v146 = vpack.c.bf16 %v101, %v100
  %s147 = scalar_lea.vmem %s1, 2
  %v148 = vld [vmem:[%s147] sm:$0x3]
  %vm149 = vsmask.f32 7424
  %v151 = vshrl.u32 %v106, 16
  %v153 = vshll.u32 %v106, 16
  %v155 = vrot.slane %v153, 1
  %v156 = vor.u32 %v151, %v155
  %v158 = vshll.u32 %v107, 16
  %v160 = vrot.slane %v158, 1
  %v161 = vsel %vm149, %v156, %v160
  %v162 = vshrl.u32 %v107, 16
  %v164 = vor.u32 %v162, %v160
  %v166 = vshll.u32 %v108, 16
  %v168 = vrot.slane %v166, 1
  %v169 = vsel %vm149, %v164, %v168
  %v170 = vshrl.u32 %v108, 16
  %v172 = vor.u32 %v170, %v168
  %v174 = vshll.u32 %v109, 16
  %v176 = vrot.slane %v174, 1
  %v177 = vsel %vm149, %v172, %v176
  %v178 = vshrl.u32 %v109, 16
  %v180 = vor.u32 %v178, %v176
  %v182 = vshll.u32 %v110, 16
  %v184 = vrot.slane %v182, 1
  %v185 = vsel %vm149, %v180, %v184
  %v186 = vshrl.u32 %v110, 16
  %v188 = vor.u32 %v186, %v184
  %v190 = vshll.u32 %v111, 16
  %v192 = vrot.slane %v190, 1
  %v193 = vsel %vm149, %v188, %v192
  %v194 = vshrl.u32 %v111, 16
  %v196 = vor.u32 %v194, %v192
  %v198 = vshll.u32 %v112, 16
  %v200 = vrot.slane %v198, 1
  %v201 = vsel %vm149, %v196, %v200
  %v202 = vshrl.u32 %v112, 16
  %v204 = vor.u32 %v202, %v200
  %v206 = vshll.u32 %v113, 16
  %v208 = vrot.slane %v206, 1
  %v209 = vsel %vm149, %v204, %v208
  %v210 = vshrl.u32 %v113, 16
  %v212 = vor.u32 %v210, %v208
  %v214 = vshll.u32 %v114, 16
  %v216 = vrot.slane %v214, 1
  %v217 = vsel %vm149, %v212, %v216
  %v218 = vshrl.u32 %v114, 16
  %v220 = vor.u32 %v218, %v216
  %v222 = vshll.u32 %v115, 16
  %v224 = vrot.slane %v222, 1
  %v225 = vsel %vm149, %v220, %v224
  %v226 = vshrl.u32 %v115, 16
  %v228 = vor.u32 %v226, %v224
  %v230 = vshll.u32 %v116, 16
  %v232 = vrot.slane %v230, 1
  %v233 = vsel %vm149, %v228, %v232
  %v234 = vshrl.u32 %v116, 16
  %v236 = vor.u32 %v234, %v232
  %v238 = vshll.u32 %v117, 16
  %v240 = vrot.slane %v238, 1
  %v241 = vsel %vm149, %v236, %v240
  %v242 = vshrl.u32 %v117, 16
  %v244 = vor.u32 %v242, %v240
  %v246 = vshll.u32 %v118, 16
  %v248 = vrot.slane %v246, 1
  %v249 = vsel %vm149, %v244, %v248
  %v250 = vshrl.u32 %v118, 16
  %v252 = vor.u32 %v250, %v248
  %v254 = vshll.u32 %v119, 16
  %v256 = vrot.slane %v254, 1
  %v257 = vsel %vm149, %v252, %v256
  %v258 = vshrl.u32 %v119, 16
  %v260 = vor.u32 %v258, %v256
  %v262 = vshll.u32 %v120, 16
  %v264 = vrot.slane %v262, 1
  %v265 = vsel %vm149, %v260, %v264
  %v266 = vshrl.u32 %v120, 16
  %v268 = vor.u32 %v266, %v264
  %v270 = vshll.u32 %v121, 16
  %v272 = vrot.slane %v270, 1
  %v273 = vsel %vm149, %v268, %v272
  %v274 = vshrl.u32 %v121, 16
  %v276 = vor.u32 %v274, %v272
  %v278 = vshll.u32 %v122, 16
  %v280 = vrot.slane %v278, 1
  %v281 = vsel %vm149, %v276, %v280
  %v282 = vshrl.u32 %v122, 16
  %v284 = vor.u32 %v282, %v280
  %v286 = vshll.u32 %v123, 16
  %v288 = vrot.slane %v286, 1
  %v289 = vsel %vm149, %v284, %v288
  %v290 = vshrl.u32 %v123, 16
  %v292 = vor.u32 %v290, %v288
  %v294 = vshll.u32 %v124, 16
  %v296 = vrot.slane %v294, 1
  %v297 = vsel %vm149, %v292, %v296
  %v298 = vshrl.u32 %v124, 16
  %v300 = vor.u32 %v298, %v296
  %v302 = vshll.u32 %v125, 16
  %v304 = vrot.slane %v302, 1
  %v305 = vsel %vm149, %v300, %v304
  %v306 = vshrl.u32 %v125, 16
  %v308 = vor.u32 %v306, %v304
  %v310 = vshll.u32 %v126, 16
  %v312 = vrot.slane %v310, 1
  %v313 = vsel %vm149, %v308, %v312
  %v314 = vshrl.u32 %v126, 16
  %v316 = vor.u32 %v314, %v312
  %v318 = vshll.u32 %v127, 16
  %v320 = vrot.slane %v318, 1
  %v321 = vsel %vm149, %v316, %v320
  %v322 = vshrl.u32 %v127, 16
  %v324 = vor.u32 %v322, %v320
  %v326 = vshll.u32 %v128, 16
  %v328 = vrot.slane %v326, 1
  %v329 = vsel %vm149, %v324, %v328
  %v330 = vshrl.u32 %v128, 16
  %v332 = vor.u32 %v330, %v328
  %v334 = vshll.u32 %v129, 16
  %v336 = vrot.slane %v334, 1
  %v337 = vsel %vm149, %v332, %v336
  %v338 = vshrl.u32 %v129, 16
  %v340 = vor.u32 %v338, %v336
  %v342 = vshll.u32 %v130, 16
  %v344 = vrot.slane %v342, 1
  %v345 = vsel %vm149, %v340, %v344
  %v346 = vshrl.u32 %v130, 16
  %v348 = vor.u32 %v346, %v344
  %v350 = vshll.u32 %v131, 16
  %v352 = vrot.slane %v350, 1
  %v353 = vsel %vm149, %v348, %v352
  %v354 = vshrl.u32 %v131, 16
  %v356 = vor.u32 %v354, %v352
  %v358 = vshll.u32 %v132, 16
  %v360 = vrot.slane %v358, 1
  %v361 = vsel %vm149, %v356, %v360
  %v362 = vshrl.u32 %v132, 16
  %v364 = vor.u32 %v362, %v360
  %v366 = vshll.u32 %v133, 16
  %v368 = vrot.slane %v366, 1
  %v369 = vsel %vm149, %v364, %v368
  %v370 = vshrl.u32 %v133, 16
  %v372 = vor.u32 %v370, %v368
  %v374 = vshll.u32 %v134, 16
  %v376 = vrot.slane %v374, 1
  %v377 = vsel %vm149, %v372, %v376
  %v378 = vshrl.u32 %v134, 16
  %v380 = vor.u32 %v378, %v376
  %v382 = vshll.u32 %v135, 16
  %v384 = vrot.slane %v382, 1
  %v385 = vsel %vm149, %v380, %v384
  %v386 = vshrl.u32 %v135, 16
  %v388 = vor.u32 %v386, %v384
  %v390 = vshll.u32 %v136, 16
  %v392 = vrot.slane %v390, 1
  %v393 = vsel %vm149, %v388, %v392
  %v394 = vshrl.u32 %v136, 16
  %v396 = vor.u32 %v394, %v392
  %v398 = vshll.u32 %v137, 16
  %v400 = vrot.slane %v398, 1
  %v401 = vsel %vm149, %v396, %v400
  %v402 = vshrl.u32 %v137, 16
  %v404 = vor.u32 %v402, %v400
  %v406 = vshll.u32 %v138, 16
  %v408 = vrot.slane %v406, 1
  %v409 = vsel %vm149, %v404, %v408
  %v410 = vshrl.u32 %v138, 16
  %v412 = vor.u32 %v410, %v408
  %v414 = vshll.u32 %v139, 16
  %v416 = vrot.slane %v414, 1
  %v417 = vsel %vm149, %v412, %v416
  %v418 = vshrl.u32 %v139, 16
  %v420 = vor.u32 %v418, %v416
  %v422 = vshll.u32 %v140, 16
  %v424 = vrot.slane %v422, 1
  %v425 = vsel %vm149, %v420, %v424
  %v426 = vshrl.u32 %v140, 16
  %v428 = vor.u32 %v426, %v424
  %v430 = vshll.u32 %v141, 16
  %v432 = vrot.slane %v430, 1
  %v433 = vsel %vm149, %v428, %v432
  %v434 = vshrl.u32 %v141, 16
  %v436 = vor.u32 %v434, %v432
  %v438 = vshll.u32 %v142, 16
  %v440 = vrot.slane %v438, 1
  %v441 = vsel %vm149, %v436, %v440
  %v442 = vshrl.u32 %v142, 16
  %v444 = vor.u32 %v442, %v440
  %v446 = vshll.u32 %v143, 16
  %v448 = vrot.slane %v446, 1
  %v449 = vsel %vm149, %v444, %v448
  %v450 = vshrl.u32 %v143, 16
  %v452 = vor.u32 %v450, %v448
  %v454 = vshll.u32 %v146, 16
  %v456 = vrot.slane %v454, 1
  %v457 = vsel %vm149, %v452, %v456
  %v458 = vshrl.u32 %v146, 16
  %v460 = vor.u32 %v458, %v456
  %vm461 = vcmask 31744
  %v463 = vsel %vm461, %v161, 0
  %v466 = vsel %vm461, %v169, 0
  %v469 = vsel %vm461, %v177, 0
  %v472 = vsel %vm461, %v185, 0
  %v475 = vsel %vm461, %v193, 0
  %v478 = vsel %vm461, %v201, 0
  %v481 = vsel %vm461, %v209, 0
  %v484 = vsel %vm461, %v217, 0
  %v487 = vsel %vm461, %v225, 0
  %v490 = vsel %vm461, %v233, 0
  %v493 = vsel %vm461, %v241, 0
  %v496 = vsel %vm461, %v249, 0
  %v499 = vsel %vm461, %v257, 0
  %v502 = vsel %vm461, %v265, 0
  %v505 = vsel %vm461, %v273, 0
  %v508 = vsel %vm461, %v281, 0
  %v511 = vsel %vm461, %v289, 0
  %v514 = vsel %vm461, %v297, 0
  %v517 = vsel %vm461, %v305, 0
  %v520 = vsel %vm461, %v313, 0
  %v523 = vsel %vm461, %v321, 0
  %v526 = vsel %vm461, %v329, 0
  %v529 = vsel %vm461, %v337, 0
  %v532 = vsel %vm461, %v345, 0
  %v535 = vsel %vm461, %v353, 0
  %v538 = vsel %vm461, %v361, 0
  %v541 = vsel %vm461, %v369, 0
  %v544 = vsel %vm461, %v377, 0
  %v547 = vsel %vm461, %v385, 0
  %v550 = vsel %vm461, %v393, 0
  %v553 = vsel %vm461, %v401, 0
  %v556 = vsel %vm461, %v409, 0
  %v559 = vsel %vm461, %v417, 0
  %v562 = vsel %vm461, %v425, 0
  %v565 = vsel %vm461, %v433, 0
  %v568 = vsel %vm461, %v441, 0
  %v571 = vsel %vm461, %v449, 0
  %v574 = vsel %vm461, %v457, 0
  %v577 = vsel %vm461, %v460, 0
  %vm579 = vcmask 1041408
  %v581 = vsel %vm579, %v148, 0
  %583 = vmatprep.subr.bf16.mxu0 0
  %584 = vmatpush1.bf16.msra.mxu0 %v581
  %585 = vmatprep.subr.bf16.mxu0 0
  %586 = vmatpush1.bf16.msra.mxu0 0
  %587 = vmatprep.subr.bf16.mxu0 0
  %588 = vmatpush1.bf16.msra.mxu0 0
  %589 = vmatprep.subr.bf16.mxu0 0
  %590 = vmatpush1.bf16.msra.mxu0 0
  %591 = vmatprep.subr.bf16.mxu0 0
  %592 = vmatpush1.bf16.msra.mxu0 0
  %593 = vmatprep.subr.bf16.mxu0 0
  %594 = vmatpush1.bf16.msra.mxu0 0
  %595 = vmatprep.subr.bf16.mxu0 0
  %596 = vmatpush1.bf16.msra.mxu0 0
  %597 = vmatprep.subr.bf16.mxu0 0
  %598 = vmatpush1.bf16.msra.mxu0 0
  %599 = vmatprep.subr.bf16.mxu0 0
  %600 = vmatpush1.bf16.msra.mxu0 0
  %601 = vmatprep.subr.bf16.mxu0 0
  %602 = vmatpush1.bf16.msra.mxu0 0
  %603 = vmatprep.subr.bf16.mxu0 0
  %604 = vmatpush1.bf16.msra.mxu0 0
  %605 = vmatprep.subr.bf16.mxu0 0
  %606 = vmatpush1.bf16.msra.mxu0 0
  %607 = vmatprep.subr.bf16.mxu0 0
  %608 = vmatpush1.bf16.msra.mxu0 0
  %609 = vmatprep.subr.bf16.mxu0 0
  %610 = vmatpush1.bf16.msra.mxu0 0
  %611 = vmatprep.subr.bf16.mxu0 0
  %612 = vmatpush1.bf16.msra.mxu0 0
  %613 = vmatprep.subr.bf16.mxu0 0
  %614 = vmatpush1.bf16.msra.mxu0 0
  %615 = vmatprep.mubr.bf16.mxu0 0
  %616 = vmatmul.mubr.bf16.gmra.mrb[0].mxu0 %v463
  %v617 = vpop.f32.mrb[0].mxu0
  %v618 = vadd.f32 0.0, %v617
  %v619 = vpop.f32.mrb[0].mxu0
  %v620 = vpop.f32.mrb[0].mxu0
  %v621 = vadd.f32 0.0, %v620
  %v622 = vpop.f32.mrb[0].mxu0
  %623 = vmatprep.mubr.bf16.mxu0 0
  %624 = vmatmul.mubr.bf16.gmra.mrb[0].mxu0 %v466
  %v625 = vpop.f32.mrb[0].mxu0
  %v626 = vadd.f32 0.0, %v625
  %v627 = vpop.f32.mrb[0].mxu0
  %v628 = vpop.f32.mrb[0].mxu0
  %v629 = vadd.f32 0.0, %v628
  %v630 = vpop.f32.mrb[0].mxu0
  %631 = vmatprep.mubr.bf16.mxu0 0
  %632 = vmatmul.mubr.bf16.gmra.mrb[0].mxu0 %v469
  %v633 = vpop.f32.mrb[0].mxu0
  %v634 = vadd.f32 0.0, %v633
  %v635 = vpop.f32.mrb[0].mxu0
  %v636 = vpop.f32.mrb[0].mxu0
  %v637 = vadd.f32 0.0, %v636
  %v638 = vpop.f32.mrb[0].mxu0
  %639 = vmatprep.mubr.bf16.mxu0 0
  %640 = vmatmul.mubr.bf16.gmra.mrb[0].mxu0 %v472
  %v641 = vpop.f32.mrb[0].mxu0
  %v642 = vadd.f32 0.0, %v641
  %v643 = vpop.f32.mrb[0].mxu0
  %v644 = vpop.f32.mrb[0].mxu0
  %v645 = vadd.f32 0.0, %v644
  %v646 = vpop.f32.mrb[0].mxu0
  %647 = vmatprep.mubr.bf16.mxu0 0
  %648 = vmatmul.mubr.bf16.gmra.mrb[0].mxu0 %v475
  %v649 = vpop.f32.mrb[0].mxu0
  %v650 = vadd.f32 0.0, %v649
  %v651 = vpop.f32.mrb[0].mxu0
  %v652 = vpop.f32.mrb[0].mxu0
  %v653 = vadd.f32 0.0, %v652
  %v654 = vpop.f32.mrb[0].mxu0
  %655 = vmatprep.mubr.bf16.mxu0 0
  %656 = vmatmul.mubr.bf16.gmra.mrb[0].mxu0 %v478
  %v657 = vpop.f32.mrb[0].mxu0
  %v658 = vadd.f32 0.0, %v657
  %v659 = vpop.f32.mrb[0].mxu0
  %v660 = vpop.f32.mrb[0].mxu0
  %v661 = vadd.f32 0.0, %v660
  %v662 = vpop.f32.mrb[0].mxu0
  %663 = vmatprep.mubr.bf16.mxu0 0
  %664 = vmatmul.mubr.bf16.gmra.mrb[0].mxu0 %v481
  %v665 = vpop.f32.mrb[0].mxu0
  %v666 = vadd.f32 0.0, %v665
  %v667 = vpop.f32.mrb[0].mxu0
  %v668 = vpop.f32.mrb[0].mxu0
  %v669 = vadd.f32 0.0, %v668
  %v670 = vpop.f32.mrb[0].mxu0
  %671 = vmatprep.mubr.bf16.mxu0 0
  %672 = vmatmul.mubr.bf16.gmra.mrb[0].mxu0 %v484
  %v673 = vpop.f32.mrb[0].mxu0
  %v674 = vadd.f32 0.0, %v673
  %v675 = vpop.f32.mrb[0].mxu0
  %v676 = vpop.f32.mrb[0].mxu0
  %v677 = vadd.f32 0.0, %v676
  %v678 = vpop.f32.mrb[0].mxu0
  %679 = vmatprep.mubr.bf16.mxu0 0
  %680 = vmatmul.mubr.bf16.gmra.mrb[0].mxu0 %v487
  %v681 = vpop.f32.mrb[0].mxu0
  %v682 = vadd.f32 0.0, %v681
  %v683 = vpop.f32.mrb[0].mxu0
  %v684 = vpop.f32.mrb[0].mxu0
  %v685 = vadd.f32 0.0, %v684
  %v686 = vpop.f32.mrb[0].mxu0
  %687 = vmatprep.mubr.bf16.mxu0 0
  %688 = vmatmul.mubr.bf16.gmra.mrb[0].mxu0 %v490
  %v689 = vpop.f32.mrb[0].mxu0
  %v690 = vadd.f32 0.0, %v689
  %v691 = vpop.f32.mrb[0].mxu0
  %v692 = vpop.f32.mrb[0].mxu0
  %v693 = vadd.f32 0.0, %v692
  %v694 = vpop.f32.mrb[0].mxu0
  %695 = vmatprep.mubr.bf16.mxu0 0
  %696 = vmatmul.mubr.bf16.gmra.mrb[0].mxu0 %v493
  %v697 = vpop.f32.mrb[0].mxu0
  %v698 = vadd.f32 0.0, %v697
  %v699 = vpop.f32.mrb[0].mxu0
  %v700 = vpop.f32.mrb[0].mxu0
  %v701 = vadd.f32 0.0, %v700
  %v702 = vpop.f32.mrb[0].mxu0
  %703 = vmatprep.mubr.bf16.mxu0 0
  %704 = vmatmul.mubr.bf16.gmra.mrb[0].mxu0 %v496
  %v705 = vpop.f32.mrb[0].mxu0
  %v706 = vadd.f32 0.0, %v705
  %v707 = vpop.f32.mrb[0].mxu0
  %v708 = vpop.f32.mrb[0].mxu0
  %v709 = vadd.f32 0.0, %v708
  %v710 = vpop.f32.mrb[0].mxu0
  %711 = vmatprep.mubr.bf16.mxu0 0
  %712 = vmatmul.mubr.bf16.gmra.mrb[0].mxu0 %v499
  %v713 = vpop.f32.mrb[0].mxu0
  %v714 = vadd.f32 0.0, %v713
  %v715 = vpop.f32.mrb[0].mxu0
  %v716 = vpop.f32.mrb[0].mxu0
  %v717 = vadd.f32 0.0, %v716
  %v718 = vpop.f32.mrb[0].mxu0
  %719 = vmatprep.mubr.bf16.mxu0 0
  %720 = vmatmul.mubr.bf16.gmra.mrb[0].mxu0 %v502
  %v721 = vpop.f32.mrb[0].mxu0
  %v722 = vadd.f32 0.0, %v721
  %v723 = vpop.f32.mrb[0].mxu0
  %v724 = vpop.f32.mrb[0].mxu0
  %v725 = vadd.f32 0.0, %v724
  %v726 = vpop.f32.mrb[0].mxu0
  %727 = vmatprep.mubr.bf16.mxu0 0
  %728 = vmatmul.mubr.bf16.gmra.mrb[0].mxu0 %v505
  %v729 = vpop.f32.mrb[0].mxu0
  %v730 = vadd.f32 0.0, %v729
  %v731 = vpop.f32.mrb[0].mxu0
  %v732 = vpop.f32.mrb[0].mxu0
  %v733 = vadd.f32 0.0, %v732
  %v734 = vpop.f32.mrb[0].mxu0
  %735 = vmatprep.mubr.bf16.mxu0 0
  %736 = vmatmul.mubr.bf16.gmra.mrb[0].mxu0 %v508
  %v737 = vpop.f32.mrb[0].mxu0
  %v738 = vadd.f32 0.0, %v737
  %v739 = vpop.f32.mrb[0].mxu0
  %v740 = vpop.f32.mrb[0].mxu0
  %v741 = vadd.f32 0.0, %v740
  %v742 = vpop.f32.mrb[0].mxu0
  %743 = vmatprep.mubr.bf16.mxu0 0
  %744 = vmatmul.mubr.bf16.gmra.mrb[0].mxu0 %v511
  %v745 = vpop.f32.mrb[0].mxu0
  %v746 = vadd.f32 0.0, %v745
  %v747 = vpop.f32.mrb[0].mxu0
  %v748 = vpop.f32.mrb[0].mxu0
  %v749 = vadd.f32 0.0, %v748
  %v750 = vpop.f32.mrb[0].mxu0
  %751 = vmatprep.mubr.bf16.mxu0 0
  %752 = vmatmul.mubr.bf16.gmra.mrb[0].mxu0 %v514
  %v753 = vpop.f32.mrb[0].mxu0
  %v754 = vadd.f32 0.0, %v753
  %v755 = vpop.f32.mrb[0].mxu0
  %v756 = vpop.f32.mrb[0].mxu0
  %v757 = vadd.f32 0.0, %v756
  %v758 = vpop.f32.mrb[0].mxu0
  %759 = vmatprep.mubr.bf16.mxu0 0
  %760 = vmatmul.mubr.bf16.gmra.mrb[0].mxu0 %v517
  %v761 = vpop.f32.mrb[0].mxu0
  %v762 = vadd.f32 0.0, %v761
  %v763 = vpop.f32.mrb[0].mxu0
  %v764 = vpop.f32.mrb[0].mxu0
  %v765 = vadd.f32 0.0, %v764
  %v766 = vpop.f32.mrb[0].mxu0
  %767 = vmatprep.mubr.bf16.mxu0 0
  %768 = vmatmul.mubr.bf16.gmra.mrb[0].mxu0 %v520
  %v769 = vpop.f32.mrb[0].mxu0
  %v770 = vadd.f32 0.0, %v769
  %v771 = vpop.f32.mrb[0].mxu0
  %v772 = vpop.f32.mrb[0].mxu0
  %v773 = vadd.f32 0.0, %v772
  %v774 = vpop.f32.mrb[0].mxu0
  %775 = vmatprep.mubr.bf16.mxu0 0
  %776 = vmatmul.mubr.bf16.gmra.mrb[0].mxu0 %v523
  %v777 = vpop.f32.mrb[0].mxu0
  %v778 = vadd.f32 0.0, %v777
  %v779 = vpop.f32.mrb[0].mxu0
  %v780 = vpop.f32.mrb[0].mxu0
  %v781 = vadd.f32 0.0, %v780
  %v782 = vpop.f32.mrb[0].mxu0
  %783 = vmatprep.mubr.bf16.mxu0 0
  %784 = vmatmul.mubr.bf16.gmra.mrb[0].mxu0 %v526
  %v785 = vpop.f32.mrb[0].mxu0
  %v786 = vadd.f32 0.0, %v785
  %v787 = vpop.f32.mrb[0].mxu0
  %v788 = vpop.f32.mrb[0].mxu0
  %v789 = vadd.f32 0.0, %v788
  %v790 = vpop.f32.mrb[0].mxu0
  %791 = vmatprep.mubr.bf16.mxu0 0
  %792 = vmatmul.mubr.bf16.gmra.mrb[0].mxu0 %v529
  %v793 = vpop.f32.mrb[0].mxu0
  %v794 = vadd.f32 0.0, %v793
  %v795 = vpop.f32.mrb[0].mxu0
  %v796 = vpop.f32.mrb[0].mxu0
  %v797 = vadd.f32 0.0, %v796
  %v798 = vpop.f32.mrb[0].mxu0
  %799 = vmatprep.mubr.bf16.mxu0 0
  %800 = vmatmul.mubr.bf16.gmra.mrb[0].mxu0 %v532
  %v801 = vpop.f32.mrb[0].mxu0
  %v802 = vadd.f32 0.0, %v801
  %v803 = vpop.f32.mrb[0].mxu0
  %v804 = vpop.f32.mrb[0].mxu0
  %v805 = vadd.f32 0.0, %v804
  %v806 = vpop.f32.mrb[0].mxu0
  %807 = vmatprep.mubr.bf16.mxu0 0
  %808 = vmatmul.mubr.bf16.gmra.mrb[0].mxu0 %v535
  %v809 = vpop.f32.mrb[0].mxu0
  %v810 = vadd.f32 0.0, %v809
  %v811 = vpop.f32.mrb[0].mxu0
  %v812 = vpop.f32.mrb[0].mxu0
  %v813 = vadd.f32 0.0, %v812
  %v814 = vpop.f32.mrb[0].mxu0
  %815 = vmatprep.mubr.bf16.mxu0 0
  %816 = vmatmul.mubr.bf16.gmra.mrb[0].mxu0 %v538
  %v817 = vpop.f32.mrb[0].mxu0
  %v818 = vadd.f32 0.0, %v817
  %v819 = vpop.f32.mrb[0].mxu0
  %v820 = vpop.f32.mrb[0].mxu0
  %v821 = vadd.f32 0.0, %v820
  %v822 = vpop.f32.mrb[0].mxu0
  %823 = vmatprep.mubr.bf16.mxu0 0
  %824 = vmatmul.mubr.bf16.gmra.mrb[0].mxu0 %v541
  %v825 = vpop.f32.mrb[0].mxu0
  %v826 = vadd.f32 0.0, %v825
  %v827 = vpop.f32.mrb[0].mxu0
  %v828 = vpop.f32.mrb[0].mxu0
  %v829 = vadd.f32 0.0, %v828
  %v830 = vpop.f32.mrb[0].mxu0
  %831 = vmatprep.mubr.bf16.mxu0 0
  %832 = vmatmul.mubr.bf16.gmra.mrb[0].mxu0 %v544
  %v833 = vpop.f32.mrb[0].mxu0
  %v834 = vadd.f32 0.0, %v833
  %v835 = vpop.f32.mrb[0].mxu0
  %v836 = vpop.f32.mrb[0].mxu0
  %v837 = vadd.f32 0.0, %v836
  %v838 = vpop.f32.mrb[0].mxu0
  %839 = vmatprep.mubr.bf16.mxu0 0
  %840 = vmatmul.mubr.bf16.gmra.mrb[0].mxu0 %v547
  %v841 = vpop.f32.mrb[0].mxu0
  %v842 = vadd.f32 0.0, %v841
  %v843 = vpop.f32.mrb[0].mxu0
  %v844 = vpop.f32.mrb[0].mxu0
  %v845 = vadd.f32 0.0, %v844
  %v846 = vpop.f32.mrb[0].mxu0
  %847 = vmatprep.mubr.bf16.mxu0 0
  %848 = vmatmul.mubr.bf16.gmra.mrb[0].mxu0 %v550
  %v849 = vpop.f32.mrb[0].mxu0
  %v850 = vadd.f32 0.0, %v849
  %v851 = vpop.f32.mrb[0].mxu0
  %v852 = vpop.f32.mrb[0].mxu0
  %v853 = vadd.f32 0.0, %v852
  %v854 = vpop.f32.mrb[0].mxu0
  %855 = vmatprep.mubr.bf16.mxu0 0
  %856 = vmatmul.mubr.bf16.gmra.mrb[0].mxu0 %v553
  %v857 = vpop.f32.mrb[0].mxu0
  %v858 = vadd.f32 0.0, %v857
  %v859 = vpop.f32.mrb[0].mxu0
  %v860 = vpop.f32.mrb[0].mxu0
  %v861 = vadd.f32 0.0, %v860
  %v862 = vpop.f32.mrb[0].mxu0
  %863 = vmatprep.mubr.bf16.mxu0 0
  %864 = vmatmul.mubr.bf16.gmra.mrb[0].mxu0 %v556
  %v865 = vpop.f32.mrb[0].mxu0
  %v866 = vadd.f32 0.0, %v865
  %v867 = vpop.f32.mrb[0].mxu0
  %v868 = vpop.f32.mrb[0].mxu0
  %v869 = vadd.f32 0.0, %v868
  %v870 = vpop.f32.mrb[0].mxu0
  %871 = vmatprep.mubr.bf16.mxu0 0
  %872 = vmatmul.mubr.bf16.gmra.mrb[0].mxu0 %v559
  %v873 = vpop.f32.mrb[0].mxu0
  %v874 = vadd.f32 0.0, %v873
  %v875 = vpop.f32.mrb[0].mxu0
  %v876 = vpop.f32.mrb[0].mxu0
  %v877 = vadd.f32 0.0, %v876
  %v878 = vpop.f32.mrb[0].mxu0
  %879 = vmatprep.mubr.bf16.mxu0 0
  %880 = vmatmul.mubr.bf16.gmra.mrb[0].mxu0 %v562
  %v881 = vpop.f32.mrb[0].mxu0
  %v882 = vadd.f32 0.0, %v881
  %v883 = vpop.f32.mrb[0].mxu0
  %v884 = vpop.f32.mrb[0].mxu0
  %v885 = vadd.f32 0.0, %v884
  %v886 = vpop.f32.mrb[0].mxu0
  %887 = vmatprep.mubr.bf16.mxu0 0
  %888 = vmatmul.mubr.bf16.gmra.mrb[0].mxu0 %v565
  %v889 = vpop.f32.mrb[0].mxu0
  %v890 = vadd.f32 0.0, %v889
  %v891 = vpop.f32.mrb[0].mxu0
  %v892 = vpop.f32.mrb[0].mxu0
  %v893 = vadd.f32 0.0, %v892
  %v894 = vpop.f32.mrb[0].mxu0
  %895 = vmatprep.mubr.bf16.mxu0 0
  %896 = vmatmul.mubr.bf16.gmra.mrb[0].mxu0 %v568
  %v897 = vpop.f32.mrb[0].mxu0
  %v898 = vadd.f32 0.0, %v897
  %v899 = vpop.f32.mrb[0].mxu0
  %v900 = vpop.f32.mrb[0].mxu0
  %v901 = vadd.f32 0.0, %v900
  %v902 = vpop.f32.mrb[0].mxu0
  %903 = vmatprep.mubr.bf16.mxu0 0
  %904 = vmatmul.mubr.bf16.gmra.mrb[0].mxu0 %v571
  %v905 = vpop.f32.mrb[0].mxu0
  %v906 = vadd.f32 0.0, %v905
  %v907 = vpop.f32.mrb[0].mxu0
  %v908 = vpop.f32.mrb[0].mxu0
  %v909 = vadd.f32 0.0, %v908
  %v910 = vpop.f32.mrb[0].mxu0
  %911 = vmatprep.mubr.bf16.mxu0 0
  %912 = vmatmul.mubr.bf16.gmra.mrb[0].mxu0 %v574
  %v913 = vpop.f32.mrb[0].mxu0
  %v914 = vadd.f32 0.0, %v913
  %v915 = vpop.f32.mrb[0].mxu0
  %v916 = vpop.f32.mrb[0].mxu0
  %v917 = vadd.f32 0.0, %v916
  %v918 = vpop.f32.mrb[0].mxu0
  %919 = vmatprep.mubr.bf16.mxu0 0
  %920 = vmatmul.mubr.bf16.gmra.mrb[0].mxu0 %v577
  %v921 = vpop.f32.mrb[0].mxu0
  %v922 = vadd.f32 0.0, %v921
  %v923 = vpop.f32.mrb[0].mxu0
  %v924 = vpop.f32.mrb[0].mxu0
  %v925 = vpop.f32.mrb[0].mxu0
  %926 = vdwg.mxu0
  %v927 = vsel %vm461, %v106, 0
  %v929 = vsel %vm461, %v107, 0
  %v931 = vsel %vm461, %v108, 0
  %v933 = vsel %vm461, %v109, 0
  %v935 = vsel %vm461, %v110, 0
  %v937 = vsel %vm461, %v111, 0
  %v939 = vsel %vm461, %v112, 0
  %v941 = vsel %vm461, %v113, 0
  %v943 = vsel %vm461, %v114, 0
  %v945 = vsel %vm461, %v115, 0
  %v947 = vsel %vm461, %v116, 0
  %v949 = vsel %vm461, %v117, 0
  %v951 = vsel %vm461, %v118, 0
  %v953 = vsel %vm461, %v119, 0
  %v955 = vsel %vm461, %v120, 0
  %v957 = vsel %vm461, %v121, 0
  %v959 = vsel %vm461, %v122, 0
  %v961 = vsel %vm461, %v123, 0
  %v963 = vsel %vm461, %v124, 0
  %v965 = vsel %vm461, %v125, 0
  %v967 = vsel %vm461, %v126, 0
  %v969 = vsel %vm461, %v127, 0
  %v971 = vsel %vm461, %v128, 0
  %v973 = vsel %vm461, %v129, 0
  %v975 = vsel %vm461, %v130, 0
  %v977 = vsel %vm461, %v131, 0
  %v979 = vsel %vm461, %v132, 0
  %v981 = vsel %vm461, %v133, 0
  %v983 = vsel %vm461, %v134, 0
  %v985 = vsel %vm461, %v135, 0
  %v987 = vsel %vm461, %v136, 0
  %v989 = vsel %vm461, %v137, 0
  %v991 = vsel %vm461, %v138, 0
  %v993 = vsel %vm461, %v139, 0
  %v995 = vsel %vm461, %v140, 0
  %v997 = vsel %vm461, %v141, 0
  %v999 = vsel %vm461, %v142, 0
  %v1001 = vsel %vm461, %v143, 0
  %v1004 = vsel %vm461, %v144, 0
  %v1007 = vsel %vm579, %v145, 0
  %1009 = vmatprep.subr.bf16.mxu0 0
  %1010 = vmatpush1.bf16.msra.mxu0 %v1007
  %1011 = vmatprep.subr.bf16.mxu0 0
  %1012 = vmatpush1.bf16.msra.mxu0 0
  %1013 = vmatprep.subr.bf16.mxu0 0
  %1014 = vmatpush1.bf16.msra.mxu0 0
  %1015 = vmatprep.subr.bf16.mxu0 0
  %1016 = vmatpush1.bf16.msra.mxu0 0
  %1017 = vmatprep.subr.bf16.mxu0 0
  %1018 = vmatpush1.bf16.msra.mxu0 0
  %1019 = vmatprep.subr.bf16.mxu0 0
  %1020 = vmatpush1.bf16.msra.mxu0 0
  %1021 = vmatprep.subr.bf16.mxu0 0
  %1022 = vmatpush1.bf16.msra.mxu0 0
  %1023 = vmatprep.subr.bf16.mxu0 0
  %1024 = vmatpush1.bf16.msra.mxu0 0
  %1025 = vmatprep.subr.bf16.mxu0 0
  %1026 = vmatpush1.bf16.msra.mxu0 0
  %1027 = vmatprep.subr.bf16.mxu0 0
  %1028 = vmatpush1.bf16.msra.mxu0 0
  %1029 = vmatprep.subr.bf16.mxu0 0
  %1030 = vmatpush1.bf16.msra.mxu0 0
  %1031 = vmatprep.subr.bf16.mxu0 0
  %1032 = vmatpush1.bf16.msra.mxu0 0
  %1033 = vmatprep.subr.bf16.mxu0 0
  %1034 = vmatpush1.bf16.msra.mxu0 0
  %1035 = vmatprep.subr.bf16.mxu0 0
  %1036 = vmatpush1.bf16.msra.mxu0 0
  %1037 = vmatprep.subr.bf16.mxu0 0
  %1038 = vmatpush1.bf16.msra.mxu0 0
  %1039 = vmatprep.subr.bf16.mxu0 0
  %1040 = vmatpush1.bf16.msra.mxu0 0
  %1041 = vmatprep.mubr.bf16.mxu0 0
  %1042 = vmatmul.mubr.bf16.gmra.mrb[0].mxu0 %v927
  %v1043 = vpop.f32.mrb[0].mxu0
  %v1044 = vadd.f32 %v618, %v1043
  %v1045 = vpop.f32.mrb[0].mxu0
  %v1046 = vpop.f32.mrb[0].mxu0
  %v1047 = vadd.f32 %v621, %v1046
  %v1048 = vpop.f32.mrb[0].mxu0
  %1049 = vmatprep.mubr.bf16.mxu0 0
  %1050 = vmatmul.mubr.bf16.gmra.mrb[0].mxu0 %v929
  %v1051 = vpop.f32.mrb[0].mxu0
  %v1052 = vadd.f32 %v626, %v1051
  %v1053 = vpop.f32.mrb[0].mxu0
  %v1054 = vpop.f32.mrb[0].mxu0
  %v1055 = vadd.f32 %v629, %v1054
  %v1056 = vpop.f32.mrb[0].mxu0
  %1057 = vmatprep.mubr.bf16.mxu0 0
  %1058 = vmatmul.mubr.bf16.gmra.mrb[0].mxu0 %v931
  %v1059 = vpop.f32.mrb[0].mxu0
  %v1060 = vadd.f32 %v634, %v1059
  %v1061 = vpop.f32.mrb[0].mxu0
  %v1062 = vpop.f32.mrb[0].mxu0
  %v1063 = vadd.f32 %v637, %v1062
  %v1064 = vpop.f32.mrb[0].mxu0
  %1065 = vmatprep.mubr.bf16.mxu0 0
  %1066 = vmatmul.mubr.bf16.gmra.mrb[0].mxu0 %v933
  %v1067 = vpop.f32.mrb[0].mxu0
  %v1068 = vadd.f32 %v642, %v1067
  %v1069 = vpop.f32.mrb[0].mxu0
  %v1070 = vpop.f32.mrb[0].mxu0
  %v1071 = vadd.f32 %v645, %v1070
  %v1072 = vpop.f32.mrb[0].mxu0
  %1073 = vmatprep.mubr.bf16.mxu0 0
  %1074 = vmatmul.mubr.bf16.gmra.mrb[0].mxu0 %v935
  %v1075 = vpop.f32.mrb[0].mxu0
  %v1076 = vadd.f32 %v650, %v1075
  %v1077 = vpop.f32.mrb[0].mxu0
  %v1078 = vpop.f32.mrb[0].mxu0
  %v1079 = vadd.f32 %v653, %v1078
  %v1080 = vpop.f32.mrb[0].mxu0
  %1081 = vmatprep.mubr.bf16.mxu0 0
  %1082 = vmatmul.mubr.bf16.gmra.mrb[0].mxu0 %v937
  %v1083 = vpop.f32.mrb[0].mxu0
  %v1084 = vadd.f32 %v658, %v1083
  %v1085 = vpop.f32.mrb[0].mxu0
  %v1086 = vpop.f32.mrb[0].mxu0
  %v1087 = vadd.f32 %v661, %v1086
  %v1088 = vpop.f32.mrb[0].mxu0
  %1089 = vmatprep.mubr.bf16.mxu0 0
  %1090 = vmatmul.mubr.bf16.gmra.mrb[0].mxu0 %v939
  %v1091 = vpop.f32.mrb[0].mxu0
  %v1092 = vadd.f32 %v666, %v1091
  %v1093 = vpop.f32.mrb[0].mxu0
  %v1094 = vpop.f32.mrb[0].mxu0
  %v1095 = vadd.f32 %v669, %v1094
  %v1096 = vpop.f32.mrb[0].mxu0
  %1097 = vmatprep.mubr.bf16.mxu0 0
  %1098 = vmatmul.mubr.bf16.gmra.mrb[0].mxu0 %v941
  %v1099 = vpop.f32.mrb[0].mxu0
  %v1100 = vadd.f32 %v674, %v1099
  %v1101 = vpop.f32.mrb[0].mxu0
  %v1102 = vpop.f32.mrb[0].mxu0
  %v1103 = vadd.f32 %v677, %v1102
  %v1104 = vpop.f32.mrb[0].mxu0
  %1105 = vmatprep.mubr.bf16.mxu0 0
  %1106 = vmatmul.mubr.bf16.gmra.mrb[0].mxu0 %v943
  %v1107 = vpop.f32.mrb[0].mxu0
  %v1108 = vadd.f32 %v682, %v1107
  %v1109 = vpop.f32.mrb[0].mxu0
  %v1110 = vpop.f32.mrb[0].mxu0
  %v1111 = vadd.f32 %v685, %v1110
  %v1112 = vpop.f32.mrb[0].mxu0
  %1113 = vmatprep.mubr.bf16.mxu0 0
  %1114 = vmatmul.mubr.bf16.gmra.mrb[0].mxu0 %v945
  %v1115 = vpop.f32.mrb[0].mxu0
  %v1116 = vadd.f32 %v690, %v1115
  %v1117 = vpop.f32.mrb[0].mxu0
  %v1118 = vpop.f32.mrb[0].mxu0
  %v1119 = vadd.f32 %v693, %v1118
  %v1120 = vpop.f32.mrb[0].mxu0
  %1121 = vmatprep.mubr.bf16.mxu0 0
  %1122 = vmatmul.mubr.bf16.gmra.mrb[0].mxu0 %v947
  %v1123 = vpop.f32.mrb[0].mxu0
  %v1124 = vadd.f32 %v698, %v1123
  %v1125 = vpop.f32.mrb[0].mxu0
  %v1126 = vpop.f32.mrb[0].mxu0
  %v1127 = vadd.f32 %v701, %v1126
  %v1128 = vpop.f32.mrb[0].mxu0
  %1129 = vmatprep.mubr.bf16.mxu0 0
  %1130 = vmatmul.mubr.bf16.gmra.mrb[0].mxu0 %v949
  %v1131 = vpop.f32.mrb[0].mxu0
  %v1132 = vadd.f32 %v706, %v1131
  %v1133 = vpop.f32.mrb[0].mxu0
  %v1134 = vpop.f32.mrb[0].mxu0
  %v1135 = vadd.f32 %v709, %v1134
  %v1136 = vpop.f32.mrb[0].mxu0
  %1137 = vmatprep.mubr.bf16.mxu0 0
  %1138 = vmatmul.mubr.bf16.gmra.mrb[0].mxu0 %v951
  %v1139 = vpop.f32.mrb[0].mxu0
  %v1140 = vadd.f32 %v714, %v1139
  %v1141 = vpop.f32.mrb[0].mxu0
  %v1142 = vpop.f32.mrb[0].mxu0
  %v1143 = vadd.f32 %v717, %v1142
  %v1144 = vpop.f32.mrb[0].mxu0
  %1145 = vmatprep.mubr.bf16.mxu0 0
  %1146 = vmatmul.mubr.bf16.gmra.mrb[0].mxu0 %v953
  %v1147 = vpop.f32.mrb[0].mxu0
  %v1148 = vadd.f32 %v722, %v1147
  %v1149 = vpop.f32.mrb[0].mxu0
  %v1150 = vpop.f32.mrb[0].mxu0
  %v1151 = vadd.f32 %v725, %v1150
  %v1152 = vpop.f32.mrb[0].mxu0
  %1153 = vmatprep.mubr.bf16.mxu0 0
  %1154 = vmatmul.mubr.bf16.gmra.mrb[0].mxu0 %v955
  %v1155 = vpop.f32.mrb[0].mxu0
  %v1156 = vadd.f32 %v730, %v1155
  %v1157 = vpop.f32.mrb[0].mxu0
  %v1158 = vpop.f32.mrb[0].mxu0
  %v1159 = vadd.f32 %v733, %v1158
  %v1160 = vpop.f32.mrb[0].mxu0
  %1161 = vmatprep.mubr.bf16.mxu0 0
  %1162 = vmatmul.mubr.bf16.gmra.mrb[0].mxu0 %v957
  %v1163 = vpop.f32.mrb[0].mxu0
  %v1164 = vadd.f32 %v738, %v1163
  %v1165 = vpop.f32.mrb[0].mxu0
  %v1166 = vpop.f32.mrb[0].mxu0
  %v1167 = vadd.f32 %v741, %v1166
  %v1168 = vpop.f32.mrb[0].mxu0
  %1169 = vmatprep.mubr.bf16.mxu0 0
  %1170 = vmatmul.mubr.bf16.gmra.mrb[0].mxu0 %v959
  %v1171 = vpop.f32.mrb[0].mxu0
  %v1172 = vadd.f32 %v746, %v1171
  %v1173 = vpop.f32.mrb[0].mxu0
  %v1174 = vpop.f32.mrb[0].mxu0
  %v1175 = vadd.f32 %v749, %v1174
  %v1176 = vpop.f32.mrb[0].mxu0
  %1177 = vmatprep.mubr.bf16.mxu0 0
  %1178 = vmatmul.mubr.bf16.gmra.mrb[0].mxu0 %v961
  %v1179 = vpop.f32.mrb[0].mxu0
  %v1180 = vadd.f32 %v754, %v1179
  %v1181 = vpop.f32.mrb[0].mxu0
  %v1182 = vpop.f32.mrb[0].mxu0
  %v1183 = vadd.f32 %v757, %v1182
  %v1184 = vpop.f32.mrb[0].mxu0
  %1185 = vmatprep.mubr.bf16.mxu0 0
  %1186 = vmatmul.mubr.bf16.gmra.mrb[0].mxu0 %v963
  %v1187 = vpop.f32.mrb[0].mxu0
  %v1188 = vadd.f32 %v762, %v1187
  %v1189 = vpop.f32.mrb[0].mxu0
  %v1190 = vpop.f32.mrb[0].mxu0
  %v1191 = vadd.f32 %v765, %v1190
  %v1192 = vpop.f32.mrb[0].mxu0
  %1193 = vmatprep.mubr.bf16.mxu0 0
  %1194 = vmatmul.mubr.bf16.gmra.mrb[0].mxu0 %v965
  %v1195 = vpop.f32.mrb[0].mxu0
  %v1196 = vadd.f32 %v770, %v1195
  %v1197 = vpop.f32.mrb[0].mxu0
  %v1198 = vpop.f32.mrb[0].mxu0
  %v1199 = vadd.f32 %v773, %v1198
  %v1200 = vpop.f32.mrb[0].mxu0
  %1201 = vmatprep.mubr.bf16.mxu0 0
  %1202 = vmatmul.mubr.bf16.gmra.mrb[0].mxu0 %v967
  %v1203 = vpop.f32.mrb[0].mxu0
  %v1204 = vadd.f32 %v778, %v1203
  %v1205 = vpop.f32.mrb[0].mxu0
  %v1206 = vpop.f32.mrb[0].mxu0
  %v1207 = vadd.f32 %v781, %v1206
  %v1208 = vpop.f32.mrb[0].mxu0
  %1209 = vmatprep.mubr.bf16.mxu0 0
  %1210 = vmatmul.mubr.bf16.gmra.mrb[0].mxu0 %v969
  %v1211 = vpop.f32.mrb[0].mxu0
  %v1212 = vadd.f32 %v786, %v1211
  %v1213 = vpop.f32.mrb[0].mxu0
  %v1214 = vpop.f32.mrb[0].mxu0
  %v1215 = vadd.f32 %v789, %v1214
  %v1216 = vpop.f32.mrb[0].mxu0
  %1217 = vmatprep.mubr.bf16.mxu0 0
  %1218 = vmatmul.mubr.bf16.gmra.mrb[0].mxu0 %v971
  %v1219 = vpop.f32.mrb[0].mxu0
  %v1220 = vadd.f32 %v794, %v1219
  %v1221 = vpop.f32.mrb[0].mxu0
  %v1222 = vpop.f32.mrb[0].mxu0
  %v1223 = vadd.f32 %v797, %v1222
  %v1224 = vpop.f32.mrb[0].mxu0
  %1225 = vmatprep.mubr.bf16.mxu0 0
  %1226 = vmatmul.mubr.bf16.gmra.mrb[0].mxu0 %v973
  %v1227 = vpop.f32.mrb[0].mxu0
  %v1228 = vadd.f32 %v802, %v1227
  %v1229 = vpop.f32.mrb[0].mxu0
  %v1230 = vpop.f32.mrb[0].mxu0
  %v1231 = vadd.f32 %v805, %v1230
  %v1232 = vpop.f32.mrb[0].mxu0
  %1233 = vmatprep.mubr.bf16.mxu0 0
  %1234 = vmatmul.mubr.bf16.gmra.mrb[0].mxu0 %v975
  %v1235 = vpop.f32.mrb[0].mxu0
  %v1236 = vadd.f32 %v810, %v1235
  %v1237 = vpop.f32.mrb[0].mxu0
  %v1238 = vpop.f32.mrb[0].mxu0
  %v1239 = vadd.f32 %v813, %v1238
  %v1240 = vpop.f32.mrb[0].mxu0
  %1241 = vmatprep.mubr.bf16.mxu0 0
  %1242 = vmatmul.mubr.bf16.gmra.mrb[0].mxu0 %v977
  %v1243 = vpop.f32.mrb[0].mxu0
  %v1244 = vadd.f32 %v818, %v1243
  %v1245 = vpop.f32.mrb[0].mxu0
  %v1246 = vpop.f32.mrb[0].mxu0
  %v1247 = vadd.f32 %v821, %v1246
  %v1248 = vpop.f32.mrb[0].mxu0
  %1249 = vmatprep.mubr.bf16.mxu0 0
  %1250 = vmatmul.mubr.bf16.gmra.mrb[0].mxu0 %v979
  %v1251 = vpop.f32.mrb[0].mxu0
  %v1252 = vadd.f32 %v826, %v1251
  %v1253 = vpop.f32.mrb[0].mxu0
  %v1254 = vpop.f32.mrb[0].mxu0
  %v1255 = vadd.f32 %v829, %v1254
  %v1256 = vpop.f32.mrb[0].mxu0
  %1257 = vmatprep.mubr.bf16.mxu0 0
  %1258 = vmatmul.mubr.bf16.gmra.mrb[0].mxu0 %v981
  %v1259 = vpop.f32.mrb[0].mxu0
  %v1260 = vadd.f32 %v834, %v1259
  %v1261 = vpop.f32.mrb[0].mxu0
  %v1262 = vpop.f32.mrb[0].mxu0
  %v1263 = vadd.f32 %v837, %v1262
  %v1264 = vpop.f32.mrb[0].mxu0
  %1265 = vmatprep.mubr.bf16.mxu0 0
  %1266 = vmatmul.mubr.bf16.gmra.mrb[0].mxu0 %v983
  %v1267 = vpop.f32.mrb[0].mxu0
  %v1268 = vadd.f32 %v842, %v1267
  %v1269 = vpop.f32.mrb[0].mxu0
  %v1270 = vpop.f32.mrb[0].mxu0
  %v1271 = vadd.f32 %v845, %v1270
  %v1272 = vpop.f32.mrb[0].mxu0
  %1273 = vmatprep.mubr.bf16.mxu0 0
  %1274 = vmatmul.mubr.bf16.gmra.mrb[0].mxu0 %v985
  %v1275 = vpop.f32.mrb[0].mxu0
  %v1276 = vadd.f32 %v850, %v1275
  %v1277 = vpop.f32.mrb[0].mxu0
  %v1278 = vpop.f32.mrb[0].mxu0
  %v1279 = vadd.f32 %v853, %v1278
  %v1280 = vpop.f32.mrb[0].mxu0
  %1281 = vmatprep.mubr.bf16.mxu0 0
  %1282 = vmatmul.mubr.bf16.gmra.mrb[0].mxu0 %v987
  %v1283 = vpop.f32.mrb[0].mxu0
  %v1284 = vadd.f32 %v858, %v1283
  %v1285 = vpop.f32.mrb[0].mxu0
  %v1286 = vpop.f32.mrb[0].mxu0
  %v1287 = vadd.f32 %v861, %v1286
  %v1288 = vpop.f32.mrb[0].mxu0
  %1289 = vmatprep.mubr.bf16.mxu0 0
  %1290 = vmatmul.mubr.bf16.gmra.mrb[0].mxu0 %v989
  %v1291 = vpop.f32.mrb[0].mxu0
  %v1292 = vadd.f32 %v866, %v1291
  %v1293 = vpop.f32.mrb[0].mxu0
  %v1294 = vpop.f32.mrb[0].mxu0
  %v1295 = vadd.f32 %v869, %v1294
  %v1296 = vpop.f32.mrb[0].mxu0
  %1297 = vmatprep.mubr.bf16.mxu0 0
  %1298 = vmatmul.mubr.bf16.gmra.mrb[0].mxu0 %v991
  %v1299 = vpop.f32.mrb[0].mxu0
  %v1300 = vadd.f32 %v874, %v1299
  %v1301 = vpop.f32.mrb[0].mxu0
  %v1302 = vpop.f32.mrb[0].mxu0
  %v1303 = vadd.f32 %v877, %v1302
  %v1304 = vpop.f32.mrb[0].mxu0
  %1305 = vmatprep.mubr.bf16.mxu0 0
  %1306 = vmatmul.mubr.bf16.gmra.mrb[0].mxu0 %v993
  %v1307 = vpop.f32.mrb[0].mxu0
  %v1308 = vadd.f32 %v882, %v1307
  %v1309 = vpop.f32.mrb[0].mxu0
  %v1310 = vpop.f32.mrb[0].mxu0
  %v1311 = vadd.f32 %v885, %v1310
  %v1312 = vpop.f32.mrb[0].mxu0
  %1313 = vmatprep.mubr.bf16.mxu0 0
  %1314 = vmatmul.mubr.bf16.gmra.mrb[0].mxu0 %v995
  %v1315 = vpop.f32.mrb[0].mxu0
  %v1316 = vadd.f32 %v890, %v1315
  %v1317 = vpop.f32.mrb[0].mxu0
  %v1318 = vpop.f32.mrb[0].mxu0
  %v1319 = vadd.f32 %v893, %v1318
  %v1320 = vpop.f32.mrb[0].mxu0
  %1321 = vmatprep.mubr.bf16.mxu0 0
  %1322 = vmatmul.mubr.bf16.gmra.mrb[0].mxu0 %v997
  %v1323 = vpop.f32.mrb[0].mxu0
  %v1324 = vadd.f32 %v898, %v1323
  %v1325 = vpop.f32.mrb[0].mxu0
  %v1326 = vpop.f32.mrb[0].mxu0
  %v1327 = vadd.f32 %v901, %v1326
  %v1328 = vpop.f32.mrb[0].mxu0
  %1329 = vmatprep.mubr.bf16.mxu0 0
  %1330 = vmatmul.mubr.bf16.gmra.mrb[0].mxu0 %v999
  %v1331 = vpop.f32.mrb[0].mxu0
  %v1332 = vadd.f32 %v906, %v1331
  %v1333 = vpop.f32.mrb[0].mxu0
  %v1334 = vpop.f32.mrb[0].mxu0
  %v1335 = vadd.f32 %v909, %v1334
  %v1336 = vpop.f32.mrb[0].mxu0
  %1337 = vmatprep.mubr.bf16.mxu0 0
  %1338 = vmatmul.mubr.bf16.gmra.mrb[0].mxu0 %v1001
  %v1339 = vpop.f32.mrb[0].mxu0
  %v1340 = vadd.f32 %v914, %v1339
  %v1341 = vpop.f32.mrb[0].mxu0
  %v1342 = vpop.f32.mrb[0].mxu0
  %v1343 = vadd.f32 %v917, %v1342
  %v1344 = vpop.f32.mrb[0].mxu0
  %1345 = vmatprep.mubr.bf16.mxu0 0
  %1346 = vmatmul.mubr.bf16.gmra.mrb[0].mxu0 %v1004
  %v1347 = vpop.f32.mrb[0].mxu0
  %v1348 = vadd.f32 %v922, %v1347
  %v1349 = vpop.f32.mrb[0].mxu0
  %v1350 = vpop.f32.mrb[0].mxu0
  %v1351 = vpop.f32.mrb[0].mxu0
  %1352 = vdwg.mxu0
  %s1353 = scalar_lea.vmem %s1, 4
  %v1354 = vld [vmem:[%s1353] sm:$0x3]
  %vm1394 = vcmask 1046528
  %v1395 = vrot.slane %v106, 1
  %v1396 = vrot.slane %v107, 1
  %v1397 = vsel %vm1394, %v1395, %v1396
  %v1398 = vrot.slane %v108, 1
  %v1399 = vsel %vm1394, %v1396, %v1398
  %v1400 = vrot.slane %v109, 1
  %v1401 = vsel %vm1394, %v1398, %v1400
  %v1402 = vrot.slane %v110, 1
  %v1403 = vsel %vm1394, %v1400, %v1402
  %v1404 = vrot.slane %v111, 1
  %v1405 = vsel %vm1394, %v1402, %v1404
  %v1406 = vrot.slane %v112, 1
  %v1407 = vsel %vm1394, %v1404, %v1406
  %v1408 = vrot.slane %v113, 1
  %v1409 = vsel %vm1394, %v1406, %v1408
  %v1410 = vrot.slane %v114, 1
  %v1411 = vsel %vm1394, %v1408, %v1410
  %v1412 = vrot.slane %v115, 1
  %v1413 = vsel %vm1394, %v1410, %v1412
  %v1414 = vrot.slane %v116, 1
  %v1415 = vsel %vm1394, %v1412, %v1414
  %v1416 = vrot.slane %v117, 1
  %v1417 = vsel %vm1394, %v1414, %v1416
  %v1418 = vrot.slane %v118, 1
  %v1419 = vsel %vm1394, %v1416, %v1418
  %v1420 = vrot.slane %v119, 1
  %v1421 = vsel %vm1394, %v1418, %v1420
  %v1422 = vrot.slane %v120, 1
  %v1423 = vsel %vm1394, %v1420, %v1422
  %v1424 = vrot.slane %v121, 1
  %v1425 = vsel %vm1394, %v1422, %v1424
  %v1426 = vrot.slane %v122, 1
  %v1427 = vsel %vm1394, %v1424, %v1426
  %v1428 = vrot.slane %v123, 1
  %v1429 = vsel %vm1394, %v1426, %v1428
  %v1430 = vrot.slane %v124, 1
  %v1431 = vsel %vm1394, %v1428, %v1430
  %v1432 = vrot.slane %v125, 1
  %v1433 = vsel %vm1394, %v1430, %v1432
  %v1434 = vrot.slane %v126, 1
  %v1435 = vsel %vm1394, %v1432, %v1434
  %v1436 = vrot.slane %v127, 1
  %v1437 = vsel %vm1394, %v1434, %v1436
  %v1438 = vrot.slane %v128, 1
  %v1439 = vsel %vm1394, %v1436, %v1438
  %v1440 = vrot.slane %v129, 1
  %v1441 = vsel %vm1394, %v1438, %v1440
  %v1442 = vrot.slane %v130, 1
  %v1443 = vsel %vm1394, %v1440, %v1442
  %v1444 = vrot.slane %v131, 1
  %v1445 = vsel %vm1394, %v1442, %v1444
  %v1446 = vrot.slane %v132, 1
  %v1447 = vsel %vm1394, %v1444, %v1446
  %v1448 = vrot.slane %v133, 1
  %v1449 = vsel %vm1394, %v1446, %v1448
  %v1450 = vrot.slane %v134, 1
  %v1451 = vsel %vm1394, %v1448, %v1450
  %v1452 = vrot.slane %v135, 1
  %v1453 = vsel %vm1394, %v1450, %v1452
  %v1454 = vrot.slane %v136, 1
  %v1455 = vsel %vm1394, %v1452, %v1454
  %v1456 = vrot.slane %v137, 1
  %v1457 = vsel %vm1394, %v1454, %v1456
  %v1458 = vrot.slane %v138, 1
  %v1459 = vsel %vm1394, %v1456, %v1458
  %v1460 = vrot.slane %v139, 1
  %v1461 = vsel %vm1394, %v1458, %v1460
  %v1462 = vrot.slane %v140, 1
  %v1463 = vsel %vm1394, %v1460, %v1462
  %v1464 = vrot.slane %v141, 1
  %v1465 = vsel %vm1394, %v1462, %v1464
  %v1466 = vrot.slane %v142, 1
  %v1467 = vsel %vm1394, %v1464, %v1466
  %v1468 = vrot.slane %v143, 1
  %v1469 = vsel %vm1394, %v1466, %v1468
  %v1470 = vrot.slane %v146, 1
  %v1471 = vsel %vm1394, %v1468, %v1470
  %v1473 = vsel %vm461, %v1397, 0
  %v1476 = vsel %vm461, %v1399, 0
  %v1479 = vsel %vm461, %v1401, 0
  %v1482 = vsel %vm461, %v1403, 0
  %v1485 = vsel %vm461, %v1405, 0
  %v1488 = vsel %vm461, %v1407, 0
  %v1491 = vsel %vm461, %v1409, 0
  %v1494 = vsel %vm461, %v1411, 0
  %v1497 = vsel %vm461, %v1413, 0
  %v1500 = vsel %vm461, %v1415, 0
  %v1503 = vsel %vm461, %v1417, 0
  %v1506 = vsel %vm461, %v1419, 0
  %v1509 = vsel %vm461, %v1421, 0
  %v1512 = vsel %vm461, %v1423, 0
  %v1515 = vsel %vm461, %v1425, 0
  %v1518 = vsel %vm461, %v1427, 0
  %v1521 = vsel %vm461, %v1429, 0
  %v1524 = vsel %vm461, %v1431, 0
  %v1527 = vsel %vm461, %v1433, 0
  %v1530 = vsel %vm461, %v1435, 0
  %v1533 = vsel %vm461, %v1437, 0
  %v1536 = vsel %vm461, %v1439, 0
  %v1539 = vsel %vm461, %v1441, 0
  %v1542 = vsel %vm461, %v1443, 0
  %v1545 = vsel %vm461, %v1445, 0
  %v1548 = vsel %vm461, %v1447, 0
  %v1551 = vsel %vm461, %v1449, 0
  %v1554 = vsel %vm461, %v1451, 0
  %v1557 = vsel %vm461, %v1453, 0
  %v1560 = vsel %vm461, %v1455, 0
  %v1563 = vsel %vm461, %v1457, 0
  %v1566 = vsel %vm461, %v1459, 0
  %v1569 = vsel %vm461, %v1461, 0
  %v1572 = vsel %vm461, %v1463, 0
  %v1575 = vsel %vm461, %v1465, 0
  %v1578 = vsel %vm461, %v1467, 0
  %v1581 = vsel %vm461, %v1469, 0
  %v1584 = vsel %vm461, %v1471, 0
  %v1587 = vsel %vm461, %v1470, 0
  %v1590 = vsel %vm579, %v1354, 0
  %1592 = vmatprep.subr.bf16.mxu0 0
  %1593 = vmatpush1.bf16.msra.mxu0 %v1590
  %1594 = vmatprep.subr.bf16.mxu0 0
  %1595 = vmatpush1.bf16.msra.mxu0 0
  %1596 = vmatprep.subr.bf16.mxu0 0
  %1597 = vmatpush1.bf16.msra.mxu0 0
  %1598 = vmatprep.subr.bf16.mxu0 0
  %1599 = vmatpush1.bf16.msra.mxu0 0
  %1600 = vmatprep.subr.bf16.mxu0 0
  %1601 = vmatpush1.bf16.msra.mxu0 0
  %1602 = vmatprep.subr.bf16.mxu0 0
  %1603 = vmatpush1.bf16.msra.mxu0 0
  %1604 = vmatprep.subr.bf16.mxu0 0
  %1605 = vmatpush1.bf16.msra.mxu0 0
  %1606 = vmatprep.subr.bf16.mxu0 0
  %1607 = vmatpush1.bf16.msra.mxu0 0
  %1608 = vmatprep.subr.bf16.mxu0 0
  %1609 = vmatpush1.bf16.msra.mxu0 0
  %1610 = vmatprep.subr.bf16.mxu0 0
  %1611 = vmatpush1.bf16.msra.mxu0 0
  %1612 = vmatprep.subr.bf16.mxu0 0
  %1613 = vmatpush1.bf16.msra.mxu0 0
  %1614 = vmatprep.subr.bf16.mxu0 0
  %1615 = vmatpush1.bf16.msra.mxu0 0
  %1616 = vmatprep.subr.bf16.mxu0 0
  %1617 = vmatpush1.bf16.msra.mxu0 0
  %1618 = vmatprep.subr.bf16.mxu0 0
  %1619 = vmatpush1.bf16.msra.mxu0 0
  %1620 = vmatprep.subr.bf16.mxu0 0
  %1621 = vmatpush1.bf16.msra.mxu0 0
  %1622 = vmatprep.subr.bf16.mxu0 0
  %1623 = vmatpush1.bf16.msra.mxu0 0
  %1624 = vmatprep.mubr.bf16.mxu0 0
  %1625 = vmatmul.mubr.bf16.gmra.mrb[0].mxu0 %v1473
  %v1626 = vpop.f32.mrb[0].mxu0
  %v1627 = vadd.f32 0.0, %v1626
  %v1628 = vpop.f32.mrb[0].mxu0
  %v1629 = vpop.f32.mrb[0].mxu0
  %v1630 = vadd.f32 0.0, %v1629
  %v1631 = vpop.f32.mrb[0].mxu0
  %1632 = vmatprep.mubr.bf16.mxu0 0
  %1633 = vmatmul.mubr.bf16.gmra.mrb[0].mxu0 %v1476
  %v1634 = vpop.f32.mrb[0].mxu0
  %v1635 = vadd.f32 0.0, %v1634
  %v1636 = vpop.f32.mrb[0].mxu0
  %v1637 = vpop.f32.mrb[0].mxu0
  %v1638 = vadd.f32 0.0, %v1637
  %v1639 = vpop.f32.mrb[0].mxu0
  %1640 = vmatprep.mubr.bf16.mxu0 0
  %1641 = vmatmul.mubr.bf16.gmra.mrb[0].mxu0 %v1479
  %v1642 = vpop.f32.mrb[0].mxu0
  %v1643 = vadd.f32 0.0, %v1642
  %v1644 = vpop.f32.mrb[0].mxu0
  %v1645 = vpop.f32.mrb[0].mxu0
  %v1646 = vadd.f32 0.0, %v1645
  %v1647 = vpop.f32.mrb[0].mxu0
  %1648 = vmatprep.mubr.bf16.mxu0 0
  %1649 = vmatmul.mubr.bf16.gmra.mrb[0].mxu0 %v1482
  %v1650 = vpop.f32.mrb[0].mxu0
  %v1651 = vadd.f32 0.0, %v1650
  %v1652 = vpop.f32.mrb[0].mxu0
  %v1653 = vpop.f32.mrb[0].mxu0
  %v1654 = vadd.f32 0.0, %v1653
  %v1655 = vpop.f32.mrb[0].mxu0
  %1656 = vmatprep.mubr.bf16.mxu0 0
  %1657 = vmatmul.mubr.bf16.gmra.mrb[0].mxu0 %v1485
  %v1658 = vpop.f32.mrb[0].mxu0
  %v1659 = vadd.f32 0.0, %v1658
  %v1660 = vpop.f32.mrb[0].mxu0
  %v1661 = vpop.f32.mrb[0].mxu0
  %v1662 = vadd.f32 0.0, %v1661
  %v1663 = vpop.f32.mrb[0].mxu0
  %1664 = vmatprep.mubr.bf16.mxu0 0
  %1665 = vmatmul.mubr.bf16.gmra.mrb[0].mxu0 %v1488
  %v1666 = vpop.f32.mrb[0].mxu0
  %v1667 = vadd.f32 0.0, %v1666
  %v1668 = vpop.f32.mrb[0].mxu0
  %v1669 = vpop.f32.mrb[0].mxu0
  %v1670 = vadd.f32 0.0, %v1669
  %v1671 = vpop.f32.mrb[0].mxu0
  %1672 = vmatprep.mubr.bf16.mxu0 0
  %1673 = vmatmul.mubr.bf16.gmra.mrb[0].mxu0 %v1491
  %v1674 = vpop.f32.mrb[0].mxu0
  %v1675 = vadd.f32 0.0, %v1674
  %v1676 = vpop.f32.mrb[0].mxu0
  %v1677 = vpop.f32.mrb[0].mxu0
  %v1678 = vadd.f32 0.0, %v1677
  %v1679 = vpop.f32.mrb[0].mxu0
  %1680 = vmatprep.mubr.bf16.mxu0 0
  %1681 = vmatmul.mubr.bf16.gmra.mrb[0].mxu0 %v1494
  %v1682 = vpop.f32.mrb[0].mxu0
  %v1683 = vadd.f32 0.0, %v1682
  %v1684 = vpop.f32.mrb[0].mxu0
  %v1685 = vpop.f32.mrb[0].mxu0
  %v1686 = vadd.f32 0.0, %v1685
  %v1687 = vpop.f32.mrb[0].mxu0
  %1688 = vmatprep.mubr.bf16.mxu0 0
  %1689 = vmatmul.mubr.bf16.gmra.mrb[0].mxu0 %v1497
  %v1690 = vpop.f32.mrb[0].mxu0
  %v1691 = vadd.f32 0.0, %v1690
  %v1692 = vpop.f32.mrb[0].mxu0
  %v1693 = vpop.f32.mrb[0].mxu0
  %v1694 = vadd.f32 0.0, %v1693
  %v1695 = vpop.f32.mrb[0].mxu0
  %1696 = vmatprep.mubr.bf16.mxu0 0
  %1697 = vmatmul.mubr.bf16.gmra.mrb[0].mxu0 %v1500
  %v1698 = vpop.f32.mrb[0].mxu0
  %v1699 = vadd.f32 0.0, %v1698
  %v1700 = vpop.f32.mrb[0].mxu0
  %v1701 = vpop.f32.mrb[0].mxu0
  %v1702 = vadd.f32 0.0, %v1701
  %v1703 = vpop.f32.mrb[0].mxu0
  %1704 = vmatprep.mubr.bf16.mxu0 0
  %1705 = vmatmul.mubr.bf16.gmra.mrb[0].mxu0 %v1503
  %v1706 = vpop.f32.mrb[0].mxu0
  %v1707 = vadd.f32 0.0, %v1706
  %v1708 = vpop.f32.mrb[0].mxu0
  %v1709 = vpop.f32.mrb[0].mxu0
  %v1710 = vadd.f32 0.0, %v1709
  %v1711 = vpop.f32.mrb[0].mxu0
  %1712 = vmatprep.mubr.bf16.mxu0 0
  %1713 = vmatmul.mubr.bf16.gmra.mrb[0].mxu0 %v1506
  %v1714 = vpop.f32.mrb[0].mxu0
  %v1715 = vadd.f32 0.0, %v1714
  %v1716 = vpop.f32.mrb[0].mxu0
  %v1717 = vpop.f32.mrb[0].mxu0
  %v1718 = vadd.f32 0.0, %v1717
  %v1719 = vpop.f32.mrb[0].mxu0
  %1720 = vmatprep.mubr.bf16.mxu0 0
  %1721 = vmatmul.mubr.bf16.gmra.mrb[0].mxu0 %v1509
  %v1722 = vpop.f32.mrb[0].mxu0
  %v1723 = vadd.f32 0.0, %v1722
  %v1724 = vpop.f32.mrb[0].mxu0
  %v1725 = vpop.f32.mrb[0].mxu0
  %v1726 = vadd.f32 0.0, %v1725
  %v1727 = vpop.f32.mrb[0].mxu0
  %1728 = vmatprep.mubr.bf16.mxu0 0
  %1729 = vmatmul.mubr.bf16.gmra.mrb[0].mxu0 %v1512
  %v1730 = vpop.f32.mrb[0].mxu0
  %v1731 = vadd.f32 0.0, %v1730
  %v1732 = vpop.f32.mrb[0].mxu0
  %v1733 = vpop.f32.mrb[0].mxu0
  %v1734 = vadd.f32 0.0, %v1733
  %v1735 = vpop.f32.mrb[0].mxu0
  %1736 = vmatprep.mubr.bf16.mxu0 0
  %1737 = vmatmul.mubr.bf16.gmra.mrb[0].mxu0 %v1515
  %v1738 = vpop.f32.mrb[0].mxu0
  %v1739 = vadd.f32 0.0, %v1738
  %v1740 = vpop.f32.mrb[0].mxu0
  %v1741 = vpop.f32.mrb[0].mxu0
  %v1742 = vadd.f32 0.0, %v1741
  %v1743 = vpop.f32.mrb[0].mxu0
  %1744 = vmatprep.mubr.bf16.mxu0 0
  %1745 = vmatmul.mubr.bf16.gmra.mrb[0].mxu0 %v1518
  %v1746 = vpop.f32.mrb[0].mxu0
  %v1747 = vadd.f32 0.0, %v1746
  %v1748 = vpop.f32.mrb[0].mxu0
  %v1749 = vpop.f32.mrb[0].mxu0
  %v1750 = vadd.f32 0.0, %v1749
  %v1751 = vpop.f32.mrb[0].mxu0
  %1752 = vmatprep.mubr.bf16.mxu0 0
  %1753 = vmatmul.mubr.bf16.gmra.mrb[0].mxu0 %v1521
  %v1754 = vpop.f32.mrb[0].mxu0
  %v1755 = vadd.f32 0.0, %v1754
  %v1756 = vpop.f32.mrb[0].mxu0
  %v1757 = vpop.f32.mrb[0].mxu0
  %v1758 = vadd.f32 0.0, %v1757
  %v1759 = vpop.f32.mrb[0].mxu0
  %1760 = vmatprep.mubr.bf16.mxu0 0
  %1761 = vmatmul.mubr.bf16.gmra.mrb[0].mxu0 %v1524
  %v1762 = vpop.f32.mrb[0].mxu0
  %v1763 = vadd.f32 0.0, %v1762
  %v1764 = vpop.f32.mrb[0].mxu0
  %v1765 = vpop.f32.mrb[0].mxu0
  %v1766 = vadd.f32 0.0, %v1765
  %v1767 = vpop.f32.mrb[0].mxu0
  %1768 = vmatprep.mubr.bf16.mxu0 0
  %1769 = vmatmul.mubr.bf16.gmra.mrb[0].mxu0 %v1527
  %v1770 = vpop.f32.mrb[0].mxu0
  %v1771 = vadd.f32 0.0, %v1770
  %v1772 = vpop.f32.mrb[0].mxu0
  %v1773 = vpop.f32.mrb[0].mxu0
  %v1774 = vadd.f32 0.0, %v1773
  %v1775 = vpop.f32.mrb[0].mxu0
  %1776 = vmatprep.mubr.bf16.mxu0 0
  %1777 = vmatmul.mubr.bf16.gmra.mrb[0].mxu0 %v1530
  %v1778 = vpop.f32.mrb[0].mxu0
  %v1779 = vadd.f32 0.0, %v1778
  %v1780 = vpop.f32.mrb[0].mxu0
  %v1781 = vpop.f32.mrb[0].mxu0
  %v1782 = vadd.f32 0.0, %v1781
  %v1783 = vpop.f32.mrb[0].mxu0
  %1784 = vmatprep.mubr.bf16.mxu0 0
  %1785 = vmatmul.mubr.bf16.gmra.mrb[0].mxu0 %v1533
  %v1786 = vpop.f32.mrb[0].mxu0
  %v1787 = vadd.f32 0.0, %v1786
  %v1788 = vpop.f32.mrb[0].mxu0
  %v1789 = vpop.f32.mrb[0].mxu0
  %v1790 = vadd.f32 0.0, %v1789
  %v1791 = vpop.f32.mrb[0].mxu0
  %1792 = vmatprep.mubr.bf16.mxu0 0
  %1793 = vmatmul.mubr.bf16.gmra.mrb[0].mxu0 %v1536
  %v1794 = vpop.f32.mrb[0].mxu0
  %v1795 = vadd.f32 0.0, %v1794
  %v1796 = vpop.f32.mrb[0].mxu0
  %v1797 = vpop.f32.mrb[0].mxu0
  %v1798 = vadd.f32 0.0, %v1797
  %v1799 = vpop.f32.mrb[0].mxu0
  %1800 = vmatprep.mubr.bf16.mxu0 0
  %1801 = vmatmul.mubr.bf16.gmra.mrb[0].mxu0 %v1539
  %v1802 = vpop.f32.mrb[0].mxu0
  %v1803 = vadd.f32 0.0, %v1802
  %v1804 = vpop.f32.mrb[0].mxu0
  %v1805 = vpop.f32.mrb[0].mxu0
  %v1806 = vadd.f32 0.0, %v1805
  %v1807 = vpop.f32.mrb[0].mxu0
  %1808 = vmatprep.mubr.bf16.mxu0 0
  %1809 = vmatmul.mubr.bf16.gmra.mrb[0].mxu0 %v1542
  %v1810 = vpop.f32.mrb[0].mxu0
  %v1811 = vadd.f32 0.0, %v1810
  %v1812 = vpop.f32.mrb[0].mxu0
  %v1813 = vpop.f32.mrb[0].mxu0
  %v1814 = vadd.f32 0.0, %v1813
  %v1815 = vpop.f32.mrb[0].mxu0
  %1816 = vmatprep.mubr.bf16.mxu0 0
  %1817 = vmatmul.mubr.bf16.gmra.mrb[0].mxu0 %v1545
  %v1818 = vpop.f32.mrb[0].mxu0
  %v1819 = vadd.f32 0.0, %v1818
  %v1820 = vpop.f32.mrb[0].mxu0
  %v1821 = vpop.f32.mrb[0].mxu0
  %v1822 = vadd.f32 0.0, %v1821
  %v1823 = vpop.f32.mrb[0].mxu0
  %1824 = vmatprep.mubr.bf16.mxu0 0
  %1825 = vmatmul.mubr.bf16.gmra.mrb[0].mxu0 %v1548
  %v1826 = vpop.f32.mrb[0].mxu0
  %v1827 = vadd.f32 0.0, %v1826
  %v1828 = vpop.f32.mrb[0].mxu0
  %v1829 = vpop.f32.mrb[0].mxu0
  %v1830 = vadd.f32 0.0, %v1829
  %v1831 = vpop.f32.mrb[0].mxu0
  %1832 = vmatprep.mubr.bf16.mxu0 0
  %1833 = vmatmul.mubr.bf16.gmra.mrb[0].mxu0 %v1551
  %v1834 = vpop.f32.mrb[0].mxu0
  %v1835 = vadd.f32 0.0, %v1834
  %v1836 = vpop.f32.mrb[0].mxu0
  %v1837 = vpop.f32.mrb[0].mxu0
  %v1838 = vadd.f32 0.0, %v1837
  %v1839 = vpop.f32.mrb[0].mxu0
  %1840 = vmatprep.mubr.bf16.mxu0 0
  %1841 = vmatmul.mubr.bf16.gmra.mrb[0].mxu0 %v1554
  %v1842 = vpop.f32.mrb[0].mxu0
  %v1843 = vadd.f32 0.0, %v1842
  %v1844 = vpop.f32.mrb[0].mxu0
  %v1845 = vpop.f32.mrb[0].mxu0
  %v1846 = vadd.f32 0.0, %v1845
  %v1847 = vpop.f32.mrb[0].mxu0
  %1848 = vmatprep.mubr.bf16.mxu0 0
  %1849 = vmatmul.mubr.bf16.gmra.mrb[0].mxu0 %v1557
  %v1850 = vpop.f32.mrb[0].mxu0
  %v1851 = vadd.f32 0.0, %v1850
  %v1852 = vpop.f32.mrb[0].mxu0
  %v1853 = vpop.f32.mrb[0].mxu0
  %v1854 = vadd.f32 0.0, %v1853
  %v1855 = vpop.f32.mrb[0].mxu0
  %1856 = vmatprep.mubr.bf16.mxu0 0
  %1857 = vmatmul.mubr.bf16.gmra.mrb[0].mxu0 %v1560
  %v1858 = vpop.f32.mrb[0].mxu0
  %v1859 = vadd.f32 0.0, %v1858
  %v1860 = vpop.f32.mrb[0].mxu0
  %v1861 = vpop.f32.mrb[0].mxu0
  %v1862 = vadd.f32 0.0, %v1861
  %v1863 = vpop.f32.mrb[0].mxu0
  %1864 = vmatprep.mubr.bf16.mxu0 0
  %1865 = vmatmul.mubr.bf16.gmra.mrb[0].mxu0 %v1563
  %v1866 = vpop.f32.mrb[0].mxu0
  %v1867 = vadd.f32 0.0, %v1866
  %v1868 = vpop.f32.mrb[0].mxu0
  %v1869 = vpop.f32.mrb[0].mxu0
  %v1870 = vadd.f32 0.0, %v1869
  %v1871 = vpop.f32.mrb[0].mxu0
  %1872 = vmatprep.mubr.bf16.mxu0 0
  %1873 = vmatmul.mubr.bf16.gmra.mrb[0].mxu0 %v1566
  %v1874 = vpop.f32.mrb[0].mxu0
  %v1875 = vadd.f32 0.0, %v1874
  %v1876 = vpop.f32.mrb[0].mxu0
  %v1877 = vpop.f32.mrb[0].mxu0
  %v1878 = vadd.f32 0.0, %v1877
  %v1879 = vpop.f32.mrb[0].mxu0
  %1880 = vmatprep.mubr.bf16.mxu0 0
  %1881 = vmatmul.mubr.bf16.gmra.mrb[0].mxu0 %v1569
  %v1882 = vpop.f32.mrb[0].mxu0
  %v1883 = vadd.f32 0.0, %v1882
  %v1884 = vpop.f32.mrb[0].mxu0
  %v1885 = vpop.f32.mrb[0].mxu0
  %v1886 = vadd.f32 0.0, %v1885
  %v1887 = vpop.f32.mrb[0].mxu0
  %1888 = vmatprep.mubr.bf16.mxu0 0
  %1889 = vmatmul.mubr.bf16.gmra.mrb[0].mxu0 %v1572
  %v1890 = vpop.f32.mrb[0].mxu0
  %v1891 = vadd.f32 0.0, %v1890
  %v1892 = vpop.f32.mrb[0].mxu0
  %v1893 = vpop.f32.mrb[0].mxu0
  %v1894 = vadd.f32 0.0, %v1893
  %v1895 = vpop.f32.mrb[0].mxu0
  %1896 = vmatprep.mubr.bf16.mxu0 0
  %1897 = vmatmul.mubr.bf16.gmra.mrb[0].mxu0 %v1575
  %v1898 = vpop.f32.mrb[0].mxu0
  %v1899 = vadd.f32 0.0, %v1898
  %v1900 = vpop.f32.mrb[0].mxu0
  %v1901 = vpop.f32.mrb[0].mxu0
  %v1902 = vadd.f32 0.0, %v1901
  %v1903 = vpop.f32.mrb[0].mxu0
  %1904 = vmatprep.mubr.bf16.mxu0 0
  %1905 = vmatmul.mubr.bf16.gmra.mrb[0].mxu0 %v1578
  %v1906 = vpop.f32.mrb[0].mxu0
  %v1907 = vadd.f32 0.0, %v1906
  %v1908 = vpop.f32.mrb[0].mxu0
  %v1909 = vpop.f32.mrb[0].mxu0
  %v1910 = vadd.f32 0.0, %v1909
  %v1911 = vpop.f32.mrb[0].mxu0
  %1912 = vmatprep.mubr.bf16.mxu0 0
  %1913 = vmatmul.mubr.bf16.gmra.mrb[0].mxu0 %v1581
  %v1914 = vpop.f32.mrb[0].mxu0
  %v1915 = vadd.f32 0.0, %v1914
  %v1916 = vpop.f32.mrb[0].mxu0
  %v1917 = vpop.f32.mrb[0].mxu0
  %v1918 = vadd.f32 0.0, %v1917
  %v1919 = vpop.f32.mrb[0].mxu0
  %1920 = vmatprep.mubr.bf16.mxu0 0
  %1921 = vmatmul.mubr.bf16.gmra.mrb[0].mxu0 %v1584
  %v1922 = vpop.f32.mrb[0].mxu0
  %v1923 = vadd.f32 0.0, %v1922
  %v1924 = vpop.f32.mrb[0].mxu0
  %v1925 = vpop.f32.mrb[0].mxu0
  %v1926 = vadd.f32 0.0, %v1925
  %v1927 = vpop.f32.mrb[0].mxu0
  %1928 = vmatprep.mubr.bf16.mxu0 0
  %1929 = vmatmul.mubr.bf16.gmra.mrb[0].mxu0 %v1587
  %v1930 = vpop.f32.mrb[0].mxu0
  %v1931 = vadd.f32 0.0, %v1930
  %v1932 = vpop.f32.mrb[0].mxu0
  %v1933 = vpop.f32.mrb[0].mxu0
  %v1934 = vpop.f32.mrb[0].mxu0
  %1935 = vdwg.mxu0
  %v1936 = vadd.f32 %v1044, %v1627
  %v1937 = vadd.f32 %v1047, %v1630
  %v1938 = vadd.f32 %v1052, %v1635
  %v1939 = vadd.f32 %v1055, %v1638
  %v1940 = vadd.f32 %v1060, %v1643
  %v1941 = vadd.f32 %v1063, %v1646
  %v1942 = vadd.f32 %v1068, %v1651
  %v1943 = vadd.f32 %v1071, %v1654
  %v1944 = vadd.f32 %v1076, %v1659
  %v1945 = vadd.f32 %v1079, %v1662
  %v1946 = vadd.f32 %v1084, %v1667
  %v1947 = vadd.f32 %v1087, %v1670
  %v1948 = vadd.f32 %v1092, %v1675
  %v1949 = vadd.f32 %v1095, %v1678
  %v1950 = vadd.f32 %v1100, %v1683
  %v1951 = vadd.f32 %v1103, %v1686
  %v1952 = vadd.f32 %v1108, %v1691
  %v1953 = vadd.f32 %v1111, %v1694
  %v1954 = vadd.f32 %v1116, %v1699
  %v1955 = vadd.f32 %v1119, %v1702
  %v1956 = vadd.f32 %v1124, %v1707
  %v1957 = vadd.f32 %v1127, %v1710
  %v1958 = vadd.f32 %v1132, %v1715
  %v1959 = vadd.f32 %v1135, %v1718
  %v1960 = vadd.f32 %v1140, %v1723
  %v1961 = vadd.f32 %v1143, %v1726
  %v1962 = vadd.f32 %v1148, %v1731
  %v1963 = vadd.f32 %v1151, %v1734
  %v1964 = vadd.f32 %v1156, %v1739
  %v1965 = vadd.f32 %v1159, %v1742
  %v1966 = vadd.f32 %v1164, %v1747
  %v1967 = vadd.f32 %v1167, %v1750
  %v1968 = vadd.f32 %v1172, %v1755
  %v1969 = vadd.f32 %v1175, %v1758
  %v1970 = vadd.f32 %v1180, %v1763
  %v1971 = vadd.f32 %v1183, %v1766
  %v1972 = vadd.f32 %v1188, %v1771
  %v1973 = vadd.f32 %v1191, %v1774
  %v1974 = vadd.f32 %v1196, %v1779
  %v1975 = vadd.f32 %v1199, %v1782
  %v1976 = vadd.f32 %v1204, %v1787
  %v1977 = vadd.f32 %v1207, %v1790
  %v1978 = vadd.f32 %v1212, %v1795
  %v1979 = vadd.f32 %v1215, %v1798
  %v1980 = vadd.f32 %v1220, %v1803
  %v1981 = vadd.f32 %v1223, %v1806
  %v1982 = vadd.f32 %v1228, %v1811
  %v1983 = vadd.f32 %v1231, %v1814
  %v1984 = vadd.f32 %v1236, %v1819
  %v1985 = vadd.f32 %v1239, %v1822
  %v1986 = vadd.f32 %v1244, %v1827
  %v1987 = vadd.f32 %v1247, %v1830
  %v1988 = vadd.f32 %v1252, %v1835
  %v1989 = vadd.f32 %v1255, %v1838
  %v1990 = vadd.f32 %v1260, %v1843
  %v1991 = vadd.f32 %v1263, %v1846
  %v1992 = vadd.f32 %v1268, %v1851
  %v1993 = vadd.f32 %v1271, %v1854
  %v1994 = vadd.f32 %v1276, %v1859
  %v1995 = vadd.f32 %v1279, %v1862
  %v1996 = vadd.f32 %v1284, %v1867
  %v1997 = vadd.f32 %v1287, %v1870
  %v1998 = vadd.f32 %v1292, %v1875
  %v1999 = vadd.f32 %v1295, %v1878
  %v2000 = vadd.f32 %v1300, %v1883
  %v2001 = vadd.f32 %v1303, %v1886
  %v2002 = vadd.f32 %v1308, %v1891
  %v2003 = vadd.f32 %v1311, %v1894
  %v2004 = vadd.f32 %v1316, %v1899
  %v2005 = vadd.f32 %v1319, %v1902
  %v2006 = vadd.f32 %v1324, %v1907
  %v2007 = vadd.f32 %v1327, %v1910
  %v2008 = vadd.f32 %v1332, %v1915
  %v2009 = vadd.f32 %v1335, %v1918
  %v2010 = vadd.f32 %v1340, %v1923
  %v2011 = vadd.f32 %v1343, %v1926
  %v2012 = vadd.f32 %v1348, %v1931
  %v2013 = vpack.c.bf16 %v103, %v102
  %s2014 = scalar_lea.vmem %s1, 6
  %v2015 = vld [vmem:[%s2014] sm:$0x3]
  %v2017 = vrot.slane %v2013, 1
  %v2018 = vsel %vm1394, %v1470, %v2017
  %v2020 = vsel %vm461, %v2018, 0
  %v2023 = vsel %vm461, %v2017, 0
  %v2026 = vsel %vm579, %v2015, 0
  %2028 = vmatprep.subr.bf16.mxu0 0
  %2029 = vmatpush1.bf16.msra.mxu0 %v2026
  %2030 = vmatprep.subr.bf16.mxu0 0
  %2031 = vmatpush1.bf16.msra.mxu0 0
  %2032 = vmatprep.subr.bf16.mxu0 0
  %2033 = vmatpush1.bf16.msra.mxu0 0
  %2034 = vmatprep.subr.bf16.mxu0 0
  %2035 = vmatpush1.bf16.msra.mxu0 0
  %2036 = vmatprep.subr.bf16.mxu0 0
  %2037 = vmatpush1.bf16.msra.mxu0 0
  %2038 = vmatprep.subr.bf16.mxu0 0
  %2039 = vmatpush1.bf16.msra.mxu0 0
  %2040 = vmatprep.subr.bf16.mxu0 0
  %2041 = vmatpush1.bf16.msra.mxu0 0
  %2042 = vmatprep.subr.bf16.mxu0 0
  %2043 = vmatpush1.bf16.msra.mxu0 0
  %2044 = vmatprep.subr.bf16.mxu0 0
  %2045 = vmatpush1.bf16.msra.mxu0 0
  %2046 = vmatprep.subr.bf16.mxu0 0
  %2047 = vmatpush1.bf16.msra.mxu0 0
  %2048 = vmatprep.subr.bf16.mxu0 0
  %2049 = vmatpush1.bf16.msra.mxu0 0
  %2050 = vmatprep.subr.bf16.mxu0 0
  %2051 = vmatpush1.bf16.msra.mxu0 0
  %2052 = vmatprep.subr.bf16.mxu0 0
  %2053 = vmatpush1.bf16.msra.mxu0 0
  %2054 = vmatprep.subr.bf16.mxu0 0
  %2055 = vmatpush1.bf16.msra.mxu0 0
  %2056 = vmatprep.subr.bf16.mxu0 0
  %2057 = vmatpush1.bf16.msra.mxu0 0
  %2058 = vmatprep.subr.bf16.mxu0 0
  %2059 = vmatpush1.bf16.msra.mxu0 0
  %2060 = vmatprep.mubr.bf16.mxu0 0
  %2061 = vmatmul.mubr.bf16.gmra.mrb[0].mxu0 %v1476
  %v2062 = vpop.f32.mrb[0].mxu0
  %v2063 = vadd.f32 0.0, %v2062
  %v2064 = vpop.f32.mrb[0].mxu0
  %v2065 = vpop.f32.mrb[0].mxu0
  %v2066 = vadd.f32 0.0, %v2065
  %v2067 = vpop.f32.mrb[0].mxu0
  %2068 = vmatprep.mubr.bf16.mxu0 0
  %2069 = vmatmul.mubr.bf16.gmra.mrb[0].mxu0 %v1479
  %v2070 = vpop.f32.mrb[0].mxu0
  %v2071 = vadd.f32 0.0, %v2070
  %v2072 = vpop.f32.mrb[0].mxu0
  %v2073 = vpop.f32.mrb[0].mxu0
  %v2074 = vadd.f32 0.0, %v2073
  %v2075 = vpop.f32.mrb[0].mxu0
  %2076 = vmatprep.mubr.bf16.mxu0 0
  %2077 = vmatmul.mubr.bf16.gmra.mrb[0].mxu0 %v1482
  %v2078 = vpop.f32.mrb[0].mxu0
  %v2079 = vadd.f32 0.0, %v2078
  %v2080 = vpop.f32.mrb[0].mxu0
  %v2081 = vpop.f32.mrb[0].mxu0
  %v2082 = vadd.f32 0.0, %v2081
  %v2083 = vpop.f32.mrb[0].mxu0
  %2084 = vmatprep.mubr.bf16.mxu0 0
  %2085 = vmatmul.mubr.bf16.gmra.mrb[0].mxu0 %v1485
  %v2086 = vpop.f32.mrb[0].mxu0
  %v2087 = vadd.f32 0.0, %v2086
  %v2088 = vpop.f32.mrb[0].mxu0
  %v2089 = vpop.f32.mrb[0].mxu0
  %v2090 = vadd.f32 0.0, %v2089
  %v2091 = vpop.f32.mrb[0].mxu0
  %2092 = vmatprep.mubr.bf16.mxu0 0
  %2093 = vmatmul.mubr.bf16.gmra.mrb[0].mxu0 %v1488
  %v2094 = vpop.f32.mrb[0].mxu0
  %v2095 = vadd.f32 0.0, %v2094
  %v2096 = vpop.f32.mrb[0].mxu0
  %v2097 = vpop.f32.mrb[0].mxu0
  %v2098 = vadd.f32 0.0, %v2097
  %v2099 = vpop.f32.mrb[0].mxu0
  %2100 = vmatprep.mubr.bf16.mxu0 0
  %2101 = vmatmul.mubr.bf16.gmra.mrb[0].mxu0 %v1491
  %v2102 = vpop.f32.mrb[0].mxu0
  %v2103 = vadd.f32 0.0, %v2102
  %v2104 = vpop.f32.mrb[0].mxu0
  %v2105 = vpop.f32.mrb[0].mxu0
  %v2106 = vadd.f32 0.0, %v2105
  %v2107 = vpop.f32.mrb[0].mxu0
  %2108 = vmatprep.mubr.bf16.mxu0 0
  %2109 = vmatmul.mubr.bf16.gmra.mrb[0].mxu0 %v1494
  %v2110 = vpop.f32.mrb[0].mxu0
  %v2111 = vadd.f32 0.0, %v2110
  %v2112 = vpop.f32.mrb[0].mxu0
  %v2113 = vpop.f32.mrb[0].mxu0
  %v2114 = vadd.f32 0.0, %v2113
  %v2115 = vpop.f32.mrb[0].mxu0
  %2116 = vmatprep.mubr.bf16.mxu0 0
  %2117 = vmatmul.mubr.bf16.gmra.mrb[0].mxu0 %v1497
  %v2118 = vpop.f32.mrb[0].mxu0
  %v2119 = vadd.f32 0.0, %v2118
  %v2120 = vpop.f32.mrb[0].mxu0
  %v2121 = vpop.f32.mrb[0].mxu0
  %v2122 = vadd.f32 0.0, %v2121
  %v2123 = vpop.f32.mrb[0].mxu0
  %2124 = vmatprep.mubr.bf16.mxu0 0
  %2125 = vmatmul.mubr.bf16.gmra.mrb[0].mxu0 %v1500
  %v2126 = vpop.f32.mrb[0].mxu0
  %v2127 = vadd.f32 0.0, %v2126
  %v2128 = vpop.f32.mrb[0].mxu0
  %v2129 = vpop.f32.mrb[0].mxu0
  %v2130 = vadd.f32 0.0, %v2129
  %v2131 = vpop.f32.mrb[0].mxu0
  %2132 = vmatprep.mubr.bf16.mxu0 0
  %2133 = vmatmul.mubr.bf16.gmra.mrb[0].mxu0 %v1503
  %v2134 = vpop.f32.mrb[0].mxu0
  %v2135 = vadd.f32 0.0, %v2134
  %v2136 = vpop.f32.mrb[0].mxu0
  %v2137 = vpop.f32.mrb[0].mxu0
  %v2138 = vadd.f32 0.0, %v2137
  %v2139 = vpop.f32.mrb[0].mxu0
  %2140 = vmatprep.mubr.bf16.mxu0 0
  %2141 = vmatmul.mubr.bf16.gmra.mrb[0].mxu0 %v1506
  %v2142 = vpop.f32.mrb[0].mxu0
  %v2143 = vadd.f32 0.0, %v2142
  %v2144 = vpop.f32.mrb[0].mxu0
  %v2145 = vpop.f32.mrb[0].mxu0
  %v2146 = vadd.f32 0.0, %v2145
  %v2147 = vpop.f32.mrb[0].mxu0
  %2148 = vmatprep.mubr.bf16.mxu0 0
  %2149 = vmatmul.mubr.bf16.gmra.mrb[0].mxu0 %v1509
  %v2150 = vpop.f32.mrb[0].mxu0
  %v2151 = vadd.f32 0.0, %v2150
  %v2152 = vpop.f32.mrb[0].mxu0
  %v2153 = vpop.f32.mrb[0].mxu0
  %v2154 = vadd.f32 0.0, %v2153
  %v2155 = vpop.f32.mrb[0].mxu0
  %2156 = vmatprep.mubr.bf16.mxu0 0
  %2157 = vmatmul.mubr.bf16.gmra.mrb[0].mxu0 %v1512
  %v2158 = vpop.f32.mrb[0].mxu0
  %v2159 = vadd.f32 0.0, %v2158
  %v2160 = vpop.f32.mrb[0].mxu0
  %v2161 = vpop.f32.mrb[0].mxu0
  %v2162 = vadd.f32 0.0, %v2161
  %v2163 = vpop.f32.mrb[0].mxu0
  %2164 = vmatprep.mubr.bf16.mxu0 0
  %2165 = vmatmul.mubr.bf16.gmra.mrb[0].mxu0 %v1515
  %v2166 = vpop.f32.mrb[0].mxu0
  %v2167 = vadd.f32 0.0, %v2166
  %v2168 = vpop.f32.mrb[0].mxu0
  %v2169 = vpop.f32.mrb[0].mxu0
  %v2170 = vadd.f32 0.0, %v2169
  %v2171 = vpop.f32.mrb[0].mxu0
  %2172 = vmatprep.mubr.bf16.mxu0 0
  %2173 = vmatmul.mubr.bf16.gmra.mrb[0].mxu0 %v1518
  %v2174 = vpop.f32.mrb[0].mxu0
  %v2175 = vadd.f32 0.0, %v2174
  %v2176 = vpop.f32.mrb[0].mxu0
  %v2177 = vpop.f32.mrb[0].mxu0
  %v2178 = vadd.f32 0.0, %v2177
  %v2179 = vpop.f32.mrb[0].mxu0
  %2180 = vmatprep.mubr.bf16.mxu0 0
  %2181 = vmatmul.mubr.bf16.gmra.mrb[0].mxu0 %v1521
  %v2182 = vpop.f32.mrb[0].mxu0
  %v2183 = vadd.f32 0.0, %v2182
  %v2184 = vpop.f32.mrb[0].mxu0
  %v2185 = vpop.f32.mrb[0].mxu0
  %v2186 = vadd.f32 0.0, %v2185
  %v2187 = vpop.f32.mrb[0].mxu0
  %2188 = vmatprep.mubr.bf16.mxu0 0
  %2189 = vmatmul.mubr.bf16.gmra.mrb[0].mxu0 %v1524
  %v2190 = vpop.f32.mrb[0].mxu0
  %v2191 = vadd.f32 0.0, %v2190
  %v2192 = vpop.f32.mrb[0].mxu0
  %v2193 = vpop.f32.mrb[0].mxu0
  %v2194 = vadd.f32 0.0, %v2193
  %v2195 = vpop.f32.mrb[0].mxu0
  %2196 = vmatprep.mubr.bf16.mxu0 0
  %2197 = vmatmul.mubr.bf16.gmra.mrb[0].mxu0 %v1527
  %v2198 = vpop.f32.mrb[0].mxu0
  %v2199 = vadd.f32 0.0, %v2198
  %v2200 = vpop.f32.mrb[0].mxu0
  %v2201 = vpop.f32.mrb[0].mxu0
  %v2202 = vadd.f32 0.0, %v2201
  %v2203 = vpop.f32.mrb[0].mxu0
  %2204 = vmatprep.mubr.bf16.mxu0 0
  %2205 = vmatmul.mubr.bf16.gmra.mrb[0].mxu0 %v1530
  %v2206 = vpop.f32.mrb[0].mxu0
  %v2207 = vadd.f32 0.0, %v2206
  %v2208 = vpop.f32.mrb[0].mxu0
  %v2209 = vpop.f32.mrb[0].mxu0
  %v2210 = vadd.f32 0.0, %v2209
  %v2211 = vpop.f32.mrb[0].mxu0
  %2212 = vmatprep.mubr.bf16.mxu0 0
  %2213 = vmatmul.mubr.bf16.gmra.mrb[0].mxu0 %v1533
  %v2214 = vpop.f32.mrb[0].mxu0
  %v2215 = vadd.f32 0.0, %v2214
  %v2216 = vpop.f32.mrb[0].mxu0
  %v2217 = vpop.f32.mrb[0].mxu0
  %v2218 = vadd.f32 0.0, %v2217
  %v2219 = vpop.f32.mrb[0].mxu0
  %2220 = vmatprep.mubr.bf16.mxu0 0
  %2221 = vmatmul.mubr.bf16.gmra.mrb[0].mxu0 %v1536
  %v2222 = vpop.f32.mrb[0].mxu0
  %v2223 = vadd.f32 0.0, %v2222
  %v2224 = vpop.f32.mrb[0].mxu0
  %v2225 = vpop.f32.mrb[0].mxu0
  %v2226 = vadd.f32 0.0, %v2225
  %v2227 = vpop.f32.mrb[0].mxu0
  %2228 = vmatprep.mubr.bf16.mxu0 0
  %2229 = vmatmul.mubr.bf16.gmra.mrb[0].mxu0 %v1539
  %v2230 = vpop.f32.mrb[0].mxu0
  %v2231 = vadd.f32 0.0, %v2230
  %v2232 = vpop.f32.mrb[0].mxu0
  %v2233 = vpop.f32.mrb[0].mxu0
  %v2234 = vadd.f32 0.0, %v2233
  %v2235 = vpop.f32.mrb[0].mxu0
  %2236 = vmatprep.mubr.bf16.mxu0 0
  %2237 = vmatmul.mubr.bf16.gmra.mrb[0].mxu0 %v1542
  %v2238 = vpop.f32.mrb[0].mxu0
  %v2239 = vadd.f32 0.0, %v2238
  %v2240 = vpop.f32.mrb[0].mxu0
  %v2241 = vpop.f32.mrb[0].mxu0
  %v2242 = vadd.f32 0.0, %v2241
  %v2243 = vpop.f32.mrb[0].mxu0
  %2244 = vmatprep.mubr.bf16.mxu0 0
  %2245 = vmatmul.mubr.bf16.gmra.mrb[0].mxu0 %v1545
  %v2246 = vpop.f32.mrb[0].mxu0
  %v2247 = vadd.f32 0.0, %v2246
  %v2248 = vpop.f32.mrb[0].mxu0
  %v2249 = vpop.f32.mrb[0].mxu0
  %v2250 = vadd.f32 0.0, %v2249
  %v2251 = vpop.f32.mrb[0].mxu0
  %2252 = vmatprep.mubr.bf16.mxu0 0
  %2253 = vmatmul.mubr.bf16.gmra.mrb[0].mxu0 %v1548
  %v2254 = vpop.f32.mrb[0].mxu0
  %v2255 = vadd.f32 0.0, %v2254
  %v2256 = vpop.f32.mrb[0].mxu0
  %v2257 = vpop.f32.mrb[0].mxu0
  %v2258 = vadd.f32 0.0, %v2257
  %v2259 = vpop.f32.mrb[0].mxu0
  %2260 = vmatprep.mubr.bf16.mxu0 0
  %2261 = vmatmul.mubr.bf16.gmra.mrb[0].mxu0 %v1551
  %v2262 = vpop.f32.mrb[0].mxu0
  %v2263 = vadd.f32 0.0, %v2262
  %v2264 = vpop.f32.mrb[0].mxu0
  %v2265 = vpop.f32.mrb[0].mxu0
  %v2266 = vadd.f32 0.0, %v2265
  %v2267 = vpop.f32.mrb[0].mxu0
  %2268 = vmatprep.mubr.bf16.mxu0 0
  %2269 = vmatmul.mubr.bf16.gmra.mrb[0].mxu0 %v1554
  %v2270 = vpop.f32.mrb[0].mxu0
  %v2271 = vadd.f32 0.0, %v2270
  %v2272 = vpop.f32.mrb[0].mxu0
  %v2273 = vpop.f32.mrb[0].mxu0
  %v2274 = vadd.f32 0.0, %v2273
  %v2275 = vpop.f32.mrb[0].mxu0
  %2276 = vmatprep.mubr.bf16.mxu0 0
  %2277 = vmatmul.mubr.bf16.gmra.mrb[0].mxu0 %v1557
  %v2278 = vpop.f32.mrb[0].mxu0
  %v2279 = vadd.f32 0.0, %v2278
  %v2280 = vpop.f32.mrb[0].mxu0
  %v2281 = vpop.f32.mrb[0].mxu0
  %v2282 = vadd.f32 0.0, %v2281
  %v2283 = vpop.f32.mrb[0].mxu0
  %2284 = vmatprep.mubr.bf16.mxu0 0
  %2285 = vmatmul.mubr.bf16.gmra.mrb[0].mxu0 %v1560
  %v2286 = vpop.f32.mrb[0].mxu0
  %v2287 = vadd.f32 0.0, %v2286
  %v2288 = vpop.f32.mrb[0].mxu0
  %v2289 = vpop.f32.mrb[0].mxu0
  %v2290 = vadd.f32 0.0, %v2289
  %v2291 = vpop.f32.mrb[0].mxu0
  %2292 = vmatprep.mubr.bf16.mxu0 0
  %2293 = vmatmul.mubr.bf16.gmra.mrb[0].mxu0 %v1563
  %v2294 = vpop.f32.mrb[0].mxu0
  %v2295 = vadd.f32 0.0, %v2294
  %v2296 = vpop.f32.mrb[0].mxu0
  %v2297 = vpop.f32.mrb[0].mxu0
  %v2298 = vadd.f32 0.0, %v2297
  %v2299 = vpop.f32.mrb[0].mxu0
  %2300 = vmatprep.mubr.bf16.mxu0 0
  %2301 = vmatmul.mubr.bf16.gmra.mrb[0].mxu0 %v1566
  %v2302 = vpop.f32.mrb[0].mxu0
  %v2303 = vadd.f32 0.0, %v2302
  %v2304 = vpop.f32.mrb[0].mxu0
  %v2305 = vpop.f32.mrb[0].mxu0
  %v2306 = vadd.f32 0.0, %v2305
  %v2307 = vpop.f32.mrb[0].mxu0
  %2308 = vmatprep.mubr.bf16.mxu0 0
  %2309 = vmatmul.mubr.bf16.gmra.mrb[0].mxu0 %v1569
  %v2310 = vpop.f32.mrb[0].mxu0
  %v2311 = vadd.f32 0.0, %v2310
  %v2312 = vpop.f32.mrb[0].mxu0
  %v2313 = vpop.f32.mrb[0].mxu0
  %v2314 = vadd.f32 0.0, %v2313
  %v2315 = vpop.f32.mrb[0].mxu0
  %2316 = vmatprep.mubr.bf16.mxu0 0
  %2317 = vmatmul.mubr.bf16.gmra.mrb[0].mxu0 %v1572
  %v2318 = vpop.f32.mrb[0].mxu0
  %v2319 = vadd.f32 0.0, %v2318
  %v2320 = vpop.f32.mrb[0].mxu0
  %v2321 = vpop.f32.mrb[0].mxu0
  %v2322 = vadd.f32 0.0, %v2321
  %v2323 = vpop.f32.mrb[0].mxu0
  %2324 = vmatprep.mubr.bf16.mxu0 0
  %2325 = vmatmul.mubr.bf16.gmra.mrb[0].mxu0 %v1575
  %v2326 = vpop.f32.mrb[0].mxu0
  %v2327 = vadd.f32 0.0, %v2326
  %v2328 = vpop.f32.mrb[0].mxu0
  %v2329 = vpop.f32.mrb[0].mxu0
  %v2330 = vadd.f32 0.0, %v2329
  %v2331 = vpop.f32.mrb[0].mxu0
  %2332 = vmatprep.mubr.bf16.mxu0 0
  %2333 = vmatmul.mubr.bf16.gmra.mrb[0].mxu0 %v1578
  %v2334 = vpop.f32.mrb[0].mxu0
  %v2335 = vadd.f32 0.0, %v2334
  %v2336 = vpop.f32.mrb[0].mxu0
  %v2337 = vpop.f32.mrb[0].mxu0
  %v2338 = vadd.f32 0.0, %v2337
  %v2339 = vpop.f32.mrb[0].mxu0
  %2340 = vmatprep.mubr.bf16.mxu0 0
  %2341 = vmatmul.mubr.bf16.gmra.mrb[0].mxu0 %v1581
  %v2342 = vpop.f32.mrb[0].mxu0
  %v2343 = vadd.f32 0.0, %v2342
  %v2344 = vpop.f32.mrb[0].mxu0
  %v2345 = vpop.f32.mrb[0].mxu0
  %v2346 = vadd.f32 0.0, %v2345
  %v2347 = vpop.f32.mrb[0].mxu0
  %2348 = vmatprep.mubr.bf16.mxu0 0
  %2349 = vmatmul.mubr.bf16.gmra.mrb[0].mxu0 %v1584
  %v2350 = vpop.f32.mrb[0].mxu0
  %v2351 = vadd.f32 0.0, %v2350
  %v2352 = vpop.f32.mrb[0].mxu0
  %v2353 = vpop.f32.mrb[0].mxu0
  %v2354 = vadd.f32 0.0, %v2353
  %v2355 = vpop.f32.mrb[0].mxu0
  %2356 = vmatprep.mubr.bf16.mxu0 0
  %2357 = vmatmul.mubr.bf16.gmra.mrb[0].mxu0 %v2020
  %v2358 = vpop.f32.mrb[0].mxu0
  %v2359 = vadd.f32 0.0, %v2358
  %v2360 = vpop.f32.mrb[0].mxu0
  %v2361 = vpop.f32.mrb[0].mxu0
  %v2362 = vadd.f32 0.0, %v2361
  %v2363 = vpop.f32.mrb[0].mxu0
  %2364 = vmatprep.mubr.bf16.mxu0 0
  %2365 = vmatmul.mubr.bf16.gmra.mrb[0].mxu0 %v2023
  %v2366 = vpop.f32.mrb[0].mxu0
  %v2367 = vadd.f32 0.0, %v2366
  %v2368 = vpop.f32.mrb[0].mxu0
  %v2369 = vpop.f32.mrb[0].mxu0
  %v2370 = vpop.f32.mrb[0].mxu0
  %2371 = vdwg.mxu0
  %v2372 = vadd.f32 %v1936, %v2063
  %v2373 = vadd.f32 %v1937, %v2066
  %v2374 = vadd.f32 %v1938, %v2071
  %v2375 = vadd.f32 %v1939, %v2074
  %v2376 = vadd.f32 %v1940, %v2079
  %v2377 = vadd.f32 %v1941, %v2082
  %v2378 = vadd.f32 %v1942, %v2087
  %v2379 = vadd.f32 %v1943, %v2090
  %v2380 = vadd.f32 %v1944, %v2095
  %v2381 = vadd.f32 %v1945, %v2098
  %v2382 = vadd.f32 %v1946, %v2103
  %v2383 = vadd.f32 %v1947, %v2106
  %v2384 = vadd.f32 %v1948, %v2111
  %v2385 = vadd.f32 %v1949, %v2114
  %v2386 = vadd.f32 %v1950, %v2119
  %v2387 = vadd.f32 %v1951, %v2122
  %v2388 = vadd.f32 %v1952, %v2127
  %v2389 = vadd.f32 %v1953, %v2130
  %v2390 = vadd.f32 %v1954, %v2135
  %v2391 = vadd.f32 %v1955, %v2138
  %v2392 = vadd.f32 %v1956, %v2143
  %v2393 = vadd.f32 %v1957, %v2146
  %v2394 = vadd.f32 %v1958, %v2151
  %v2395 = vadd.f32 %v1959, %v2154
  %v2396 = vadd.f32 %v1960, %v2159
  %v2397 = vadd.f32 %v1961, %v2162
  %v2398 = vadd.f32 %v1962, %v2167
  %v2399 = vadd.f32 %v1963, %v2170
  %v2400 = vadd.f32 %v1964, %v2175
  %v2401 = vadd.f32 %v1965, %v2178
  %v2402 = vadd.f32 %v1966, %v2183
  %v2403 = vadd.f32 %v1967, %v2186
  %v2404 = vadd.f32 %v1968, %v2191
  %v2405 = vadd.f32 %v1969, %v2194
  %v2406 = vadd.f32 %v1970, %v2199
  %v2407 = vadd.f32 %v1971, %v2202
  %v2408 = vadd.f32 %v1972, %v2207
  %v2409 = vadd.f32 %v1973, %v2210
  %v2410 = vadd.f32 %v1974, %v2215
  %v2411 = vadd.f32 %v1975, %v2218
  %v2412 = vadd.f32 %v1976, %v2223
  %v2413 = vadd.f32 %v1977, %v2226
  %v2414 = vadd.f32 %v1978, %v2231
  %v2415 = vadd.f32 %v1979, %v2234
  %v2416 = vadd.f32 %v1980, %v2239
  %v2417 = vadd.f32 %v1981, %v2242
  %v2418 = vadd.f32 %v1982, %v2247
  %v2419 = vadd.f32 %v1983, %v2250
  %v2420 = vadd.f32 %v1984, %v2255
  %v2421 = vadd.f32 %v1985, %v2258
  %v2422 = vadd.f32 %v1986, %v2263
  %v2423 = vadd.f32 %v1987, %v2266
  %v2424 = vadd.f32 %v1988, %v2271
  %v2425 = vadd.f32 %v1989, %v2274
  %v2426 = vadd.f32 %v1990, %v2279
  %v2427 = vadd.f32 %v1991, %v2282
  %v2428 = vadd.f32 %v1992, %v2287
  %v2429 = vadd.f32 %v1993, %v2290
  %v2430 = vadd.f32 %v1994, %v2295
  %v2431 = vadd.f32 %v1995, %v2298
  %v2432 = vadd.f32 %v1996, %v2303
  %v2433 = vadd.f32 %v1997, %v2306
  %v2434 = vadd.f32 %v1998, %v2311
  %v2435 = vadd.f32 %v1999, %v2314
  %v2436 = vadd.f32 %v2000, %v2319
  %v2437 = vadd.f32 %v2001, %v2322
  %v2438 = vadd.f32 %v2002, %v2327
  %v2439 = vadd.f32 %v2003, %v2330
  %v2440 = vadd.f32 %v2004, %v2335
  %v2441 = vadd.f32 %v2005, %v2338
  %v2442 = vadd.f32 %v2006, %v2343
  %v2443 = vadd.f32 %v2007, %v2346
  %v2444 = vadd.f32 %v2008, %v2351
  %v2445 = vadd.f32 %v2009, %v2354
  %v2446 = vadd.f32 %v2010, %v2359
  %v2447 = vadd.f32 %v2011, %v2362
  %v2448 = vadd.f32 %v2012, %v2367
  %s2449 = scalar_lea.vmem %s1, 8
  %v2450 = vld [vmem:[%s2449] sm:$0x3]
  %vm2451 = vsmask.f32 6400
  %v2452 = vrot.slane %v162, 1
  %v2453 = vrot.slane %v158, 2
  %v2454 = vor.u32 %v2452, %v2453
  %v2455 = vrot.slane %v170, 1
  %v2456 = vrot.slane %v166, 2
  %v2457 = vor.u32 %v2455, %v2456
  %v2458 = vsel %vm2451, %v2454, %v2457
  %v2459 = vrot.slane %v178, 1
  %v2460 = vrot.slane %v174, 2
  %v2461 = vor.u32 %v2459, %v2460
  %v2462 = vsel %vm2451, %v2457, %v2461
  %v2463 = vrot.slane %v186, 1
  %v2464 = vrot.slane %v182, 2
  %v2465 = vor.u32 %v2463, %v2464
  %v2466 = vsel %vm2451, %v2461, %v2465
  %v2467 = vrot.slane %v194, 1
  %v2468 = vrot.slane %v190, 2
  %v2469 = vor.u32 %v2467, %v2468
  %v2470 = vsel %vm2451, %v2465, %v2469
  %v2471 = vrot.slane %v202, 1
  %v2472 = vrot.slane %v198, 2
  %v2473 = vor.u32 %v2471, %v2472
  %v2474 = vsel %vm2451, %v2469, %v2473
  %v2475 = vrot.slane %v210, 1
  %v2476 = vrot.slane %v206, 2
  %v2477 = vor.u32 %v2475, %v2476
  %v2478 = vsel %vm2451, %v2473, %v2477
  %v2479 = vrot.slane %v218, 1
  %v2480 = vrot.slane %v214, 2
  %v2481 = vor.u32 %v2479, %v2480
  %v2482 = vsel %vm2451, %v2477, %v2481
  %v2483 = vrot.slane %v226, 1
  %v2484 = vrot.slane %v222, 2
  %v2485 = vor.u32 %v2483, %v2484
  %v2486 = vsel %vm2451, %v2481, %v2485
  %v2487 = vrot.slane %v234, 1
  %v2488 = vrot.slane %v230, 2
  %v2489 = vor.u32 %v2487, %v2488
  %v2490 = vsel %vm2451, %v2485, %v2489
  %v2491 = vrot.slane %v242, 1
  %v2492 = vrot.slane %v238, 2
  %v2493 = vor.u32 %v2491, %v2492
  %v2494 = vsel %vm2451, %v2489, %v2493
  %v2495 = vrot.slane %v250, 1
  %v2496 = vrot.slane %v246, 2
  %v2497 = vor.u32 %v2495, %v2496
  %v2498 = vsel %vm2451, %v2493, %v2497
  %v2499 = vrot.slane %v258, 1
  %v2500 = vrot.slane %v254, 2
  %v2501 = vor.u32 %v2499, %v2500
  %v2502 = vsel %vm2451, %v2497, %v2501
  %v2503 = vrot.slane %v266, 1
  %v2504 = vrot.slane %v262, 2
  %v2505 = vor.u32 %v2503, %v2504
  %v2506 = vsel %vm2451, %v2501, %v2505
  %v2507 = vrot.slane %v274, 1
  %v2508 = vrot.slane %v270, 2
  %v2509 = vor.u32 %v2507, %v2508
  %v2510 = vsel %vm2451, %v2505, %v2509
  %v2511 = vrot.slane %v282, 1
  %v2512 = vrot.slane %v278, 2
  %v2513 = vor.u32 %v2511, %v2512
  %v2514 = vsel %vm2451, %v2509, %v2513
  %v2515 = vrot.slane %v290, 1
  %v2516 = vrot.slane %v286, 2
  %v2517 = vor.u32 %v2515, %v2516
  %v2518 = vsel %vm2451, %v2513, %v2517
  %v2519 = vrot.slane %v298, 1
  %v2520 = vrot.slane %v294, 2
  %v2521 = vor.u32 %v2519, %v2520
  %v2522 = vsel %vm2451, %v2517, %v2521
  %v2523 = vrot.slane %v306, 1
  %v2524 = vrot.slane %v302, 2
  %v2525 = vor.u32 %v2523, %v2524
  %v2526 = vsel %vm2451, %v2521, %v2525
  %v2527 = vrot.slane %v314, 1
  %v2528 = vrot.slane %v310, 2
  %v2529 = vor.u32 %v2527, %v2528
  %v2530 = vsel %vm2451, %v2525, %v2529
  %v2531 = vrot.slane %v322, 1
  %v2532 = vrot.slane %v318, 2
  %v2533 = vor.u32 %v2531, %v2532
  %v2534 = vsel %vm2451, %v2529, %v2533
  %v2535 = vrot.slane %v330, 1
  %v2536 = vrot.slane %v326, 2
  %v2537 = vor.u32 %v2535, %v2536
  %v2538 = vsel %vm2451, %v2533, %v2537
  %v2539 = vrot.slane %v338, 1
  %v2540 = vrot.slane %v334, 2
  %v2541 = vor.u32 %v2539, %v2540
  %v2542 = vsel %vm2451, %v2537, %v2541
  %v2543 = vrot.slane %v346, 1
  %v2544 = vrot.slane %v342, 2
  %v2545 = vor.u32 %v2543, %v2544
  %v2546 = vsel %vm2451, %v2541, %v2545
  %v2547 = vrot.slane %v354, 1
  %v2548 = vrot.slane %v350, 2
  %v2549 = vor.u32 %v2547, %v2548
  %v2550 = vsel %vm2451, %v2545, %v2549
  %v2551 = vrot.slane %v362, 1
  %v2552 = vrot.slane %v358, 2
  %v2553 = vor.u32 %v2551, %v2552
  %v2554 = vsel %vm2451, %v2549, %v2553
  %v2555 = vrot.slane %v370, 1
  %v2556 = vrot.slane %v366, 2
  %v2557 = vor.u32 %v2555, %v2556
  %v2558 = vsel %vm2451, %v2553, %v2557
  %v2559 = vrot.slane %v378, 1
  %v2560 = vrot.slane %v374, 2
  %v2561 = vor.u32 %v2559, %v2560
  %v2562 = vsel %vm2451, %v2557, %v2561
  %v2563 = vrot.slane %v386, 1
  %v2564 = vrot.slane %v382, 2
  %v2565 = vor.u32 %v2563, %v2564
  %v2566 = vsel %vm2451, %v2561, %v2565
  %v2567 = vrot.slane %v394, 1
  %v2568 = vrot.slane %v390, 2
  %v2569 = vor.u32 %v2567, %v2568
  %v2570 = vsel %vm2451, %v2565, %v2569
  %v2571 = vrot.slane %v402, 1
  %v2572 = vrot.slane %v398, 2
  %v2573 = vor.u32 %v2571, %v2572
  %v2574 = vsel %vm2451, %v2569, %v2573
  %v2575 = vrot.slane %v410, 1
  %v2576 = vrot.slane %v406, 2
  %v2577 = vor.u32 %v2575, %v2576
  %v2578 = vsel %vm2451, %v2573, %v2577
  %v2579 = vrot.slane %v418, 1
  %v2580 = vrot.slane %v414, 2
  %v2581 = vor.u32 %v2579, %v2580
  %v2582 = vsel %vm2451, %v2577, %v2581
  %v2583 = vrot.slane %v426, 1
  %v2584 = vrot.slane %v422, 2
  %v2585 = vor.u32 %v2583, %v2584
  %v2586 = vsel %vm2451, %v2581, %v2585
  %v2587 = vrot.slane %v434, 1
  %v2588 = vrot.slane %v430, 2
  %v2589 = vor.u32 %v2587, %v2588
  %v2590 = vsel %vm2451, %v2585, %v2589
  %v2591 = vrot.slane %v442, 1
  %v2592 = vrot.slane %v438, 2
  %v2593 = vor.u32 %v2591, %v2592
  %v2594 = vsel %vm2451, %v2589, %v2593
  %v2595 = vrot.slane %v450, 1
  %v2596 = vrot.slane %v446, 2
  %v2597 = vor.u32 %v2595, %v2596
  %v2598 = vsel %vm2451, %v2593, %v2597
  %v2599 = vrot.slane %v458, 1
  %v2600 = vrot.slane %v454, 2
  %v2601 = vor.u32 %v2599, %v2600
  %v2602 = vsel %vm2451, %v2597, %v2601
  %v2604 = vshrl.u32 %v2013, 16
  %v2606 = vrot.slane %v2604, 1
  %v2607 = vshll.u32 %v2013, 16
  %v2609 = vrot.slane %v2607, 2
  %v2610 = vor.u32 %v2606, %v2609
  %v2611 = vsel %vm2451, %v2601, %v2610
  %v2613 = vsel %vm461, %v2458, 0
  %v2616 = vsel %vm461, %v2462, 0
  %v2619 = vsel %vm461, %v2466, 0
  %v2622 = vsel %vm461, %v2470, 0
  %v2625 = vsel %vm461, %v2474, 0
  %v2628 = vsel %vm461, %v2478, 0
  %v2631 = vsel %vm461, %v2482, 0
  %v2634 = vsel %vm461, %v2486, 0
  %v2637 = vsel %vm461, %v2490, 0
  %v2640 = vsel %vm461, %v2494, 0
  %v2643 = vsel %vm461, %v2498, 0
  %v2646 = vsel %vm461, %v2502, 0
  %v2649 = vsel %vm461, %v2506, 0
  %v2652 = vsel %vm461, %v2510, 0
  %v2655 = vsel %vm461, %v2514, 0
  %v2658 = vsel %vm461, %v2518, 0
  %v2661 = vsel %vm461, %v2522, 0
  %v2664 = vsel %vm461, %v2526, 0
  %v2667 = vsel %vm461, %v2530, 0
  %v2670 = vsel %vm461, %v2534, 0
  %v2673 = vsel %vm461, %v2538, 0
  %v2676 = vsel %vm461, %v2542, 0
  %v2679 = vsel %vm461, %v2546, 0
  %v2682 = vsel %vm461, %v2550, 0
  %v2685 = vsel %vm461, %v2554, 0
  %v2688 = vsel %vm461, %v2558, 0
  %v2691 = vsel %vm461, %v2562, 0
  %v2694 = vsel %vm461, %v2566, 0
  %v2697 = vsel %vm461, %v2570, 0
  %v2700 = vsel %vm461, %v2574, 0
  %v2703 = vsel %vm461, %v2578, 0
  %v2706 = vsel %vm461, %v2582, 0
  %v2709 = vsel %vm461, %v2586, 0
  %v2712 = vsel %vm461, %v2590, 0
  %v2715 = vsel %vm461, %v2594, 0
  %v2718 = vsel %vm461, %v2598, 0
  %v2721 = vsel %vm461, %v2602, 0
  %v2724 = vsel %vm461, %v2611, 0
  %v2727 = vsel %vm461, %v2610, 0
  %v2730 = vsel %vm579, %v2450, 0
  %2732 = vmatprep.subr.bf16.mxu0 0
  %2733 = vmatpush1.bf16.msra.mxu0 %v2730
  %2734 = vmatprep.subr.bf16.mxu0 0
  %2735 = vmatpush1.bf16.msra.mxu0 0
  %2736 = vmatprep.subr.bf16.mxu0 0
  %2737 = vmatpush1.bf16.msra.mxu0 0
  %2738 = vmatprep.subr.bf16.mxu0 0
  %2739 = vmatpush1.bf16.msra.mxu0 0
  %2740 = vmatprep.subr.bf16.mxu0 0
  %2741 = vmatpush1.bf16.msra.mxu0 0
  %2742 = vmatprep.subr.bf16.mxu0 0
  %2743 = vmatpush1.bf16.msra.mxu0 0
  %2744 = vmatprep.subr.bf16.mxu0 0
  %2745 = vmatpush1.bf16.msra.mxu0 0
  %2746 = vmatprep.subr.bf16.mxu0 0
  %2747 = vmatpush1.bf16.msra.mxu0 0
  %2748 = vmatprep.subr.bf16.mxu0 0
  %2749 = vmatpush1.bf16.msra.mxu0 0
  %2750 = vmatprep.subr.bf16.mxu0 0
  %2751 = vmatpush1.bf16.msra.mxu0 0
  %2752 = vmatprep.subr.bf16.mxu0 0
  %2753 = vmatpush1.bf16.msra.mxu0 0
  %2754 = vmatprep.subr.bf16.mxu0 0
  %2755 = vmatpush1.bf16.msra.mxu0 0
  %2756 = vmatprep.subr.bf16.mxu0 0
  %2757 = vmatpush1.bf16.msra.mxu0 0
  %2758 = vmatprep.subr.bf16.mxu0 0
  %2759 = vmatpush1.bf16.msra.mxu0 0
  %2760 = vmatprep.subr.bf16.mxu0 0
  %2761 = vmatpush1.bf16.msra.mxu0 0
  %2762 = vmatprep.subr.bf16.mxu0 0
  %2763 = vmatpush1.bf16.msra.mxu0 0
  %2764 = vmatprep.mubr.bf16.mxu0 0
  %2765 = vmatmul.mubr.bf16.gmra.mrb[0].mxu0 %v2613
  %v2766 = vpop.f32.mrb[0].mxu0
  %v2767 = vadd.f32 0.0, %v2766
  %v2768 = vpop.f32.mrb[0].mxu0
  %v2769 = vpop.f32.mrb[0].mxu0
  %v2770 = vadd.f32 0.0, %v2769
  %v2771 = vpop.f32.mrb[0].mxu0
  %2772 = vmatprep.mubr.bf16.mxu0 0
  %2773 = vmatmul.mubr.bf16.gmra.mrb[0].mxu0 %v2616
  %v2774 = vpop.f32.mrb[0].mxu0
  %v2775 = vadd.f32 0.0, %v2774
  %v2776 = vpop.f32.mrb[0].mxu0
  %v2777 = vpop.f32.mrb[0].mxu0
  %v2778 = vadd.f32 0.0, %v2777
  %v2779 = vpop.f32.mrb[0].mxu0
  %2780 = vmatprep.mubr.bf16.mxu0 0
  %2781 = vmatmul.mubr.bf16.gmra.mrb[0].mxu0 %v2619
  %v2782 = vpop.f32.mrb[0].mxu0
  %v2783 = vadd.f32 0.0, %v2782
  %v2784 = vpop.f32.mrb[0].mxu0
  %v2785 = vpop.f32.mrb[0].mxu0
  %v2786 = vadd.f32 0.0, %v2785
  %v2787 = vpop.f32.mrb[0].mxu0
  %2788 = vmatprep.mubr.bf16.mxu0 0
  %2789 = vmatmul.mubr.bf16.gmra.mrb[0].mxu0 %v2622
  %v2790 = vpop.f32.mrb[0].mxu0
  %v2791 = vadd.f32 0.0, %v2790
  %v2792 = vpop.f32.mrb[0].mxu0
  %v2793 = vpop.f32.mrb[0].mxu0
  %v2794 = vadd.f32 0.0, %v2793
  %v2795 = vpop.f32.mrb[0].mxu0
  %2796 = vmatprep.mubr.bf16.mxu0 0
  %2797 = vmatmul.mubr.bf16.gmra.mrb[0].mxu0 %v2625
  %v2798 = vpop.f32.mrb[0].mxu0
  %v2799 = vadd.f32 0.0, %v2798
  %v2800 = vpop.f32.mrb[0].mxu0
  %v2801 = vpop.f32.mrb[0].mxu0
  %v2802 = vadd.f32 0.0, %v2801
  %v2803 = vpop.f32.mrb[0].mxu0
  %2804 = vmatprep.mubr.bf16.mxu0 0
  %2805 = vmatmul.mubr.bf16.gmra.mrb[0].mxu0 %v2628
  %v2806 = vpop.f32.mrb[0].mxu0
  %v2807 = vadd.f32 0.0, %v2806
  %v2808 = vpop.f32.mrb[0].mxu0
  %v2809 = vpop.f32.mrb[0].mxu0
  %v2810 = vadd.f32 0.0, %v2809
  %v2811 = vpop.f32.mrb[0].mxu0
  %2812 = vmatprep.mubr.bf16.mxu0 0
  %2813 = vmatmul.mubr.bf16.gmra.mrb[0].mxu0 %v2631
  %v2814 = vpop.f32.mrb[0].mxu0
  %v2815 = vadd.f32 0.0, %v2814
  %v2816 = vpop.f32.mrb[0].mxu0
  %v2817 = vpop.f32.mrb[0].mxu0
  %v2818 = vadd.f32 0.0, %v2817
  %v2819 = vpop.f32.mrb[0].mxu0
  %2820 = vmatprep.mubr.bf16.mxu0 0
  %2821 = vmatmul.mubr.bf16.gmra.mrb[0].mxu0 %v2634
  %v2822 = vpop.f32.mrb[0].mxu0
  %v2823 = vadd.f32 0.0, %v2822
  %v2824 = vpop.f32.mrb[0].mxu0
  %v2825 = vpop.f32.mrb[0].mxu0
  %v2826 = vadd.f32 0.0, %v2825
  %v2827 = vpop.f32.mrb[0].mxu0
  %2828 = vmatprep.mubr.bf16.mxu0 0
  %2829 = vmatmul.mubr.bf16.gmra.mrb[0].mxu0 %v2637
  %v2830 = vpop.f32.mrb[0].mxu0
  %v2831 = vadd.f32 0.0, %v2830
  %v2832 = vpop.f32.mrb[0].mxu0
  %v2833 = vpop.f32.mrb[0].mxu0
  %v2834 = vadd.f32 0.0, %v2833
  %v2835 = vpop.f32.mrb[0].mxu0
  %2836 = vmatprep.mubr.bf16.mxu0 0
  %2837 = vmatmul.mubr.bf16.gmra.mrb[0].mxu0 %v2640
  %v2838 = vpop.f32.mrb[0].mxu0
  %v2839 = vadd.f32 0.0, %v2838
  %v2840 = vpop.f32.mrb[0].mxu0
  %v2841 = vpop.f32.mrb[0].mxu0
  %v2842 = vadd.f32 0.0, %v2841
  %v2843 = vpop.f32.mrb[0].mxu0
  %2844 = vmatprep.mubr.bf16.mxu0 0
  %2845 = vmatmul.mubr.bf16.gmra.mrb[0].mxu0 %v2643
  %v2846 = vpop.f32.mrb[0].mxu0
  %v2847 = vadd.f32 0.0, %v2846
  %v2848 = vpop.f32.mrb[0].mxu0
  %v2849 = vpop.f32.mrb[0].mxu0
  %v2850 = vadd.f32 0.0, %v2849
  %v2851 = vpop.f32.mrb[0].mxu0
  %2852 = vmatprep.mubr.bf16.mxu0 0
  %2853 = vmatmul.mubr.bf16.gmra.mrb[0].mxu0 %v2646
  %v2854 = vpop.f32.mrb[0].mxu0
  %v2855 = vadd.f32 0.0, %v2854
  %v2856 = vpop.f32.mrb[0].mxu0
  %v2857 = vpop.f32.mrb[0].mxu0
  %v2858 = vadd.f32 0.0, %v2857
  %v2859 = vpop.f32.mrb[0].mxu0
  %2860 = vmatprep.mubr.bf16.mxu0 0
  %2861 = vmatmul.mubr.bf16.gmra.mrb[0].mxu0 %v2649
  %v2862 = vpop.f32.mrb[0].mxu0
  %v2863 = vadd.f32 0.0, %v2862
  %v2864 = vpop.f32.mrb[0].mxu0
  %v2865 = vpop.f32.mrb[0].mxu0
  %v2866 = vadd.f32 0.0, %v2865
  %v2867 = vpop.f32.mrb[0].mxu0
  %2868 = vmatprep.mubr.bf16.mxu0 0
  %2869 = vmatmul.mubr.bf16.gmra.mrb[0].mxu0 %v2652
  %v2870 = vpop.f32.mrb[0].mxu0
  %v2871 = vadd.f32 0.0, %v2870
  %v2872 = vpop.f32.mrb[0].mxu0
  %v2873 = vpop.f32.mrb[0].mxu0
  %v2874 = vadd.f32 0.0, %v2873
  %v2875 = vpop.f32.mrb[0].mxu0
  %2876 = vmatprep.mubr.bf16.mxu0 0
  %2877 = vmatmul.mubr.bf16.gmra.mrb[0].mxu0 %v2655
  %v2878 = vpop.f32.mrb[0].mxu0
  %v2879 = vadd.f32 0.0, %v2878
  %v2880 = vpop.f32.mrb[0].mxu0
  %v2881 = vpop.f32.mrb[0].mxu0
  %v2882 = vadd.f32 0.0, %v2881
  %v2883 = vpop.f32.mrb[0].mxu0
  %2884 = vmatprep.mubr.bf16.mxu0 0
  %2885 = vmatmul.mubr.bf16.gmra.mrb[0].mxu0 %v2658
  %v2886 = vpop.f32.mrb[0].mxu0
  %v2887 = vadd.f32 0.0, %v2886
  %v2888 = vpop.f32.mrb[0].mxu0
  %v2889 = vpop.f32.mrb[0].mxu0
  %v2890 = vadd.f32 0.0, %v2889
  %v2891 = vpop.f32.mrb[0].mxu0
  %2892 = vmatprep.mubr.bf16.mxu0 0
  %2893 = vmatmul.mubr.bf16.gmra.mrb[0].mxu0 %v2661
  %v2894 = vpop.f32.mrb[0].mxu0
  %v2895 = vadd.f32 0.0, %v2894
  %v2896 = vpop.f32.mrb[0].mxu0
  %v2897 = vpop.f32.mrb[0].mxu0
  %v2898 = vadd.f32 0.0, %v2897
  %v2899 = vpop.f32.mrb[0].mxu0
  %2900 = vmatprep.mubr.bf16.mxu0 0
  %2901 = vmatmul.mubr.bf16.gmra.mrb[0].mxu0 %v2664
  %v2902 = vpop.f32.mrb[0].mxu0
  %v2903 = vadd.f32 0.0, %v2902
  %v2904 = vpop.f32.mrb[0].mxu0
  %v2905 = vpop.f32.mrb[0].mxu0
  %v2906 = vadd.f32 0.0, %v2905
  %v2907 = vpop.f32.mrb[0].mxu0
  %2908 = vmatprep.mubr.bf16.mxu0 0
  %2909 = vmatmul.mubr.bf16.gmra.mrb[0].mxu0 %v2667
  %v2910 = vpop.f32.mrb[0].mxu0
  %v2911 = vadd.f32 0.0, %v2910
  %v2912 = vpop.f32.mrb[0].mxu0
  %v2913 = vpop.f32.mrb[0].mxu0
  %v2914 = vadd.f32 0.0, %v2913
  %v2915 = vpop.f32.mrb[0].mxu0
  %2916 = vmatprep.mubr.bf16.mxu0 0
  %2917 = vmatmul.mubr.bf16.gmra.mrb[0].mxu0 %v2670
  %v2918 = vpop.f32.mrb[0].mxu0
  %v2919 = vadd.f32 0.0, %v2918
  %v2920 = vpop.f32.mrb[0].mxu0
  %v2921 = vpop.f32.mrb[0].mxu0
  %v2922 = vadd.f32 0.0, %v2921
  %v2923 = vpop.f32.mrb[0].mxu0
  %2924 = vmatprep.mubr.bf16.mxu0 0
  %2925 = vmatmul.mubr.bf16.gmra.mrb[0].mxu0 %v2673
  %v2926 = vpop.f32.mrb[0].mxu0
  %v2927 = vadd.f32 0.0, %v2926
  %v2928 = vpop.f32.mrb[0].mxu0
  %v2929 = vpop.f32.mrb[0].mxu0
  %v2930 = vadd.f32 0.0, %v2929
  %v2931 = vpop.f32.mrb[0].mxu0
  %2932 = vmatprep.mubr.bf16.mxu0 0
  %2933 = vmatmul.mubr.bf16.gmra.mrb[0].mxu0 %v2676
  %v2934 = vpop.f32.mrb[0].mxu0
  %v2935 = vadd.f32 0.0, %v2934
  %v2936 = vpop.f32.mrb[0].mxu0
  %v2937 = vpop.f32.mrb[0].mxu0
  %v2938 = vadd.f32 0.0, %v2937
  %v2939 = vpop.f32.mrb[0].mxu0
  %2940 = vmatprep.mubr.bf16.mxu0 0
  %2941 = vmatmul.mubr.bf16.gmra.mrb[0].mxu0 %v2679
  %v2942 = vpop.f32.mrb[0].mxu0
  %v2943 = vadd.f32 0.0, %v2942
  %v2944 = vpop.f32.mrb[0].mxu0
  %v2945 = vpop.f32.mrb[0].mxu0
  %v2946 = vadd.f32 0.0, %v2945
  %v2947 = vpop.f32.mrb[0].mxu0
  %2948 = vmatprep.mubr.bf16.mxu0 0
  %2949 = vmatmul.mubr.bf16.gmra.mrb[0].mxu0 %v2682
  %v2950 = vpop.f32.mrb[0].mxu0
  %v2951 = vadd.f32 0.0, %v2950
  %v2952 = vpop.f32.mrb[0].mxu0
  %v2953 = vpop.f32.mrb[0].mxu0
  %v2954 = vadd.f32 0.0, %v2953
  %v2955 = vpop.f32.mrb[0].mxu0
  %2956 = vmatprep.mubr.bf16.mxu0 0
  %2957 = vmatmul.mubr.bf16.gmra.mrb[0].mxu0 %v2685
  %v2958 = vpop.f32.mrb[0].mxu0
  %v2959 = vadd.f32 0.0, %v2958
  %v2960 = vpop.f32.mrb[0].mxu0
  %v2961 = vpop.f32.mrb[0].mxu0
  %v2962 = vadd.f32 0.0, %v2961
  %v2963 = vpop.f32.mrb[0].mxu0
  %2964 = vmatprep.mubr.bf16.mxu0 0
  %2965 = vmatmul.mubr.bf16.gmra.mrb[0].mxu0 %v2688
  %v2966 = vpop.f32.mrb[0].mxu0
  %v2967 = vadd.f32 0.0, %v2966
  %v2968 = vpop.f32.mrb[0].mxu0
  %v2969 = vpop.f32.mrb[0].mxu0
  %v2970 = vadd.f32 0.0, %v2969
  %v2971 = vpop.f32.mrb[0].mxu0
  %2972 = vmatprep.mubr.bf16.mxu0 0
  %2973 = vmatmul.mubr.bf16.gmra.mrb[0].mxu0 %v2691
  %v2974 = vpop.f32.mrb[0].mxu0
  %v2975 = vadd.f32 0.0, %v2974
  %v2976 = vpop.f32.mrb[0].mxu0
  %v2977 = vpop.f32.mrb[0].mxu0
  %v2978 = vadd.f32 0.0, %v2977
  %v2979 = vpop.f32.mrb[0].mxu0
  %2980 = vmatprep.mubr.bf16.mxu0 0
  %2981 = vmatmul.mubr.bf16.gmra.mrb[0].mxu0 %v2694
  %v2982 = vpop.f32.mrb[0].mxu0
  %v2983 = vadd.f32 0.0, %v2982
  %v2984 = vpop.f32.mrb[0].mxu0
  %v2985 = vpop.f32.mrb[0].mxu0
  %v2986 = vadd.f32 0.0, %v2985
  %v2987 = vpop.f32.mrb[0].mxu0
  %2988 = vmatprep.mubr.bf16.mxu0 0
  %2989 = vmatmul.mubr.bf16.gmra.mrb[0].mxu0 %v2697
  %v2990 = vpop.f32.mrb[0].mxu0
  %v2991 = vadd.f32 0.0, %v2990
  %v2992 = vpop.f32.mrb[0].mxu0
  %v2993 = vpop.f32.mrb[0].mxu0
  %v2994 = vadd.f32 0.0, %v2993
  %v2995 = vpop.f32.mrb[0].mxu0
  %2996 = vmatprep.mubr.bf16.mxu0 0
  %2997 = vmatmul.mubr.bf16.gmra.mrb[0].mxu0 %v2700
  %v2998 = vpop.f32.mrb[0].mxu0
  %v2999 = vadd.f32 0.0, %v2998
  %v3000 = vpop.f32.mrb[0].mxu0
  %v3001 = vpop.f32.mrb[0].mxu0
  %v3002 = vadd.f32 0.0, %v3001
  %v3003 = vpop.f32.mrb[0].mxu0
  %3004 = vmatprep.mubr.bf16.mxu0 0
  %3005 = vmatmul.mubr.bf16.gmra.mrb[0].mxu0 %v2703
  %v3006 = vpop.f32.mrb[0].mxu0
  %v3007 = vadd.f32 0.0, %v3006
  %v3008 = vpop.f32.mrb[0].mxu0
  %v3009 = vpop.f32.mrb[0].mxu0
  %v3010 = vadd.f32 0.0, %v3009
  %v3011 = vpop.f32.mrb[0].mxu0
  %3012 = vmatprep.mubr.bf16.mxu0 0
  %3013 = vmatmul.mubr.bf16.gmra.mrb[0].mxu0 %v2706
  %v3014 = vpop.f32.mrb[0].mxu0
  %v3015 = vadd.f32 0.0, %v3014
  %v3016 = vpop.f32.mrb[0].mxu0
  %v3017 = vpop.f32.mrb[0].mxu0
  %v3018 = vadd.f32 0.0, %v3017
  %v3019 = vpop.f32.mrb[0].mxu0
  %3020 = vmatprep.mubr.bf16.mxu0 0
  %3021 = vmatmul.mubr.bf16.gmra.mrb[0].mxu0 %v2709
  %v3022 = vpop.f32.mrb[0].mxu0
  %v3023 = vadd.f32 0.0, %v3022
  %v3024 = vpop.f32.mrb[0].mxu0
  %v3025 = vpop.f32.mrb[0].mxu0
  %v3026 = vadd.f32 0.0, %v3025
  %v3027 = vpop.f32.mrb[0].mxu0
  %3028 = vmatprep.mubr.bf16.mxu0 0
  %3029 = vmatmul.mubr.bf16.gmra.mrb[0].mxu0 %v2712
  %v3030 = vpop.f32.mrb[0].mxu0
  %v3031 = vadd.f32 0.0, %v3030
  %v3032 = vpop.f32.mrb[0].mxu0
  %v3033 = vpop.f32.mrb[0].mxu0
  %v3034 = vadd.f32 0.0, %v3033
  %v3035 = vpop.f32.mrb[0].mxu0
  %3036 = vmatprep.mubr.bf16.mxu0 0
  %3037 = vmatmul.mubr.bf16.gmra.mrb[0].mxu0 %v2715
  %v3038 = vpop.f32.mrb[0].mxu0
  %v3039 = vadd.f32 0.0, %v3038
  %v3040 = vpop.f32.mrb[0].mxu0
  %v3041 = vpop.f32.mrb[0].mxu0
  %v3042 = vadd.f32 0.0, %v3041
  %v3043 = vpop.f32.mrb[0].mxu0
  %3044 = vmatprep.mubr.bf16.mxu0 0
  %3045 = vmatmul.mubr.bf16.gmra.mrb[0].mxu0 %v2718
  %v3046 = vpop.f32.mrb[0].mxu0
  %v3047 = vadd.f32 0.0, %v3046
  %v3048 = vpop.f32.mrb[0].mxu0
  %v3049 = vpop.f32.mrb[0].mxu0
  %v3050 = vadd.f32 0.0, %v3049
  %v3051 = vpop.f32.mrb[0].mxu0
  %3052 = vmatprep.mubr.bf16.mxu0 0
  %3053 = vmatmul.mubr.bf16.gmra.mrb[0].mxu0 %v2721
  %v3054 = vpop.f32.mrb[0].mxu0
  %v3055 = vadd.f32 0.0, %v3054
  %v3056 = vpop.f32.mrb[0].mxu0
  %v3057 = vpop.f32.mrb[0].mxu0
  %v3058 = vadd.f32 0.0, %v3057
  %v3059 = vpop.f32.mrb[0].mxu0
  %3060 = vmatprep.mubr.bf16.mxu0 0
  %3061 = vmatmul.mubr.bf16.gmra.mrb[0].mxu0 %v2724
  %v3062 = vpop.f32.mrb[0].mxu0
  %v3063 = vadd.f32 0.0, %v3062
  %v3064 = vpop.f32.mrb[0].mxu0
  %v3065 = vpop.f32.mrb[0].mxu0
  %v3066 = vadd.f32 0.0, %v3065
  %v3067 = vpop.f32.mrb[0].mxu0
  %3068 = vmatprep.mubr.bf16.mxu0 0
  %3069 = vmatmul.mubr.bf16.gmra.mrb[0].mxu0 %v2727
  %v3070 = vpop.f32.mrb[0].mxu0
  %v3071 = vadd.f32 0.0, %v3070
  %v3072 = vpop.f32.mrb[0].mxu0
  %v3073 = vpop.f32.mrb[0].mxu0
  %v3074 = vpop.f32.mrb[0].mxu0
  %3075 = vdwg.mxu0
  %v3076 = vadd.f32 %v2372, %v2767
  %v3077 = vadd.f32 %v2373, %v2770
  %v3078 = vadd.f32 %v2374, %v2775
  %v3079 = vadd.f32 %v2375, %v2778
  %v3080 = vadd.f32 %v2376, %v2783
  %v3081 = vadd.f32 %v2377, %v2786
  %v3082 = vadd.f32 %v2378, %v2791
  %v3083 = vadd.f32 %v2379, %v2794
  %v3084 = vadd.f32 %v2380, %v2799
  %v3085 = vadd.f32 %v2381, %v2802
  %v3086 = vadd.f32 %v2382, %v2807
  %v3087 = vadd.f32 %v2383, %v2810
  %v3088 = vadd.f32 %v2384, %v2815
  %v3089 = vadd.f32 %v2385, %v2818
  %v3090 = vadd.f32 %v2386, %v2823
  %v3091 = vadd.f32 %v2387, %v2826
  %v3092 = vadd.f32 %v2388, %v2831
  %v3093 = vadd.f32 %v2389, %v2834
  %v3094 = vadd.f32 %v2390, %v2839
  %v3095 = vadd.f32 %v2391, %v2842
  %v3096 = vadd.f32 %v2392, %v2847
  %v3097 = vadd.f32 %v2393, %v2850
  %v3098 = vadd.f32 %v2394, %v2855
  %v3099 = vadd.f32 %v2395, %v2858
  %v3100 = vadd.f32 %v2396, %v2863
  %v3101 = vadd.f32 %v2397, %v2866
  %v3102 = vadd.f32 %v2398, %v2871
  %v3103 = vadd.f32 %v2399, %v2874
  %v3104 = vadd.f32 %v2400, %v2879
  %v3105 = vadd.f32 %v2401, %v2882
  %v3106 = vadd.f32 %v2402, %v2887
  %v3107 = vadd.f32 %v2403, %v2890
  %v3108 = vadd.f32 %v2404, %v2895
  %v3109 = vadd.f32 %v2405, %v2898
  %v3110 = vadd.f32 %v2406, %v2903
  %v3111 = vadd.f32 %v2407, %v2906
  %v3112 = vadd.f32 %v2408, %v2911
  %v3113 = vadd.f32 %v2409, %v2914
  %v3114 = vadd.f32 %v2410, %v2919
  %v3115 = vadd.f32 %v2411, %v2922
  %v3116 = vadd.f32 %v2412, %v2927
  %v3117 = vadd.f32 %v2413, %v2930
  %v3118 = vadd.f32 %v2414, %v2935
  %v3119 = vadd.f32 %v2415, %v2938
  %v3120 = vadd.f32 %v2416, %v2943
  %v3121 = vadd.f32 %v2417, %v2946
  %v3122 = vadd.f32 %v2418, %v2951
  %v3123 = vadd.f32 %v2419, %v2954
  %v3124 = vadd.f32 %v2420, %v2959
  %v3125 = vadd.f32 %v2421, %v2962
  %v3126 = vadd.f32 %v2422, %v2967
  %v3127 = vadd.f32 %v2423, %v2970
  %v3128 = vadd.f32 %v2424, %v2975
  %v3129 = vadd.f32 %v2425, %v2978
  %v3130 = vadd.f32 %v2426, %v2983
  %v3131 = vadd.f32 %v2427, %v2986
  %v3132 = vadd.f32 %v2428, %v2991
  %v3133 = vadd.f32 %v2429, %v2994
  %v3134 = vadd.f32 %v2430, %v2999
  %v3135 = vadd.f32 %v2431, %v3002
  %v3136 = vadd.f32 %v2432, %v3007
  %v3137 = vadd.f32 %v2433, %v3010
  %v3138 = vadd.f32 %v2434, %v3015
  %v3139 = vadd.f32 %v2435, %v3018
  %v3140 = vadd.f32 %v2436, %v3023
  %v3141 = vadd.f32 %v2437, %v3026
  %v3142 = vadd.f32 %v2438, %v3031
  %v3143 = vadd.f32 %v2439, %v3034
  %v3144 = vadd.f32 %v2440, %v3039
  %v3145 = vadd.f32 %v2441, %v3042
  %v3146 = vadd.f32 %v2442, %v3047
  %v3147 = vadd.f32 %v2443, %v3050
  %v3148 = vadd.f32 %v2444, %v3055
  %v3149 = vadd.f32 %v2445, %v3058
  %v3150 = vadd.f32 %v2446, %v3063
  %v3151 = vadd.f32 %v2447, %v3066
  %v3152 = vadd.f32 %v2448, %v3071
  %s3153 = scalar_lea.vmem %s1, 10
  %v3154 = vld [vmem:[%s3153] sm:$0x3]
  %vm3155 = vcmask 1045504
  %v3156 = vrot.slane %v107, 2
  %v3157 = vrot.slane %v108, 2
  %v3158 = vsel %vm3155, %v3156, %v3157
  %v3159 = vrot.slane %v109, 2
  %v3160 = vsel %vm3155, %v3157, %v3159
  %v3161 = vrot.slane %v110, 2
  %v3162 = vsel %vm3155, %v3159, %v3161
  %v3163 = vrot.slane %v111, 2
  %v3164 = vsel %vm3155, %v3161, %v3163
  %v3165 = vrot.slane %v112, 2
  %v3166 = vsel %vm3155, %v3163, %v3165
  %v3167 = vrot.slane %v113, 2
  %v3168 = vsel %vm3155, %v3165, %v3167
  %v3169 = vrot.slane %v114, 2
  %v3170 = vsel %vm3155, %v3167, %v3169
  %v3171 = vrot.slane %v115, 2
  %v3172 = vsel %vm3155, %v3169, %v3171
  %v3173 = vrot.slane %v116, 2
  %v3174 = vsel %vm3155, %v3171, %v3173
  %v3175 = vrot.slane %v117, 2
  %v3176 = vsel %vm3155, %v3173, %v3175
  %v3177 = vrot.slane %v118, 2
  %v3178 = vsel %vm3155, %v3175, %v3177
  %v3179 = vrot.slane %v119, 2
  %v3180 = vsel %vm3155, %v3177, %v3179
  %v3181 = vrot.slane %v120, 2
  %v3182 = vsel %vm3155, %v3179, %v3181
  %v3183 = vrot.slane %v121, 2
  %v3184 = vsel %vm3155, %v3181, %v3183
  %v3185 = vrot.slane %v122, 2
  %v3186 = vsel %vm3155, %v3183, %v3185
  %v3187 = vrot.slane %v123, 2
  %v3188 = vsel %vm3155, %v3185, %v3187
  %v3189 = vrot.slane %v124, 2
  %v3190 = vsel %vm3155, %v3187, %v3189
  %v3191 = vrot.slane %v125, 2
  %v3192 = vsel %vm3155, %v3189, %v3191
  %v3193 = vrot.slane %v126, 2
  %v3194 = vsel %vm3155, %v3191, %v3193
  %v3195 = vrot.slane %v127, 2
  %v3196 = vsel %vm3155, %v3193, %v3195
  %v3197 = vrot.slane %v128, 2
  %v3198 = vsel %vm3155, %v3195, %v3197
  %v3199 = vrot.slane %v129, 2
  %v3200 = vsel %vm3155, %v3197, %v3199
  %v3201 = vrot.slane %v130, 2
  %v3202 = vsel %vm3155, %v3199, %v3201
  %v3203 = vrot.slane %v131, 2
  %v3204 = vsel %vm3155, %v3201, %v3203
  %v3205 = vrot.slane %v132, 2
  %v3206 = vsel %vm3155, %v3203, %v3205
  %v3207 = vrot.slane %v133, 2
  %v3208 = vsel %vm3155, %v3205, %v3207
  %v3209 = vrot.slane %v134, 2
  %v3210 = vsel %vm3155, %v3207, %v3209
  %v3211 = vrot.slane %v135, 2
  %v3212 = vsel %vm3155, %v3209, %v3211
  %v3213 = vrot.slane %v136, 2
  %v3214 = vsel %vm3155, %v3211, %v3213
  %v3215 = vrot.slane %v137, 2
  %v3216 = vsel %vm3155, %v3213, %v3215
  %v3217 = vrot.slane %v138, 2
  %v3218 = vsel %vm3155, %v3215, %v3217
  %v3219 = vrot.slane %v139, 2
  %v3220 = vsel %vm3155, %v3217, %v3219
  %v3221 = vrot.slane %v140, 2
  %v3222 = vsel %vm3155, %v3219, %v3221
  %v3223 = vrot.slane %v141, 2
  %v3224 = vsel %vm3155, %v3221, %v3223
  %v3225 = vrot.slane %v142, 2
  %v3226 = vsel %vm3155, %v3223, %v3225
  %v3227 = vrot.slane %v143, 2
  %v3228 = vsel %vm3155, %v3225, %v3227
  %v3229 = vrot.slane %v146, 2
  %v3230 = vsel %vm3155, %v3227, %v3229
  %v3231 = vrot.slane %v2013, 2
  %v3232 = vsel %vm3155, %v3229, %v3231
  %v3234 = vsel %vm461, %v3158, 0
  %v3237 = vsel %vm461, %v3160, 0
  %v3240 = vsel %vm461, %v3162, 0
  %v3243 = vsel %vm461, %v3164, 0
  %v3246 = vsel %vm461, %v3166, 0
  %v3249 = vsel %vm461, %v3168, 0
  %v3252 = vsel %vm461, %v3170, 0
  %v3255 = vsel %vm461, %v3172, 0
  %v3258 = vsel %vm461, %v3174, 0
  %v3261 = vsel %vm461, %v3176, 0
  %v3264 = vsel %vm461, %v3178, 0
  %v3267 = vsel %vm461, %v3180, 0
  %v3270 = vsel %vm461, %v3182, 0
  %v3273 = vsel %vm461, %v3184, 0
  %v3276 = vsel %vm461, %v3186, 0
  %v3279 = vsel %vm461, %v3188, 0
  %v3282 = vsel %vm461, %v3190, 0
  %v3285 = vsel %vm461, %v3192, 0
  %v3288 = vsel %vm461, %v3194, 0
  %v3291 = vsel %vm461, %v3196, 0
  %v3294 = vsel %vm461, %v3198, 0
  %v3297 = vsel %vm461, %v3200, 0
  %v3300 = vsel %vm461, %v3202, 0
  %v3303 = vsel %vm461, %v3204, 0
  %v3306 = vsel %vm461, %v3206, 0
  %v3309 = vsel %vm461, %v3208, 0
  %v3312 = vsel %vm461, %v3210, 0
  %v3315 = vsel %vm461, %v3212, 0
  %v3318 = vsel %vm461, %v3214, 0
  %v3321 = vsel %vm461, %v3216, 0
  %v3324 = vsel %vm461, %v3218, 0
  %v3327 = vsel %vm461, %v3220, 0
  %v3330 = vsel %vm461, %v3222, 0
  %v3333 = vsel %vm461, %v3224, 0
  %v3336 = vsel %vm461, %v3226, 0
  %v3339 = vsel %vm461, %v3228, 0
  %v3342 = vsel %vm461, %v3230, 0
  %v3345 = vsel %vm461, %v3232, 0
  %v3348 = vsel %vm461, %v3231, 0
  %v3351 = vsel %vm579, %v3154, 0
  %3353 = vmatprep.subr.bf16.mxu0 0
  %3354 = vmatpush1.bf16.msra.mxu0 %v3351
  %3355 = vmatprep.subr.bf16.mxu0 0
  %3356 = vmatpush1.bf16.msra.mxu0 0
  %3357 = vmatprep.subr.bf16.mxu0 0
  %3358 = vmatpush1.bf16.msra.mxu0 0
  %3359 = vmatprep.subr.bf16.mxu0 0
  %3360 = vmatpush1.bf16.msra.mxu0 0
  %3361 = vmatprep.subr.bf16.mxu0 0
  %3362 = vmatpush1.bf16.msra.mxu0 0
  %3363 = vmatprep.subr.bf16.mxu0 0
  %3364 = vmatpush1.bf16.msra.mxu0 0
  %3365 = vmatprep.subr.bf16.mxu0 0
  %3366 = vmatpush1.bf16.msra.mxu0 0
  %3367 = vmatprep.subr.bf16.mxu0 0
  %3368 = vmatpush1.bf16.msra.mxu0 0
  %3369 = vmatprep.subr.bf16.mxu0 0
  %3370 = vmatpush1.bf16.msra.mxu0 0
  %3371 = vmatprep.subr.bf16.mxu0 0
  %3372 = vmatpush1.bf16.msra.mxu0 0
  %3373 = vmatprep.subr.bf16.mxu0 0
  %3374 = vmatpush1.bf16.msra.mxu0 0
  %3375 = vmatprep.subr.bf16.mxu0 0
  %3376 = vmatpush1.bf16.msra.mxu0 0
  %3377 = vmatprep.subr.bf16.mxu0 0
  %3378 = vmatpush1.bf16.msra.mxu0 0
  %3379 = vmatprep.subr.bf16.mxu0 0
  %3380 = vmatpush1.bf16.msra.mxu0 0
  %3381 = vmatprep.subr.bf16.mxu0 0
  %3382 = vmatpush1.bf16.msra.mxu0 0
  %3383 = vmatprep.subr.bf16.mxu0 0
  %3384 = vmatpush1.bf16.msra.mxu0 0
  %3385 = vmatprep.mubr.bf16.mxu0 0
  %3386 = vmatmul.mubr.bf16.gmra.mrb[0].mxu0 %v3234
  %v3387 = vpop.f32.mrb[0].mxu0
  %v3388 = vadd.f32 0.0, %v3387
  %v3389 = vpop.f32.mrb[0].mxu0
  %v3390 = vpop.f32.mrb[0].mxu0
  %v3391 = vadd.f32 0.0, %v3390
  %v3392 = vpop.f32.mrb[0].mxu0
  %3393 = vmatprep.mubr.bf16.mxu0 0
  %3394 = vmatmul.mubr.bf16.gmra.mrb[0].mxu0 %v3237
  %v3395 = vpop.f32.mrb[0].mxu0
  %v3396 = vadd.f32 0.0, %v3395
  %v3397 = vpop.f32.mrb[0].mxu0
  %v3398 = vpop.f32.mrb[0].mxu0
  %v3399 = vadd.f32 0.0, %v3398
  %v3400 = vpop.f32.mrb[0].mxu0
  %3401 = vmatprep.mubr.bf16.mxu0 0
  %3402 = vmatmul.mubr.bf16.gmra.mrb[0].mxu0 %v3240
  %v3403 = vpop.f32.mrb[0].mxu0
  %v3404 = vadd.f32 0.0, %v3403
  %v3405 = vpop.f32.mrb[0].mxu0
  %v3406 = vpop.f32.mrb[0].mxu0
  %v3407 = vadd.f32 0.0, %v3406
  %v3408 = vpop.f32.mrb[0].mxu0
  %3409 = vmatprep.mubr.bf16.mxu0 0
  %3410 = vmatmul.mubr.bf16.gmra.mrb[0].mxu0 %v3243
  %v3411 = vpop.f32.mrb[0].mxu0
  %v3412 = vadd.f32 0.0, %v3411
  %v3413 = vpop.f32.mrb[0].mxu0
  %v3414 = vpop.f32.mrb[0].mxu0
  %v3415 = vadd.f32 0.0, %v3414
  %v3416 = vpop.f32.mrb[0].mxu0
  %3417 = vmatprep.mubr.bf16.mxu0 0
  %3418 = vmatmul.mubr.bf16.gmra.mrb[0].mxu0 %v3246
  %v3419 = vpop.f32.mrb[0].mxu0
  %v3420 = vadd.f32 0.0, %v3419
  %v3421 = vpop.f32.mrb[0].mxu0
  %v3422 = vpop.f32.mrb[0].mxu0
  %v3423 = vadd.f32 0.0, %v3422
  %v3424 = vpop.f32.mrb[0].mxu0
  %3425 = vmatprep.mubr.bf16.mxu0 0
  %3426 = vmatmul.mubr.bf16.gmra.mrb[0].mxu0 %v3249
  %v3427 = vpop.f32.mrb[0].mxu0
  %v3428 = vadd.f32 0.0, %v3427
  %v3429 = vpop.f32.mrb[0].mxu0
  %v3430 = vpop.f32.mrb[0].mxu0
  %v3431 = vadd.f32 0.0, %v3430
  %v3432 = vpop.f32.mrb[0].mxu0
  %3433 = vmatprep.mubr.bf16.mxu0 0
  %3434 = vmatmul.mubr.bf16.gmra.mrb[0].mxu0 %v3252
  %v3435 = vpop.f32.mrb[0].mxu0
  %v3436 = vadd.f32 0.0, %v3435
  %v3437 = vpop.f32.mrb[0].mxu0
  %v3438 = vpop.f32.mrb[0].mxu0
  %v3439 = vadd.f32 0.0, %v3438
  %v3440 = vpop.f32.mrb[0].mxu0
  %3441 = vmatprep.mubr.bf16.mxu0 0
  %3442 = vmatmul.mubr.bf16.gmra.mrb[0].mxu0 %v3255
  %v3443 = vpop.f32.mrb[0].mxu0
  %v3444 = vadd.f32 0.0, %v3443
  %v3445 = vpop.f32.mrb[0].mxu0
  %v3446 = vpop.f32.mrb[0].mxu0
  %v3447 = vadd.f32 0.0, %v3446
  %v3448 = vpop.f32.mrb[0].mxu0
  %3449 = vmatprep.mubr.bf16.mxu0 0
  %3450 = vmatmul.mubr.bf16.gmra.mrb[0].mxu0 %v3258
  %v3451 = vpop.f32.mrb[0].mxu0
  %v3452 = vadd.f32 0.0, %v3451
  %v3453 = vpop.f32.mrb[0].mxu0
  %v3454 = vpop.f32.mrb[0].mxu0
  %v3455 = vadd.f32 0.0, %v3454
  %v3456 = vpop.f32.mrb[0].mxu0
  %3457 = vmatprep.mubr.bf16.mxu0 0
  %3458 = vmatmul.mubr.bf16.gmra.mrb[0].mxu0 %v3261
  %v3459 = vpop.f32.mrb[0].mxu0
  %v3460 = vadd.f32 0.0, %v3459
  %v3461 = vpop.f32.mrb[0].mxu0
  %v3462 = vpop.f32.mrb[0].mxu0
  %v3463 = vadd.f32 0.0, %v3462
  %v3464 = vpop.f32.mrb[0].mxu0
  %3465 = vmatprep.mubr.bf16.mxu0 0
  %3466 = vmatmul.mubr.bf16.gmra.mrb[0].mxu0 %v3264
  %v3467 = vpop.f32.mrb[0].mxu0
  %v3468 = vadd.f32 0.0, %v3467
  %v3469 = vpop.f32.mrb[0].mxu0
  %v3470 = vpop.f32.mrb[0].mxu0
  %v3471 = vadd.f32 0.0, %v3470
  %v3472 = vpop.f32.mrb[0].mxu0
  %3473 = vmatprep.mubr.bf16.mxu0 0
  %3474 = vmatmul.mubr.bf16.gmra.mrb[0].mxu0 %v3267
  %v3475 = vpop.f32.mrb[0].mxu0
  %v3476 = vadd.f32 0.0, %v3475
  %v3477 = vpop.f32.mrb[0].mxu0
  %v3478 = vpop.f32.mrb[0].mxu0
  %v3479 = vadd.f32 0.0, %v3478
  %v3480 = vpop.f32.mrb[0].mxu0
  %3481 = vmatprep.mubr.bf16.mxu0 0
  %3482 = vmatmul.mubr.bf16.gmra.mrb[0].mxu0 %v3270
  %v3483 = vpop.f32.mrb[0].mxu0
  %v3484 = vadd.f32 0.0, %v3483
  %v3485 = vpop.f32.mrb[0].mxu0
  %v3486 = vpop.f32.mrb[0].mxu0
  %v3487 = vadd.f32 0.0, %v3486
  %v3488 = vpop.f32.mrb[0].mxu0
  %3489 = vmatprep.mubr.bf16.mxu0 0
  %3490 = vmatmul.mubr.bf16.gmra.mrb[0].mxu0 %v3273
  %v3491 = vpop.f32.mrb[0].mxu0
  %v3492 = vadd.f32 0.0, %v3491
  %v3493 = vpop.f32.mrb[0].mxu0
  %v3494 = vpop.f32.mrb[0].mxu0
  %v3495 = vadd.f32 0.0, %v3494
  %v3496 = vpop.f32.mrb[0].mxu0
  %3497 = vmatprep.mubr.bf16.mxu0 0
  %3498 = vmatmul.mubr.bf16.gmra.mrb[0].mxu0 %v3276
  %v3499 = vpop.f32.mrb[0].mxu0
  %v3500 = vadd.f32 0.0, %v3499
  %v3501 = vpop.f32.mrb[0].mxu0
  %v3502 = vpop.f32.mrb[0].mxu0
  %v3503 = vadd.f32 0.0, %v3502
  %v3504 = vpop.f32.mrb[0].mxu0
  %3505 = vmatprep.mubr.bf16.mxu0 0
  %3506 = vmatmul.mubr.bf16.gmra.mrb[0].mxu0 %v3279
  %v3507 = vpop.f32.mrb[0].mxu0
  %v3508 = vadd.f32 0.0, %v3507
  %v3509 = vpop.f32.mrb[0].mxu0
  %v3510 = vpop.f32.mrb[0].mxu0
  %v3511 = vadd.f32 0.0, %v3510
  %v3512 = vpop.f32.mrb[0].mxu0
  %3513 = vmatprep.mubr.bf16.mxu0 0
  %3514 = vmatmul.mubr.bf16.gmra.mrb[0].mxu0 %v3282
  %v3515 = vpop.f32.mrb[0].mxu0
  %v3516 = vadd.f32 0.0, %v3515
  %v3517 = vpop.f32.mrb[0].mxu0
  %v3518 = vpop.f32.mrb[0].mxu0
  %v3519 = vadd.f32 0.0, %v3518
  %v3520 = vpop.f32.mrb[0].mxu0
  %3521 = vmatprep.mubr.bf16.mxu0 0
  %3522 = vmatmul.mubr.bf16.gmra.mrb[0].mxu0 %v3285
  %v3523 = vpop.f32.mrb[0].mxu0
  %v3524 = vadd.f32 0.0, %v3523
  %v3525 = vpop.f32.mrb[0].mxu0
  %v3526 = vpop.f32.mrb[0].mxu0
  %v3527 = vadd.f32 0.0, %v3526
  %v3528 = vpop.f32.mrb[0].mxu0
  %3529 = vmatprep.mubr.bf16.mxu0 0
  %3530 = vmatmul.mubr.bf16.gmra.mrb[0].mxu0 %v3288
  %v3531 = vpop.f32.mrb[0].mxu0
  %v3532 = vadd.f32 0.0, %v3531
  %v3533 = vpop.f32.mrb[0].mxu0
  %v3534 = vpop.f32.mrb[0].mxu0
  %v3535 = vadd.f32 0.0, %v3534
  %v3536 = vpop.f32.mrb[0].mxu0
  %3537 = vmatprep.mubr.bf16.mxu0 0
  %3538 = vmatmul.mubr.bf16.gmra.mrb[0].mxu0 %v3291
  %v3539 = vpop.f32.mrb[0].mxu0
  %v3540 = vadd.f32 0.0, %v3539
  %v3541 = vpop.f32.mrb[0].mxu0
  %v3542 = vpop.f32.mrb[0].mxu0
  %v3543 = vadd.f32 0.0, %v3542
  %v3544 = vpop.f32.mrb[0].mxu0
  %3545 = vmatprep.mubr.bf16.mxu0 0
  %3546 = vmatmul.mubr.bf16.gmra.mrb[0].mxu0 %v3294
  %v3547 = vpop.f32.mrb[0].mxu0
  %v3548 = vadd.f32 0.0, %v3547
  %v3549 = vpop.f32.mrb[0].mxu0
  %v3550 = vpop.f32.mrb[0].mxu0
  %v3551 = vadd.f32 0.0, %v3550
  %v3552 = vpop.f32.mrb[0].mxu0
  %3553 = vmatprep.mubr.bf16.mxu0 0
  %3554 = vmatmul.mubr.bf16.gmra.mrb[0].mxu0 %v3297
  %v3555 = vpop.f32.mrb[0].mxu0
  %v3556 = vadd.f32 0.0, %v3555
  %v3557 = vpop.f32.mrb[0].mxu0
  %v3558 = vpop.f32.mrb[0].mxu0
  %v3559 = vadd.f32 0.0, %v3558
  %v3560 = vpop.f32.mrb[0].mxu0
  %3561 = vmatprep.mubr.bf16.mxu0 0
  %3562 = vmatmul.mubr.bf16.gmra.mrb[0].mxu0 %v3300
  %v3563 = vpop.f32.mrb[0].mxu0
  %v3564 = vadd.f32 0.0, %v3563
  %v3565 = vpop.f32.mrb[0].mxu0
  %v3566 = vpop.f32.mrb[0].mxu0
  %v3567 = vadd.f32 0.0, %v3566
  %v3568 = vpop.f32.mrb[0].mxu0
  %3569 = vmatprep.mubr.bf16.mxu0 0
  %3570 = vmatmul.mubr.bf16.gmra.mrb[0].mxu0 %v3303
  %v3571 = vpop.f32.mrb[0].mxu0
  %v3572 = vadd.f32 0.0, %v3571
  %v3573 = vpop.f32.mrb[0].mxu0
  %v3574 = vpop.f32.mrb[0].mxu0
  %v3575 = vadd.f32 0.0, %v3574
  %v3576 = vpop.f32.mrb[0].mxu0
  %3577 = vmatprep.mubr.bf16.mxu0 0
  %3578 = vmatmul.mubr.bf16.gmra.mrb[0].mxu0 %v3306
  %v3579 = vpop.f32.mrb[0].mxu0
  %v3580 = vadd.f32 0.0, %v3579
  %v3581 = vpop.f32.mrb[0].mxu0
  %v3582 = vpop.f32.mrb[0].mxu0
  %v3583 = vadd.f32 0.0, %v3582
  %v3584 = vpop.f32.mrb[0].mxu0
  %3585 = vmatprep.mubr.bf16.mxu0 0
  %3586 = vmatmul.mubr.bf16.gmra.mrb[0].mxu0 %v3309
  %v3587 = vpop.f32.mrb[0].mxu0
  %v3588 = vadd.f32 0.0, %v3587
  %v3589 = vpop.f32.mrb[0].mxu0
  %v3590 = vpop.f32.mrb[0].mxu0
  %v3591 = vadd.f32 0.0, %v3590
  %v3592 = vpop.f32.mrb[0].mxu0
  %3593 = vmatprep.mubr.bf16.mxu0 0
  %3594 = vmatmul.mubr.bf16.gmra.mrb[0].mxu0 %v3312
  %v3595 = vpop.f32.mrb[0].mxu0
  %v3596 = vadd.f32 0.0, %v3595
  %v3597 = vpop.f32.mrb[0].mxu0
  %v3598 = vpop.f32.mrb[0].mxu0
  %v3599 = vadd.f32 0.0, %v3598
  %v3600 = vpop.f32.mrb[0].mxu0
  %3601 = vmatprep.mubr.bf16.mxu0 0
  %3602 = vmatmul.mubr.bf16.gmra.mrb[0].mxu0 %v3315
  %v3603 = vpop.f32.mrb[0].mxu0
  %v3604 = vadd.f32 0.0, %v3603
  %v3605 = vpop.f32.mrb[0].mxu0
  %v3606 = vpop.f32.mrb[0].mxu0
  %v3607 = vadd.f32 0.0, %v3606
  %v3608 = vpop.f32.mrb[0].mxu0
  %3609 = vmatprep.mubr.bf16.mxu0 0
  %3610 = vmatmul.mubr.bf16.gmra.mrb[0].mxu0 %v3318
  %v3611 = vpop.f32.mrb[0].mxu0
  %v3612 = vadd.f32 0.0, %v3611
  %v3613 = vpop.f32.mrb[0].mxu0
  %v3614 = vpop.f32.mrb[0].mxu0
  %v3615 = vadd.f32 0.0, %v3614
  %v3616 = vpop.f32.mrb[0].mxu0
  %3617 = vmatprep.mubr.bf16.mxu0 0
  %3618 = vmatmul.mubr.bf16.gmra.mrb[0].mxu0 %v3321
  %v3619 = vpop.f32.mrb[0].mxu0
  %v3620 = vadd.f32 0.0, %v3619
  %v3621 = vpop.f32.mrb[0].mxu0
  %v3622 = vpop.f32.mrb[0].mxu0
  %v3623 = vadd.f32 0.0, %v3622
  %v3624 = vpop.f32.mrb[0].mxu0
  %3625 = vmatprep.mubr.bf16.mxu0 0
  %3626 = vmatmul.mubr.bf16.gmra.mrb[0].mxu0 %v3324
  %v3627 = vpop.f32.mrb[0].mxu0
  %v3628 = vadd.f32 0.0, %v3627
  %v3629 = vpop.f32.mrb[0].mxu0
  %v3630 = vpop.f32.mrb[0].mxu0
  %v3631 = vadd.f32 0.0, %v3630
  %v3632 = vpop.f32.mrb[0].mxu0
  %3633 = vmatprep.mubr.bf16.mxu0 0
  %3634 = vmatmul.mubr.bf16.gmra.mrb[0].mxu0 %v3327
  %v3635 = vpop.f32.mrb[0].mxu0
  %v3636 = vadd.f32 0.0, %v3635
  %v3637 = vpop.f32.mrb[0].mxu0
  %v3638 = vpop.f32.mrb[0].mxu0
  %v3639 = vadd.f32 0.0, %v3638
  %v3640 = vpop.f32.mrb[0].mxu0
  %3641 = vmatprep.mubr.bf16.mxu0 0
  %3642 = vmatmul.mubr.bf16.gmra.mrb[0].mxu0 %v3330
  %v3643 = vpop.f32.mrb[0].mxu0
  %v3644 = vadd.f32 0.0, %v3643
  %v3645 = vpop.f32.mrb[0].mxu0
  %v3646 = vpop.f32.mrb[0].mxu0
  %v3647 = vadd.f32 0.0, %v3646
  %v3648 = vpop.f32.mrb[0].mxu0
  %3649 = vmatprep.mubr.bf16.mxu0 0
  %3650 = vmatmul.mubr.bf16.gmra.mrb[0].mxu0 %v3333
  %v3651 = vpop.f32.mrb[0].mxu0
  %v3652 = vadd.f32 0.0, %v3651
  %v3653 = vpop.f32.mrb[0].mxu0
  %v3654 = vpop.f32.mrb[0].mxu0
  %v3655 = vadd.f32 0.0, %v3654
  %v3656 = vpop.f32.mrb[0].mxu0
  %3657 = vmatprep.mubr.bf16.mxu0 0
  %3658 = vmatmul.mubr.bf16.gmra.mrb[0].mxu0 %v3336
  %v3659 = vpop.f32.mrb[0].mxu0
  %v3660 = vadd.f32 0.0, %v3659
  %v3661 = vpop.f32.mrb[0].mxu0
  %v3662 = vpop.f32.mrb[0].mxu0
  %v3663 = vadd.f32 0.0, %v3662
  %v3664 = vpop.f32.mrb[0].mxu0
  %3665 = vmatprep.mubr.bf16.mxu0 0
  %3666 = vmatmul.mubr.bf16.gmra.mrb[0].mxu0 %v3339
  %v3667 = vpop.f32.mrb[0].mxu0
  %v3668 = vadd.f32 0.0, %v3667
  %v3669 = vpop.f32.mrb[0].mxu0
  %v3670 = vpop.f32.mrb[0].mxu0
  %v3671 = vadd.f32 0.0, %v3670
  %v3672 = vpop.f32.mrb[0].mxu0
  %3673 = vmatprep.mubr.bf16.mxu0 0
  %3674 = vmatmul.mubr.bf16.gmra.mrb[0].mxu0 %v3342
  %v3675 = vpop.f32.mrb[0].mxu0
  %v3676 = vadd.f32 0.0, %v3675
  %v3677 = vpop.f32.mrb[0].mxu0
  %v3678 = vpop.f32.mrb[0].mxu0
  %v3679 = vadd.f32 0.0, %v3678
  %v3680 = vpop.f32.mrb[0].mxu0
  %3681 = vmatprep.mubr.bf16.mxu0 0
  %3682 = vmatmul.mubr.bf16.gmra.mrb[0].mxu0 %v3345
  %v3683 = vpop.f32.mrb[0].mxu0
  %v3684 = vadd.f32 0.0, %v3683
  %v3685 = vpop.f32.mrb[0].mxu0
  %v3686 = vpop.f32.mrb[0].mxu0
  %v3687 = vadd.f32 0.0, %v3686
  %v3688 = vpop.f32.mrb[0].mxu0
  %3689 = vmatprep.mubr.bf16.mxu0 0
  %3690 = vmatmul.mubr.bf16.gmra.mrb[0].mxu0 %v3348
  %v3691 = vpop.f32.mrb[0].mxu0
  %v3692 = vadd.f32 0.0, %v3691
  %v3693 = vpop.f32.mrb[0].mxu0
  %v3694 = vpop.f32.mrb[0].mxu0
  %v3695 = vpop.f32.mrb[0].mxu0
  %3696 = vdwg.mxu0
  %v3697 = vadd.f32 %v3076, %v3388
  %v3698 = vadd.f32 %v3077, %v3391
  %v3699 = vadd.f32 %v3078, %v3396
  %v3700 = vadd.f32 %v3079, %v3399
  %v3701 = vadd.f32 %v3080, %v3404
  %v3702 = vadd.f32 %v3081, %v3407
  %v3703 = vadd.f32 %v3082, %v3412
  %v3704 = vadd.f32 %v3083, %v3415
  %v3705 = vadd.f32 %v3084, %v3420
  %v3706 = vadd.f32 %v3085, %v3423
  %v3707 = vadd.f32 %v3086, %v3428
  %v3708 = vadd.f32 %v3087, %v3431
  %v3709 = vadd.f32 %v3088, %v3436
  %v3710 = vadd.f32 %v3089, %v3439
  %v3711 = vadd.f32 %v3090, %v3444
  %v3712 = vadd.f32 %v3091, %v3447
  %v3713 = vadd.f32 %v3092, %v3452
  %v3714 = vadd.f32 %v3093, %v3455
  %v3715 = vadd.f32 %v3094, %v3460
  %v3716 = vadd.f32 %v3095, %v3463
  %v3717 = vadd.f32 %v3096, %v3468
  %v3718 = vadd.f32 %v3097, %v3471
  %v3719 = vadd.f32 %v3098, %v3476
  %v3720 = vadd.f32 %v3099, %v3479
  %v3721 = vadd.f32 %v3100, %v3484
  %v3722 = vadd.f32 %v3101, %v3487
  %v3723 = vadd.f32 %v3102, %v3492
  %v3724 = vadd.f32 %v3103, %v3495
  %v3725 = vadd.f32 %v3104, %v3500
  %v3726 = vadd.f32 %v3105, %v3503
  %v3727 = vadd.f32 %v3106, %v3508
  %v3728 = vadd.f32 %v3107, %v3511
  %v3729 = vadd.f32 %v3108, %v3516
  %v3730 = vadd.f32 %v3109, %v3519
  %v3731 = vadd.f32 %v3110, %v3524
  %v3732 = vadd.f32 %v3111, %v3527
  %v3733 = vadd.f32 %v3112, %v3532
  %v3734 = vadd.f32 %v3113, %v3535
  %v3735 = vadd.f32 %v3114, %v3540
  %v3736 = vadd.f32 %v3115, %v3543
  %v3737 = vadd.f32 %v3116, %v3548
  %v3738 = vadd.f32 %v3117, %v3551
  %v3739 = vadd.f32 %v3118, %v3556
  %v3740 = vadd.f32 %v3119, %v3559
  %v3741 = vadd.f32 %v3120, %v3564
  %v3742 = vadd.f32 %v3121, %v3567
  %v3743 = vadd.f32 %v3122, %v3572
  %v3744 = vadd.f32 %v3123, %v3575
  %v3745 = vadd.f32 %v3124, %v3580
  %v3746 = vadd.f32 %v3125, %v3583
  %v3747 = vadd.f32 %v3126, %v3588
  %v3748 = vadd.f32 %v3127, %v3591
  %v3749 = vadd.f32 %v3128, %v3596
  %v3750 = vadd.f32 %v3129, %v3599
  %v3751 = vadd.f32 %v3130, %v3604
  %v3752 = vadd.f32 %v3131, %v3607
  %v3753 = vadd.f32 %v3132, %v3612
  %v3754 = vadd.f32 %v3133, %v3615
  %v3755 = vadd.f32 %v3134, %v3620
  %v3756 = vadd.f32 %v3135, %v3623
  %v3757 = vadd.f32 %v3136, %v3628
  %v3758 = vadd.f32 %v3137, %v3631
  %v3759 = vadd.f32 %v3138, %v3636
  %v3760 = vadd.f32 %v3139, %v3639
  %v3761 = vadd.f32 %v3140, %v3644
  %v3762 = vadd.f32 %v3141, %v3647
  %v3763 = vadd.f32 %v3142, %v3652
  %v3764 = vadd.f32 %v3143, %v3655
  %v3765 = vadd.f32 %v3144, %v3660
  %v3766 = vadd.f32 %v3145, %v3663
  %v3767 = vadd.f32 %v3146, %v3668
  %v3768 = vadd.f32 %v3147, %v3671
  %v3769 = vadd.f32 %v3148, %v3676
  %v3770 = vadd.f32 %v3149, %v3679
  %v3771 = vadd.f32 %v3150, %v3684
  %v3772 = vadd.f32 %v3151, %v3687
  %v3773 = vadd.f32 %v3152, %v3692
  %v3774 = vpack.c.bf16 %v105, %v104
  %s3775 = scalar_lea.vmem %s1, 12
  %v3776 = vld [vmem:[%s3775] sm:$0x3]
  %v3778 = vrot.slane %v3774, 2
  %v3779 = vsel %vm3155, %v3231, %v3778
  %v3781 = vsel %vm461, %v3779, 0
  %v3784 = vsel %vm461, %v3778, 0
  %v3787 = vsel %vm579, %v3776, 0
  %3789 = vmatprep.subr.bf16.mxu0 0
  %3790 = vmatpush1.bf16.msra.mxu0 %v3787
  %3791 = vmatprep.subr.bf16.mxu0 0
  %3792 = vmatpush1.bf16.msra.mxu0 0
  %3793 = vmatprep.subr.bf16.mxu0 0
  %3794 = vmatpush1.bf16.msra.mxu0 0
  %3795 = vmatprep.subr.bf16.mxu0 0
  %3796 = vmatpush1.bf16.msra.mxu0 0
  %3797 = vmatprep.subr.bf16.mxu0 0
  %3798 = vmatpush1.bf16.msra.mxu0 0
  %3799 = vmatprep.subr.bf16.mxu0 0
  %3800 = vmatpush1.bf16.msra.mxu0 0
  %3801 = vmatprep.subr.bf16.mxu0 0
  %3802 = vmatpush1.bf16.msra.mxu0 0
  %3803 = vmatprep.subr.bf16.mxu0 0
  %3804 = vmatpush1.bf16.msra.mxu0 0
  %3805 = vmatprep.subr.bf16.mxu0 0
  %3806 = vmatpush1.bf16.msra.mxu0 0
  %3807 = vmatprep.subr.bf16.mxu0 0
  %3808 = vmatpush1.bf16.msra.mxu0 0
  %3809 = vmatprep.subr.bf16.mxu0 0
  %3810 = vmatpush1.bf16.msra.mxu0 0
  %3811 = vmatprep.subr.bf16.mxu0 0
  %3812 = vmatpush1.bf16.msra.mxu0 0
  %3813 = vmatprep.subr.bf16.mxu0 0
  %3814 = vmatpush1.bf16.msra.mxu0 0
  %3815 = vmatprep.subr.bf16.mxu0 0
  %3816 = vmatpush1.bf16.msra.mxu0 0
  %3817 = vmatprep.subr.bf16.mxu0 0
  %3818 = vmatpush1.bf16.msra.mxu0 0
  %3819 = vmatprep.subr.bf16.mxu0 0
  %3820 = vmatpush1.bf16.msra.mxu0 0
  %3821 = vmatprep.mubr.bf16.mxu0 0
  %3822 = vmatmul.mubr.bf16.gmra.mrb[0].mxu0 %v3237
  %v3823 = vpop.f32.mrb[0].mxu0
  %v3824 = vadd.f32 0.0, %v3823
  %v3825 = vpop.f32.mrb[0].mxu0
  %v3826 = vpop.f32.mrb[0].mxu0
  %v3827 = vadd.f32 0.0, %v3826
  %v3828 = vpop.f32.mrb[0].mxu0
  %3829 = vmatprep.mubr.bf16.mxu0 0
  %3830 = vmatmul.mubr.bf16.gmra.mrb[0].mxu0 %v3240
  %v3831 = vpop.f32.mrb[0].mxu0
  %v3832 = vadd.f32 0.0, %v3831
  %v3833 = vpop.f32.mrb[0].mxu0
  %v3834 = vpop.f32.mrb[0].mxu0
  %v3835 = vadd.f32 0.0, %v3834
  %v3836 = vpop.f32.mrb[0].mxu0
  %3837 = vmatprep.mubr.bf16.mxu0 0
  %3838 = vmatmul.mubr.bf16.gmra.mrb[0].mxu0 %v3243
  %v3839 = vpop.f32.mrb[0].mxu0
  %v3840 = vadd.f32 0.0, %v3839
  %v3841 = vpop.f32.mrb[0].mxu0
  %v3842 = vpop.f32.mrb[0].mxu0
  %v3843 = vadd.f32 0.0, %v3842
  %v3844 = vpop.f32.mrb[0].mxu0
  %3845 = vmatprep.mubr.bf16.mxu0 0
  %3846 = vmatmul.mubr.bf16.gmra.mrb[0].mxu0 %v3246
  %v3847 = vpop.f32.mrb[0].mxu0
  %v3848 = vadd.f32 0.0, %v3847
  %v3849 = vpop.f32.mrb[0].mxu0
  %v3850 = vpop.f32.mrb[0].mxu0
  %v3851 = vadd.f32 0.0, %v3850
  %v3852 = vpop.f32.mrb[0].mxu0
  %3853 = vmatprep.mubr.bf16.mxu0 0
  %3854 = vmatmul.mubr.bf16.gmra.mrb[0].mxu0 %v3249
  %v3855 = vpop.f32.mrb[0].mxu0
  %v3856 = vadd.f32 0.0, %v3855
  %v3857 = vpop.f32.mrb[0].mxu0
  %v3858 = vpop.f32.mrb[0].mxu0
  %v3859 = vadd.f32 0.0, %v3858
  %v3860 = vpop.f32.mrb[0].mxu0
  %3861 = vmatprep.mubr.bf16.mxu0 0
  %3862 = vmatmul.mubr.bf16.gmra.mrb[0].mxu0 %v3252
  %v3863 = vpop.f32.mrb[0].mxu0
  %v3864 = vadd.f32 0.0, %v3863
  %v3865 = vpop.f32.mrb[0].mxu0
  %v3866 = vpop.f32.mrb[0].mxu0
  %v3867 = vadd.f32 0.0, %v3866
  %v3868 = vpop.f32.mrb[0].mxu0
  %3869 = vmatprep.mubr.bf16.mxu0 0
  %3870 = vmatmul.mubr.bf16.gmra.mrb[0].mxu0 %v3255
  %v3871 = vpop.f32.mrb[0].mxu0
  %v3872 = vadd.f32 0.0, %v3871
  %v3873 = vpop.f32.mrb[0].mxu0
  %v3874 = vpop.f32.mrb[0].mxu0
  %v3875 = vadd.f32 0.0, %v3874
  %v3876 = vpop.f32.mrb[0].mxu0
  %3877 = vmatprep.mubr.bf16.mxu0 0
  %3878 = vmatmul.mubr.bf16.gmra.mrb[0].mxu0 %v3258
  %v3879 = vpop.f32.mrb[0].mxu0
  %v3880 = vadd.f32 0.0, %v3879
  %v3881 = vpop.f32.mrb[0].mxu0
  %v3882 = vpop.f32.mrb[0].mxu0
  %v3883 = vadd.f32 0.0, %v3882
  %v3884 = vpop.f32.mrb[0].mxu0
  %3885 = vmatprep.mubr.bf16.mxu0 0
  %3886 = vmatmul.mubr.bf16.gmra.mrb[0].mxu0 %v3261
  %v3887 = vpop.f32.mrb[0].mxu0
  %v3888 = vadd.f32 0.0, %v3887
  %v3889 = vpop.f32.mrb[0].mxu0
  %v3890 = vpop.f32.mrb[0].mxu0
  %v3891 = vadd.f32 0.0, %v3890
  %v3892 = vpop.f32.mrb[0].mxu0
  %3893 = vmatprep.mubr.bf16.mxu0 0
  %3894 = vmatmul.mubr.bf16.gmra.mrb[0].mxu0 %v3264
  %v3895 = vpop.f32.mrb[0].mxu0
  %v3896 = vadd.f32 0.0, %v3895
  %v3897 = vpop.f32.mrb[0].mxu0
  %v3898 = vpop.f32.mrb[0].mxu0
  %v3899 = vadd.f32 0.0, %v3898
  %v3900 = vpop.f32.mrb[0].mxu0
  %3901 = vmatprep.mubr.bf16.mxu0 0
  %3902 = vmatmul.mubr.bf16.gmra.mrb[0].mxu0 %v3267
  %v3903 = vpop.f32.mrb[0].mxu0
  %v3904 = vadd.f32 0.0, %v3903
  %v3905 = vpop.f32.mrb[0].mxu0
  %v3906 = vpop.f32.mrb[0].mxu0
  %v3907 = vadd.f32 0.0, %v3906
  %v3908 = vpop.f32.mrb[0].mxu0
  %3909 = vmatprep.mubr.bf16.mxu0 0
  %3910 = vmatmul.mubr.bf16.gmra.mrb[0].mxu0 %v3270
  %v3911 = vpop.f32.mrb[0].mxu0
  %v3912 = vadd.f32 0.0, %v3911
  %v3913 = vpop.f32.mrb[0].mxu0
  %v3914 = vpop.f32.mrb[0].mxu0
  %v3915 = vadd.f32 0.0, %v3914
  %v3916 = vpop.f32.mrb[0].mxu0
  %3917 = vmatprep.mubr.bf16.mxu0 0
  %3918 = vmatmul.mubr.bf16.gmra.mrb[0].mxu0 %v3273
  %v3919 = vpop.f32.mrb[0].mxu0
  %v3920 = vadd.f32 0.0, %v3919
  %v3921 = vpop.f32.mrb[0].mxu0
  %v3922 = vpop.f32.mrb[0].mxu0
  %v3923 = vadd.f32 0.0, %v3922
  %v3924 = vpop.f32.mrb[0].mxu0
  %3925 = vmatprep.mubr.bf16.mxu0 0
  %3926 = vmatmul.mubr.bf16.gmra.mrb[0].mxu0 %v3276
  %v3927 = vpop.f32.mrb[0].mxu0
  %v3928 = vadd.f32 0.0, %v3927
  %v3929 = vpop.f32.mrb[0].mxu0
  %v3930 = vpop.f32.mrb[0].mxu0
  %v3931 = vadd.f32 0.0, %v3930
  %v3932 = vpop.f32.mrb[0].mxu0
  %3933 = vmatprep.mubr.bf16.mxu0 0
  %3934 = vmatmul.mubr.bf16.gmra.mrb[0].mxu0 %v3279
  %v3935 = vpop.f32.mrb[0].mxu0
  %v3936 = vadd.f32 0.0, %v3935
  %v3937 = vpop.f32.mrb[0].mxu0
  %v3938 = vpop.f32.mrb[0].mxu0
  %v3939 = vadd.f32 0.0, %v3938
  %v3940 = vpop.f32.mrb[0].mxu0
  %3941 = vmatprep.mubr.bf16.mxu0 0
  %3942 = vmatmul.mubr.bf16.gmra.mrb[0].mxu0 %v3282
  %v3943 = vpop.f32.mrb[0].mxu0
  %v3944 = vadd.f32 0.0, %v3943
  %v3945 = vpop.f32.mrb[0].mxu0
  %v3946 = vpop.f32.mrb[0].mxu0
  %v3947 = vadd.f32 0.0, %v3946
  %v3948 = vpop.f32.mrb[0].mxu0
  %3949 = vmatprep.mubr.bf16.mxu0 0
  %3950 = vmatmul.mubr.bf16.gmra.mrb[0].mxu0 %v3285
  %v3951 = vpop.f32.mrb[0].mxu0
  %v3952 = vadd.f32 0.0, %v3951
  %v3953 = vpop.f32.mrb[0].mxu0
  %v3954 = vpop.f32.mrb[0].mxu0
  %v3955 = vadd.f32 0.0, %v3954
  %v3956 = vpop.f32.mrb[0].mxu0
  %3957 = vmatprep.mubr.bf16.mxu0 0
  %3958 = vmatmul.mubr.bf16.gmra.mrb[0].mxu0 %v3288
  %v3959 = vpop.f32.mrb[0].mxu0
  %v3960 = vadd.f32 0.0, %v3959
  %v3961 = vpop.f32.mrb[0].mxu0
  %v3962 = vpop.f32.mrb[0].mxu0
  %v3963 = vadd.f32 0.0, %v3962
  %v3964 = vpop.f32.mrb[0].mxu0
  %3965 = vmatprep.mubr.bf16.mxu0 0
  %3966 = vmatmul.mubr.bf16.gmra.mrb[0].mxu0 %v3291
  %v3967 = vpop.f32.mrb[0].mxu0
  %v3968 = vadd.f32 0.0, %v3967
  %v3969 = vpop.f32.mrb[0].mxu0
  %v3970 = vpop.f32.mrb[0].mxu0
  %v3971 = vadd.f32 0.0, %v3970
  %v3972 = vpop.f32.mrb[0].mxu0
  %3973 = vmatprep.mubr.bf16.mxu0 0
  %3974 = vmatmul.mubr.bf16.gmra.mrb[0].mxu0 %v3294
  %v3975 = vpop.f32.mrb[0].mxu0
  %v3976 = vadd.f32 0.0, %v3975
  %v3977 = vpop.f32.mrb[0].mxu0
  %v3978 = vpop.f32.mrb[0].mxu0
  %v3979 = vadd.f32 0.0, %v3978
  %v3980 = vpop.f32.mrb[0].mxu0
  %3981 = vmatprep.mubr.bf16.mxu0 0
  %3982 = vmatmul.mubr.bf16.gmra.mrb[0].mxu0 %v3297
  %v3983 = vpop.f32.mrb[0].mxu0
  %v3984 = vadd.f32 0.0, %v3983
  %v3985 = vpop.f32.mrb[0].mxu0
  %v3986 = vpop.f32.mrb[0].mxu0
  %v3987 = vadd.f32 0.0, %v3986
  %v3988 = vpop.f32.mrb[0].mxu0
  %3989 = vmatprep.mubr.bf16.mxu0 0
  %3990 = vmatmul.mubr.bf16.gmra.mrb[0].mxu0 %v3300
  %v3991 = vpop.f32.mrb[0].mxu0
  %v3992 = vadd.f32 0.0, %v3991
  %v3993 = vpop.f32.mrb[0].mxu0
  %v3994 = vpop.f32.mrb[0].mxu0
  %v3995 = vadd.f32 0.0, %v3994
  %v3996 = vpop.f32.mrb[0].mxu0
  %3997 = vmatprep.mubr.bf16.mxu0 0
  %3998 = vmatmul.mubr.bf16.gmra.mrb[0].mxu0 %v3303
  %v3999 = vpop.f32.mrb[0].mxu0
  %v4000 = vadd.f32 0.0, %v3999
  %v4001 = vpop.f32.mrb[0].mxu0
  %v4002 = vpop.f32.mrb[0].mxu0
  %v4003 = vadd.f32 0.0, %v4002
  %v4004 = vpop.f32.mrb[0].mxu0
  %4005 = vmatprep.mubr.bf16.mxu0 0
  %4006 = vmatmul.mubr.bf16.gmra.mrb[0].mxu0 %v3306
  %v4007 = vpop.f32.mrb[0].mxu0
  %v4008 = vadd.f32 0.0, %v4007
  %v4009 = vpop.f32.mrb[0].mxu0
  %v4010 = vpop.f32.mrb[0].mxu0
  %v4011 = vadd.f32 0.0, %v4010
  %v4012 = vpop.f32.mrb[0].mxu0
  %4013 = vmatprep.mubr.bf16.mxu0 0
  %4014 = vmatmul.mubr.bf16.gmra.mrb[0].mxu0 %v3309
  %v4015 = vpop.f32.mrb[0].mxu0
  %v4016 = vadd.f32 0.0, %v4015
  %v4017 = vpop.f32.mrb[0].mxu0
  %v4018 = vpop.f32.mrb[0].mxu0
  %v4019 = vadd.f32 0.0, %v4018
  %v4020 = vpop.f32.mrb[0].mxu0
  %4021 = vmatprep.mubr.bf16.mxu0 0
  %4022 = vmatmul.mubr.bf16.gmra.mrb[0].mxu0 %v3312
  %v4023 = vpop.f32.mrb[0].mxu0
  %v4024 = vadd.f32 0.0, %v4023
  %v4025 = vpop.f32.mrb[0].mxu0
  %v4026 = vpop.f32.mrb[0].mxu0
  %v4027 = vadd.f32 0.0, %v4026
  %v4028 = vpop.f32.mrb[0].mxu0
  %4029 = vmatprep.mubr.bf16.mxu0 0
  %4030 = vmatmul.mubr.bf16.gmra.mrb[0].mxu0 %v3315
  %v4031 = vpop.f32.mrb[0].mxu0
  %v4032 = vadd.f32 0.0, %v4031
  %v4033 = vpop.f32.mrb[0].mxu0
  %v4034 = vpop.f32.mrb[0].mxu0
  %v4035 = vadd.f32 0.0, %v4034
  %v4036 = vpop.f32.mrb[0].mxu0
  %4037 = vmatprep.mubr.bf16.mxu0 0
  %4038 = vmatmul.mubr.bf16.gmra.mrb[0].mxu0 %v3318
  %v4039 = vpop.f32.mrb[0].mxu0
  %v4040 = vadd.f32 0.0, %v4039
  %v4041 = vpop.f32.mrb[0].mxu0
  %v4042 = vpop.f32.mrb[0].mxu0
  %v4043 = vadd.f32 0.0, %v4042
  %v4044 = vpop.f32.mrb[0].mxu0
  %4045 = vmatprep.mubr.bf16.mxu0 0
  %4046 = vmatmul.mubr.bf16.gmra.mrb[0].mxu0 %v3321
  %v4047 = vpop.f32.mrb[0].mxu0
  %v4048 = vadd.f32 0.0, %v4047
  %v4049 = vpop.f32.mrb[0].mxu0
  %v4050 = vpop.f32.mrb[0].mxu0
  %v4051 = vadd.f32 0.0, %v4050
  %v4052 = vpop.f32.mrb[0].mxu0
  %4053 = vmatprep.mubr.bf16.mxu0 0
  %4054 = vmatmul.mubr.bf16.gmra.mrb[0].mxu0 %v3324
  %v4055 = vpop.f32.mrb[0].mxu0
  %v4056 = vadd.f32 0.0, %v4055
  %v4057 = vpop.f32.mrb[0].mxu0
  %v4058 = vpop.f32.mrb[0].mxu0
  %v4059 = vadd.f32 0.0, %v4058
  %v4060 = vpop.f32.mrb[0].mxu0
  %4061 = vmatprep.mubr.bf16.mxu0 0
  %4062 = vmatmul.mubr.bf16.gmra.mrb[0].mxu0 %v3327
  %v4063 = vpop.f32.mrb[0].mxu0
  %v4064 = vadd.f32 0.0, %v4063
  %v4065 = vpop.f32.mrb[0].mxu0
  %v4066 = vpop.f32.mrb[0].mxu0
  %v4067 = vadd.f32 0.0, %v4066
  %v4068 = vpop.f32.mrb[0].mxu0
  %4069 = vmatprep.mubr.bf16.mxu0 0
  %4070 = vmatmul.mubr.bf16.gmra.mrb[0].mxu0 %v3330
  %v4071 = vpop.f32.mrb[0].mxu0
  %v4072 = vadd.f32 0.0, %v4071
  %v4073 = vpop.f32.mrb[0].mxu0
  %v4074 = vpop.f32.mrb[0].mxu0
  %v4075 = vadd.f32 0.0, %v4074
  %v4076 = vpop.f32.mrb[0].mxu0
  %4077 = vmatprep.mubr.bf16.mxu0 0
  %4078 = vmatmul.mubr.bf16.gmra.mrb[0].mxu0 %v3333
  %v4079 = vpop.f32.mrb[0].mxu0
  %v4080 = vadd.f32 0.0, %v4079
  %v4081 = vpop.f32.mrb[0].mxu0
  %v4082 = vpop.f32.mrb[0].mxu0
  %v4083 = vadd.f32 0.0, %v4082
  %v4084 = vpop.f32.mrb[0].mxu0
  %4085 = vmatprep.mubr.bf16.mxu0 0
  %4086 = vmatmul.mubr.bf16.gmra.mrb[0].mxu0 %v3336
  %v4087 = vpop.f32.mrb[0].mxu0
  %v4088 = vadd.f32 0.0, %v4087
  %v4089 = vpop.f32.mrb[0].mxu0
  %v4090 = vpop.f32.mrb[0].mxu0
  %v4091 = vadd.f32 0.0, %v4090
  %v4092 = vpop.f32.mrb[0].mxu0
  %4093 = vmatprep.mubr.bf16.mxu0 0
  %4094 = vmatmul.mubr.bf16.gmra.mrb[0].mxu0 %v3339
  %v4095 = vpop.f32.mrb[0].mxu0
  %v4096 = vadd.f32 0.0, %v4095
  %v4097 = vpop.f32.mrb[0].mxu0
  %v4098 = vpop.f32.mrb[0].mxu0
  %v4099 = vadd.f32 0.0, %v4098
  %v4100 = vpop.f32.mrb[0].mxu0
  %4101 = vmatprep.mubr.bf16.mxu0 0
  %4102 = vmatmul.mubr.bf16.gmra.mrb[0].mxu0 %v3342
  %v4103 = vpop.f32.mrb[0].mxu0
  %v4104 = vadd.f32 0.0, %v4103
  %v4105 = vpop.f32.mrb[0].mxu0
  %v4106 = vpop.f32.mrb[0].mxu0
  %v4107 = vadd.f32 0.0, %v4106
  %v4108 = vpop.f32.mrb[0].mxu0
  %4109 = vmatprep.mubr.bf16.mxu0 0
  %4110 = vmatmul.mubr.bf16.gmra.mrb[0].mxu0 %v3345
  %v4111 = vpop.f32.mrb[0].mxu0
  %v4112 = vadd.f32 0.0, %v4111
  %v4113 = vpop.f32.mrb[0].mxu0
  %v4114 = vpop.f32.mrb[0].mxu0
  %v4115 = vadd.f32 0.0, %v4114
  %v4116 = vpop.f32.mrb[0].mxu0
  %4117 = vmatprep.mubr.bf16.mxu0 0
  %4118 = vmatmul.mubr.bf16.gmra.mrb[0].mxu0 %v3781
  %v4119 = vpop.f32.mrb[0].mxu0
  %v4120 = vadd.f32 0.0, %v4119
  %v4121 = vpop.f32.mrb[0].mxu0
  %v4122 = vpop.f32.mrb[0].mxu0
  %v4123 = vadd.f32 0.0, %v4122
  %v4124 = vpop.f32.mrb[0].mxu0
  %4125 = vmatprep.mubr.bf16.mxu0 0
  %4126 = vmatmul.mubr.bf16.gmra.mrb[0].mxu0 %v3784
  %v4127 = vpop.f32.mrb[0].mxu0
  %v4128 = vadd.f32 0.0, %v4127
  %v4129 = vpop.f32.mrb[0].mxu0
  %v4130 = vpop.f32.mrb[0].mxu0
  %v4131 = vpop.f32.mrb[0].mxu0
  %4132 = vdwg.mxu0
  %v4133 = vadd.f32 %v3697, %v3824
  %v4134 = vadd.f32 %v3698, %v3827
  %v4135 = vadd.f32 %v3699, %v3832
  %v4136 = vadd.f32 %v3700, %v3835
  %v4137 = vadd.f32 %v3701, %v3840
  %v4138 = vadd.f32 %v3702, %v3843
  %v4139 = vadd.f32 %v3703, %v3848
  %v4140 = vadd.f32 %v3704, %v3851
  %v4141 = vadd.f32 %v3705, %v3856
  %v4142 = vadd.f32 %v3706, %v3859
  %v4143 = vadd.f32 %v3707, %v3864
  %v4144 = vadd.f32 %v3708, %v3867
  %v4145 = vadd.f32 %v3709, %v3872
  %v4146 = vadd.f32 %v3710, %v3875
  %v4147 = vadd.f32 %v3711, %v3880
  %v4148 = vadd.f32 %v3712, %v3883
  %v4149 = vadd.f32 %v3713, %v3888
  %v4150 = vadd.f32 %v3714, %v3891
  %v4151 = vadd.f32 %v3715, %v3896
  %v4152 = vadd.f32 %v3716, %v3899
  %v4153 = vadd.f32 %v3717, %v3904
  %v4154 = vadd.f32 %v3718, %v3907
  %v4155 = vadd.f32 %v3719, %v3912
  %v4156 = vadd.f32 %v3720, %v3915
  %v4157 = vadd.f32 %v3721, %v3920
  %v4158 = vadd.f32 %v3722, %v3923
  %v4159 = vadd.f32 %v3723, %v3928
  %v4160 = vadd.f32 %v3724, %v3931
  %v4161 = vadd.f32 %v3725, %v3936
  %v4162 = vadd.f32 %v3726, %v3939
  %v4163 = vadd.f32 %v3727, %v3944
  %v4164 = vadd.f32 %v3728, %v3947
  %v4165 = vadd.f32 %v3729, %v3952
  %v4166 = vadd.f32 %v3730, %v3955
  %v4167 = vadd.f32 %v3731, %v3960
  %v4168 = vadd.f32 %v3732, %v3963
  %v4169 = vadd.f32 %v3733, %v3968
  %v4170 = vadd.f32 %v3734, %v3971
  %v4171 = vadd.f32 %v3735, %v3976
  %v4172 = vadd.f32 %v3736, %v3979
  %v4173 = vadd.f32 %v3737, %v3984
  %v4174 = vadd.f32 %v3738, %v3987
  %v4175 = vadd.f32 %v3739, %v3992
  %v4176 = vadd.f32 %v3740, %v3995
  %v4177 = vadd.f32 %v3741, %v4000
  %v4178 = vadd.f32 %v3742, %v4003
  %v4179 = vadd.f32 %v3743, %v4008
  %v4180 = vadd.f32 %v3744, %v4011
  %v4181 = vadd.f32 %v3745, %v4016
  %v4182 = vadd.f32 %v3746, %v4019
  %v4183 = vadd.f32 %v3747, %v4024
  %v4184 = vadd.f32 %v3748, %v4027
  %v4185 = vadd.f32 %v3749, %v4032
  %v4186 = vadd.f32 %v3750, %v4035
  %v4187 = vadd.f32 %v3751, %v4040
  %v4188 = vadd.f32 %v3752, %v4043
  %v4189 = vadd.f32 %v3753, %v4048
  %v4190 = vadd.f32 %v3754, %v4051
  %v4191 = vadd.f32 %v3755, %v4056
  %v4192 = vadd.f32 %v3756, %v4059
  %v4193 = vadd.f32 %v3757, %v4064
  %v4194 = vadd.f32 %v3758, %v4067
  %v4195 = vadd.f32 %v3759, %v4072
  %v4196 = vadd.f32 %v3760, %v4075
  %v4197 = vadd.f32 %v3761, %v4080
  %v4198 = vadd.f32 %v3762, %v4083
  %v4199 = vadd.f32 %v3763, %v4088
  %v4200 = vadd.f32 %v3764, %v4091
  %v4201 = vadd.f32 %v3765, %v4096
  %v4202 = vadd.f32 %v3766, %v4099
  %v4203 = vadd.f32 %v3767, %v4104
  %v4204 = vadd.f32 %v3768, %v4107
  %v4205 = vadd.f32 %v3769, %v4112
  %v4206 = vadd.f32 %v3770, %v4115
  %v4207 = vadd.f32 %v3771, %v4120
  %v4208 = vadd.f32 %v3772, %v4123
  %v4209 = vadd.f32 %v3773, %v4128
  %s4210 = scalar_lea.vmem %s1, 14
  %v4211 = vld [vmem:[%s4210] sm:$0x3]
  %vm4212 = vsmask.f32 5376
  %v4213 = vrot.slane %v170, 2
  %v4214 = vrot.slane %v166, 3
  %v4215 = vor.u32 %v4213, %v4214
  %v4216 = vrot.slane %v178, 2
  %v4217 = vrot.slane %v174, 3
  %v4218 = vor.u32 %v4216, %v4217
  %v4219 = vsel %vm4212, %v4215, %v4218
  %v4220 = vrot.slane %v186, 2
  %v4221 = vrot.slane %v182, 3
  %v4222 = vor.u32 %v4220, %v4221
  %v4223 = vsel %vm4212, %v4218, %v4222
  %v4224 = vrot.slane %v194, 2
  %v4225 = vrot.slane %v190, 3
  %v4226 = vor.u32 %v4224, %v4225
  %v4227 = vsel %vm4212, %v4222, %v4226
  %v4228 = vrot.slane %v202, 2
  %v4229 = vrot.slane %v198, 3
  %v4230 = vor.u32 %v4228, %v4229
  %v4231 = vsel %vm4212, %v4226, %v4230
  %v4232 = vrot.slane %v210, 2
  %v4233 = vrot.slane %v206, 3
  %v4234 = vor.u32 %v4232, %v4233
  %v4235 = vsel %vm4212, %v4230, %v4234
  %v4236 = vrot.slane %v218, 2
  %v4237 = vrot.slane %v214, 3
  %v4238 = vor.u32 %v4236, %v4237
  %v4239 = vsel %vm4212, %v4234, %v4238
  %v4240 = vrot.slane %v226, 2
  %v4241 = vrot.slane %v222, 3
  %v4242 = vor.u32 %v4240, %v4241
  %v4243 = vsel %vm4212, %v4238, %v4242
  %v4244 = vrot.slane %v234, 2
  %v4245 = vrot.slane %v230, 3
  %v4246 = vor.u32 %v4244, %v4245
  %v4247 = vsel %vm4212, %v4242, %v4246
  %v4248 = vrot.slane %v242, 2
  %v4249 = vrot.slane %v238, 3
  %v4250 = vor.u32 %v4248, %v4249
  %v4251 = vsel %vm4212, %v4246, %v4250
  %v4252 = vrot.slane %v250, 2
  %v4253 = vrot.slane %v246, 3
  %v4254 = vor.u32 %v4252, %v4253
  %v4255 = vsel %vm4212, %v4250, %v4254
  %v4256 = vrot.slane %v258, 2
  %v4257 = vrot.slane %v254, 3
  %v4258 = vor.u32 %v4256, %v4257
  %v4259 = vsel %vm4212, %v4254, %v4258
  %v4260 = vrot.slane %v266, 2
  %v4261 = vrot.slane %v262, 3
  %v4262 = vor.u32 %v4260, %v4261
  %v4263 = vsel %vm4212, %v4258, %v4262
  %v4264 = vrot.slane %v274, 2
  %v4265 = vrot.slane %v270, 3
  %v4266 = vor.u32 %v4264, %v4265
  %v4267 = vsel %vm4212, %v4262, %v4266
  %v4268 = vrot.slane %v282, 2
  %v4269 = vrot.slane %v278, 3
  %v4270 = vor.u32 %v4268, %v4269
  %v4271 = vsel %vm4212, %v4266, %v4270
  %v4272 = vrot.slane %v290, 2
  %v4273 = vrot.slane %v286, 3
  %v4274 = vor.u32 %v4272, %v4273
  %v4275 = vsel %vm4212, %v4270, %v4274
  %v4276 = vrot.slane %v298, 2
  %v4277 = vrot.slane %v294, 3
  %v4278 = vor.u32 %v4276, %v4277
  %v4279 = vsel %vm4212, %v4274, %v4278
  %v4280 = vrot.slane %v306, 2
  %v4281 = vrot.slane %v302, 3
  %v4282 = vor.u32 %v4280, %v4281
  %v4283 = vsel %vm4212, %v4278, %v4282
  %v4284 = vrot.slane %v314, 2
  %v4285 = vrot.slane %v310, 3
  %v4286 = vor.u32 %v4284, %v4285
  %v4287 = vsel %vm4212, %v4282, %v4286
  %v4288 = vrot.slane %v322, 2
  %v4289 = vrot.slane %v318, 3
  %v4290 = vor.u32 %v4288, %v4289
  %v4291 = vsel %vm4212, %v4286, %v4290
  %v4292 = vrot.slane %v330, 2
  %v4293 = vrot.slane %v326, 3
  %v4294 = vor.u32 %v4292, %v4293
  %v4295 = vsel %vm4212, %v4290, %v4294
  %v4296 = vrot.slane %v338, 2
  %v4297 = vrot.slane %v334, 3
  %v4298 = vor.u32 %v4296, %v4297
  %v4299 = vsel %vm4212, %v4294, %v4298
  %v4300 = vrot.slane %v346, 2
  %v4301 = vrot.slane %v342, 3
  %v4302 = vor.u32 %v4300, %v4301
  %v4303 = vsel %vm4212, %v4298, %v4302
  %v4304 = vrot.slane %v354, 2
  %v4305 = vrot.slane %v350, 3
  %v4306 = vor.u32 %v4304, %v4305
  %v4307 = vsel %vm4212, %v4302, %v4306
  %v4308 = vrot.slane %v362, 2
  %v4309 = vrot.slane %v358, 3
  %v4310 = vor.u32 %v4308, %v4309
  %v4311 = vsel %vm4212, %v4306, %v4310
  %v4312 = vrot.slane %v370, 2
  %v4313 = vrot.slane %v366, 3
  %v4314 = vor.u32 %v4312, %v4313
  %v4315 = vsel %vm4212, %v4310, %v4314
  %v4316 = vrot.slane %v378, 2
  %v4317 = vrot.slane %v374, 3
  %v4318 = vor.u32 %v4316, %v4317
  %v4319 = vsel %vm4212, %v4314, %v4318
  %v4320 = vrot.slane %v386, 2
  %v4321 = vrot.slane %v382, 3
  %v4322 = vor.u32 %v4320, %v4321
  %v4323 = vsel %vm4212, %v4318, %v4322
  %v4324 = vrot.slane %v394, 2
  %v4325 = vrot.slane %v390, 3
  %v4326 = vor.u32 %v4324, %v4325
  %v4327 = vsel %vm4212, %v4322, %v4326
  %v4328 = vrot.slane %v402, 2
  %v4329 = vrot.slane %v398, 3
  %v4330 = vor.u32 %v4328, %v4329
  %v4331 = vsel %vm4212, %v4326, %v4330
  %v4332 = vrot.slane %v410, 2
  %v4333 = vrot.slane %v406, 3
  %v4334 = vor.u32 %v4332, %v4333
  %v4335 = vsel %vm4212, %v4330, %v4334
  %v4336 = vrot.slane %v418, 2
  %v4337 = vrot.slane %v414, 3
  %v4338 = vor.u32 %v4336, %v4337
  %v4339 = vsel %vm4212, %v4334, %v4338
  %v4340 = vrot.slane %v426, 2
  %v4341 = vrot.slane %v422, 3
  %v4342 = vor.u32 %v4340, %v4341
  %v4343 = vsel %vm4212, %v4338, %v4342
  %v4344 = vrot.slane %v434, 2
  %v4345 = vrot.slane %v430, 3
  %v4346 = vor.u32 %v4344, %v4345
  %v4347 = vsel %vm4212, %v4342, %v4346
  %v4348 = vrot.slane %v442, 2
  %v4349 = vrot.slane %v438, 3
  %v4350 = vor.u32 %v4348, %v4349
  %v4351 = vsel %vm4212, %v4346, %v4350
  %v4352 = vrot.slane %v450, 2
  %v4353 = vrot.slane %v446, 3
  %v4354 = vor.u32 %v4352, %v4353
  %v4355 = vsel %vm4212, %v4350, %v4354
  %v4356 = vrot.slane %v458, 2
  %v4357 = vrot.slane %v454, 3
  %v4358 = vor.u32 %v4356, %v4357
  %v4359 = vsel %vm4212, %v4354, %v4358
  %v4360 = vrot.slane %v2604, 2
  %v4361 = vrot.slane %v2607, 3
  %v4362 = vor.u32 %v4360, %v4361
  %v4363 = vsel %vm4212, %v4358, %v4362
  %v4365 = vshrl.u32 %v3774, 16
  %v4367 = vrot.slane %v4365, 2
  %v4368 = vshll.u32 %v3774, 16
  %v4370 = vrot.slane %v4368, 3
  %v4371 = vor.u32 %v4367, %v4370
  %v4372 = vsel %vm4212, %v4362, %v4371
  %v4374 = vsel %vm461, %v4219, 0
  %v4377 = vsel %vm461, %v4223, 0
  %v4380 = vsel %vm461, %v4227, 0
  %v4383 = vsel %vm461, %v4231, 0
  %v4386 = vsel %vm461, %v4235, 0
  %v4389 = vsel %vm461, %v4239, 0
  %v4392 = vsel %vm461, %v4243, 0
  %v4395 = vsel %vm461, %v4247, 0
  %v4398 = vsel %vm461, %v4251, 0
  %v4401 = vsel %vm461, %v4255, 0
  %v4404 = vsel %vm461, %v4259, 0
  %v4407 = vsel %vm461, %v4263, 0
  %v4410 = vsel %vm461, %v4267, 0
  %v4413 = vsel %vm461, %v4271, 0
  %v4416 = vsel %vm461, %v4275, 0
  %v4419 = vsel %vm461, %v4279, 0
  %v4422 = vsel %vm461, %v4283, 0
  %v4425 = vsel %vm461, %v4287, 0
  %v4428 = vsel %vm461, %v4291, 0
  %v4431 = vsel %vm461, %v4295, 0
  %v4434 = vsel %vm461, %v4299, 0
  %v4437 = vsel %vm461, %v4303, 0
  %v4440 = vsel %vm461, %v4307, 0
  %v4443 = vsel %vm461, %v4311, 0
  %v4446 = vsel %vm461, %v4315, 0
  %v4449 = vsel %vm461, %v4319, 0
  %v4452 = vsel %vm461, %v4323, 0
  %v4455 = vsel %vm461, %v4327, 0
  %v4458 = vsel %vm461, %v4331, 0
  %v4461 = vsel %vm461, %v4335, 0
  %v4464 = vsel %vm461, %v4339, 0
  %v4467 = vsel %vm461, %v4343, 0
  %v4470 = vsel %vm461, %v4347, 0
  %v4473 = vsel %vm461, %v4351, 0
  %v4476 = vsel %vm461, %v4355, 0
  %v4479 = vsel %vm461, %v4359, 0
  %v4482 = vsel %vm461, %v4363, 0
  %v4485 = vsel %vm461, %v4372, 0
  %v4488 = vsel %vm461, %v4371, 0
  %v4491 = vsel %vm579, %v4211, 0
  %4493 = vmatprep.subr.bf16.mxu0 0
  %4494 = vmatpush1.bf16.msra.mxu0 %v4491
  %4495 = vmatprep.subr.bf16.mxu0 0
  %4496 = vmatpush1.bf16.msra.mxu0 0
  %4497 = vmatprep.subr.bf16.mxu0 0
  %4498 = vmatpush1.bf16.msra.mxu0 0
  %4499 = vmatprep.subr.bf16.mxu0 0
  %4500 = vmatpush1.bf16.msra.mxu0 0
  %4501 = vmatprep.subr.bf16.mxu0 0
  %4502 = vmatpush1.bf16.msra.mxu0 0
  %4503 = vmatprep.subr.bf16.mxu0 0
  %4504 = vmatpush1.bf16.msra.mxu0 0
  %4505 = vmatprep.subr.bf16.mxu0 0
  %4506 = vmatpush1.bf16.msra.mxu0 0
  %4507 = vmatprep.subr.bf16.mxu0 0
  %4508 = vmatpush1.bf16.msra.mxu0 0
  %4509 = vmatprep.subr.bf16.mxu0 0
  %4510 = vmatpush1.bf16.msra.mxu0 0
  %4511 = vmatprep.subr.bf16.mxu0 0
  %4512 = vmatpush1.bf16.msra.mxu0 0
  %4513 = vmatprep.subr.bf16.mxu0 0
  %4514 = vmatpush1.bf16.msra.mxu0 0
  %4515 = vmatprep.subr.bf16.mxu0 0
  %4516 = vmatpush1.bf16.msra.mxu0 0
  %4517 = vmatprep.subr.bf16.mxu0 0
  %4518 = vmatpush1.bf16.msra.mxu0 0
  %4519 = vmatprep.subr.bf16.mxu0 0
  %4520 = vmatpush1.bf16.msra.mxu0 0
  %4521 = vmatprep.subr.bf16.mxu0 0
  %4522 = vmatpush1.bf16.msra.mxu0 0
  %4523 = vmatprep.subr.bf16.mxu0 0
  %4524 = vmatpush1.bf16.msra.mxu0 0
  %4525 = vmatprep.mubr.bf16.mxu0 0
  %4526 = vmatmul.mubr.bf16.gmra.mrb[0].mxu0 %v4374
  %v4527 = vpop.f32.mrb[0].mxu0
  %v4528 = vadd.f32 0.0, %v4527
  %v4529 = vpop.f32.mrb[0].mxu0
  %v4530 = vpop.f32.mrb[0].mxu0
  %v4531 = vadd.f32 0.0, %v4530
  %v4532 = vpop.f32.mrb[0].mxu0
  %4533 = vmatprep.mubr.bf16.mxu0 0
  %4534 = vmatmul.mubr.bf16.gmra.mrb[0].mxu0 %v4377
  %v4535 = vpop.f32.mrb[0].mxu0
  %v4536 = vadd.f32 0.0, %v4535
  %v4537 = vpop.f32.mrb[0].mxu0
  %v4538 = vpop.f32.mrb[0].mxu0
  %v4539 = vadd.f32 0.0, %v4538
  %v4540 = vpop.f32.mrb[0].mxu0
  %4541 = vmatprep.mubr.bf16.mxu0 0
  %4542 = vmatmul.mubr.bf16.gmra.mrb[0].mxu0 %v4380
  %v4543 = vpop.f32.mrb[0].mxu0
  %v4544 = vadd.f32 0.0, %v4543
  %v4545 = vpop.f32.mrb[0].mxu0
  %v4546 = vpop.f32.mrb[0].mxu0
  %v4547 = vadd.f32 0.0, %v4546
  %v4548 = vpop.f32.mrb[0].mxu0
  %4549 = vmatprep.mubr.bf16.mxu0 0
  %4550 = vmatmul.mubr.bf16.gmra.mrb[0].mxu0 %v4383
  %v4551 = vpop.f32.mrb[0].mxu0
  %v4552 = vadd.f32 0.0, %v4551
  %v4553 = vpop.f32.mrb[0].mxu0
  %v4554 = vpop.f32.mrb[0].mxu0
  %v4555 = vadd.f32 0.0, %v4554
  %v4556 = vpop.f32.mrb[0].mxu0
  %4557 = vmatprep.mubr.bf16.mxu0 0
  %4558 = vmatmul.mubr.bf16.gmra.mrb[0].mxu0 %v4386
  %v4559 = vpop.f32.mrb[0].mxu0
  %v4560 = vadd.f32 0.0, %v4559
  %v4561 = vpop.f32.mrb[0].mxu0
  %v4562 = vpop.f32.mrb[0].mxu0
  %v4563 = vadd.f32 0.0, %v4562
  %v4564 = vpop.f32.mrb[0].mxu0
  %4565 = vmatprep.mubr.bf16.mxu0 0
  %4566 = vmatmul.mubr.bf16.gmra.mrb[0].mxu0 %v4389
  %v4567 = vpop.f32.mrb[0].mxu0
  %v4568 = vadd.f32 0.0, %v4567
  %v4569 = vpop.f32.mrb[0].mxu0
  %v4570 = vpop.f32.mrb[0].mxu0
  %v4571 = vadd.f32 0.0, %v4570
  %v4572 = vpop.f32.mrb[0].mxu0
  %4573 = vmatprep.mubr.bf16.mxu0 0
  %4574 = vmatmul.mubr.bf16.gmra.mrb[0].mxu0 %v4392
  %v4575 = vpop.f32.mrb[0].mxu0
  %v4576 = vadd.f32 0.0, %v4575
  %v4577 = vpop.f32.mrb[0].mxu0
  %v4578 = vpop.f32.mrb[0].mxu0
  %v4579 = vadd.f32 0.0, %v4578
  %v4580 = vpop.f32.mrb[0].mxu0
  %4581 = vmatprep.mubr.bf16.mxu0 0
  %4582 = vmatmul.mubr.bf16.gmra.mrb[0].mxu0 %v4395
  %v4583 = vpop.f32.mrb[0].mxu0
  %v4584 = vadd.f32 0.0, %v4583
  %v4585 = vpop.f32.mrb[0].mxu0
  %v4586 = vpop.f32.mrb[0].mxu0
  %v4587 = vadd.f32 0.0, %v4586
  %v4588 = vpop.f32.mrb[0].mxu0
  %4589 = vmatprep.mubr.bf16.mxu0 0
  %4590 = vmatmul.mubr.bf16.gmra.mrb[0].mxu0 %v4398
  %v4591 = vpop.f32.mrb[0].mxu0
  %v4592 = vadd.f32 0.0, %v4591
  %v4593 = vpop.f32.mrb[0].mxu0
  %v4594 = vpop.f32.mrb[0].mxu0
  %v4595 = vadd.f32 0.0, %v4594
  %v4596 = vpop.f32.mrb[0].mxu0
  %4597 = vmatprep.mubr.bf16.mxu0 0
  %4598 = vmatmul.mubr.bf16.gmra.mrb[0].mxu0 %v4401
  %v4599 = vpop.f32.mrb[0].mxu0
  %v4600 = vadd.f32 0.0, %v4599
  %v4601 = vpop.f32.mrb[0].mxu0
  %v4602 = vpop.f32.mrb[0].mxu0
  %v4603 = vadd.f32 0.0, %v4602
  %v4604 = vpop.f32.mrb[0].mxu0
  %4605 = vmatprep.mubr.bf16.mxu0 0
  %4606 = vmatmul.mubr.bf16.gmra.mrb[0].mxu0 %v4404
  %v4607 = vpop.f32.mrb[0].mxu0
  %v4608 = vadd.f32 0.0, %v4607
  %v4609 = vpop.f32.mrb[0].mxu0
  %v4610 = vpop.f32.mrb[0].mxu0
  %v4611 = vadd.f32 0.0, %v4610
  %v4612 = vpop.f32.mrb[0].mxu0
  %4613 = vmatprep.mubr.bf16.mxu0 0
  %4614 = vmatmul.mubr.bf16.gmra.mrb[0].mxu0 %v4407
  %v4615 = vpop.f32.mrb[0].mxu0
  %v4616 = vadd.f32 0.0, %v4615
  %v4617 = vpop.f32.mrb[0].mxu0
  %v4618 = vpop.f32.mrb[0].mxu0
  %v4619 = vadd.f32 0.0, %v4618
  %v4620 = vpop.f32.mrb[0].mxu0
  %4621 = vmatprep.mubr.bf16.mxu0 0
  %4622 = vmatmul.mubr.bf16.gmra.mrb[0].mxu0 %v4410
  %v4623 = vpop.f32.mrb[0].mxu0
  %v4624 = vadd.f32 0.0, %v4623
  %v4625 = vpop.f32.mrb[0].mxu0
  %v4626 = vpop.f32.mrb[0].mxu0
  %v4627 = vadd.f32 0.0, %v4626
  %v4628 = vpop.f32.mrb[0].mxu0
  %4629 = vmatprep.mubr.bf16.mxu0 0
  %4630 = vmatmul.mubr.bf16.gmra.mrb[0].mxu0 %v4413
  %v4631 = vpop.f32.mrb[0].mxu0
  %v4632 = vadd.f32 0.0, %v4631
  %v4633 = vpop.f32.mrb[0].mxu0
  %v4634 = vpop.f32.mrb[0].mxu0
  %v4635 = vadd.f32 0.0, %v4634
  %v4636 = vpop.f32.mrb[0].mxu0
  %4637 = vmatprep.mubr.bf16.mxu0 0
  %4638 = vmatmul.mubr.bf16.gmra.mrb[0].mxu0 %v4416
  %v4639 = vpop.f32.mrb[0].mxu0
  %v4640 = vadd.f32 0.0, %v4639
  %v4641 = vpop.f32.mrb[0].mxu0
  %v4642 = vpop.f32.mrb[0].mxu0
  %v4643 = vadd.f32 0.0, %v4642
  %v4644 = vpop.f32.mrb[0].mxu0
  %4645 = vmatprep.mubr.bf16.mxu0 0
  %4646 = vmatmul.mubr.bf16.gmra.mrb[0].mxu0 %v4419
  %v4647 = vpop.f32.mrb[0].mxu0
  %v4648 = vadd.f32 0.0, %v4647
  %v4649 = vpop.f32.mrb[0].mxu0
  %v4650 = vpop.f32.mrb[0].mxu0
  %v4651 = vadd.f32 0.0, %v4650
  %v4652 = vpop.f32.mrb[0].mxu0
  %4653 = vmatprep.mubr.bf16.mxu0 0
  %4654 = vmatmul.mubr.bf16.gmra.mrb[0].mxu0 %v4422
  %v4655 = vpop.f32.mrb[0].mxu0
  %v4656 = vadd.f32 0.0, %v4655
  %v4657 = vpop.f32.mrb[0].mxu0
  %v4658 = vpop.f32.mrb[0].mxu0
  %v4659 = vadd.f32 0.0, %v4658
  %v4660 = vpop.f32.mrb[0].mxu0
  %4661 = vmatprep.mubr.bf16.mxu0 0
  %4662 = vmatmul.mubr.bf16.gmra.mrb[0].mxu0 %v4425
  %v4663 = vpop.f32.mrb[0].mxu0
  %v4664 = vadd.f32 0.0, %v4663
  %v4665 = vpop.f32.mrb[0].mxu0
  %v4666 = vpop.f32.mrb[0].mxu0
  %v4667 = vadd.f32 0.0, %v4666
  %v4668 = vpop.f32.mrb[0].mxu0
  %4669 = vmatprep.mubr.bf16.mxu0 0
  %4670 = vmatmul.mubr.bf16.gmra.mrb[0].mxu0 %v4428
  %v4671 = vpop.f32.mrb[0].mxu0
  %v4672 = vadd.f32 0.0, %v4671
  %v4673 = vpop.f32.mrb[0].mxu0
  %v4674 = vpop.f32.mrb[0].mxu0
  %v4675 = vadd.f32 0.0, %v4674
  %v4676 = vpop.f32.mrb[0].mxu0
  %4677 = vmatprep.mubr.bf16.mxu0 0
  %4678 = vmatmul.mubr.bf16.gmra.mrb[0].mxu0 %v4431
  %v4679 = vpop.f32.mrb[0].mxu0
  %v4680 = vadd.f32 0.0, %v4679
  %v4681 = vpop.f32.mrb[0].mxu0
  %v4682 = vpop.f32.mrb[0].mxu0
  %v4683 = vadd.f32 0.0, %v4682
  %v4684 = vpop.f32.mrb[0].mxu0
  %4685 = vmatprep.mubr.bf16.mxu0 0
  %4686 = vmatmul.mubr.bf16.gmra.mrb[0].mxu0 %v4434
  %v4687 = vpop.f32.mrb[0].mxu0
  %v4688 = vadd.f32 0.0, %v4687
  %v4689 = vpop.f32.mrb[0].mxu0
  %v4690 = vpop.f32.mrb[0].mxu0
  %v4691 = vadd.f32 0.0, %v4690
  %v4692 = vpop.f32.mrb[0].mxu0
  %4693 = vmatprep.mubr.bf16.mxu0 0
  %4694 = vmatmul.mubr.bf16.gmra.mrb[0].mxu0 %v4437
  %v4695 = vpop.f32.mrb[0].mxu0
  %v4696 = vadd.f32 0.0, %v4695
  %v4697 = vpop.f32.mrb[0].mxu0
  %v4698 = vpop.f32.mrb[0].mxu0
  %v4699 = vadd.f32 0.0, %v4698
  %v4700 = vpop.f32.mrb[0].mxu0
  %4701 = vmatprep.mubr.bf16.mxu0 0
  %4702 = vmatmul.mubr.bf16.gmra.mrb[0].mxu0 %v4440
  %v4703 = vpop.f32.mrb[0].mxu0
  %v4704 = vadd.f32 0.0, %v4703
  %v4705 = vpop.f32.mrb[0].mxu0
  %v4706 = vpop.f32.mrb[0].mxu0
  %v4707 = vadd.f32 0.0, %v4706
  %v4708 = vpop.f32.mrb[0].mxu0
  %4709 = vmatprep.mubr.bf16.mxu0 0
  %4710 = vmatmul.mubr.bf16.gmra.mrb[0].mxu0 %v4443
  %v4711 = vpop.f32.mrb[0].mxu0
  %v4712 = vadd.f32 0.0, %v4711
  %v4713 = vpop.f32.mrb[0].mxu0
  %v4714 = vpop.f32.mrb[0].mxu0
  %v4715 = vadd.f32 0.0, %v4714
  %v4716 = vpop.f32.mrb[0].mxu0
  %4717 = vmatprep.mubr.bf16.mxu0 0
  %4718 = vmatmul.mubr.bf16.gmra.mrb[0].mxu0 %v4446
  %v4719 = vpop.f32.mrb[0].mxu0
  %v4720 = vadd.f32 0.0, %v4719
  %v4721 = vpop.f32.mrb[0].mxu0
  %v4722 = vpop.f32.mrb[0].mxu0
  %v4723 = vadd.f32 0.0, %v4722
  %v4724 = vpop.f32.mrb[0].mxu0
  %4725 = vmatprep.mubr.bf16.mxu0 0
  %4726 = vmatmul.mubr.bf16.gmra.mrb[0].mxu0 %v4449
  %v4727 = vpop.f32.mrb[0].mxu0
  %v4728 = vadd.f32 0.0, %v4727
  %v4729 = vpop.f32.mrb[0].mxu0
  %v4730 = vpop.f32.mrb[0].mxu0
  %v4731 = vadd.f32 0.0, %v4730
  %v4732 = vpop.f32.mrb[0].mxu0
  %4733 = vmatprep.mubr.bf16.mxu0 0
  %4734 = vmatmul.mubr.bf16.gmra.mrb[0].mxu0 %v4452
  %v4735 = vpop.f32.mrb[0].mxu0
  %v4736 = vadd.f32 0.0, %v4735
  %v4737 = vpop.f32.mrb[0].mxu0
  %v4738 = vpop.f32.mrb[0].mxu0
  %v4739 = vadd.f32 0.0, %v4738
  %v4740 = vpop.f32.mrb[0].mxu0
  %4741 = vmatprep.mubr.bf16.mxu0 0
  %4742 = vmatmul.mubr.bf16.gmra.mrb[0].mxu0 %v4455
  %v4743 = vpop.f32.mrb[0].mxu0
  %v4744 = vadd.f32 0.0, %v4743
  %v4745 = vpop.f32.mrb[0].mxu0
  %v4746 = vpop.f32.mrb[0].mxu0
  %v4747 = vadd.f32 0.0, %v4746
  %v4748 = vpop.f32.mrb[0].mxu0
  %4749 = vmatprep.mubr.bf16.mxu0 0
  %4750 = vmatmul.mubr.bf16.gmra.mrb[0].mxu0 %v4458
  %v4751 = vpop.f32.mrb[0].mxu0
  %v4752 = vadd.f32 0.0, %v4751
  %v4753 = vpop.f32.mrb[0].mxu0
  %v4754 = vpop.f32.mrb[0].mxu0
  %v4755 = vadd.f32 0.0, %v4754
  %v4756 = vpop.f32.mrb[0].mxu0
  %4757 = vmatprep.mubr.bf16.mxu0 0
  %4758 = vmatmul.mubr.bf16.gmra.mrb[0].mxu0 %v4461
  %v4759 = vpop.f32.mrb[0].mxu0
  %v4760 = vadd.f32 0.0, %v4759
  %v4761 = vpop.f32.mrb[0].mxu0
  %v4762 = vpop.f32.mrb[0].mxu0
  %v4763 = vadd.f32 0.0, %v4762
  %v4764 = vpop.f32.mrb[0].mxu0
  %4765 = vmatprep.mubr.bf16.mxu0 0
  %4766 = vmatmul.mubr.bf16.gmra.mrb[0].mxu0 %v4464
  %v4767 = vpop.f32.mrb[0].mxu0
  %v4768 = vadd.f32 0.0, %v4767
  %v4769 = vpop.f32.mrb[0].mxu0
  %v4770 = vpop.f32.mrb[0].mxu0
  %v4771 = vadd.f32 0.0, %v4770
  %v4772 = vpop.f32.mrb[0].mxu0
  %4773 = vmatprep.mubr.bf16.mxu0 0
  %4774 = vmatmul.mubr.bf16.gmra.mrb[0].mxu0 %v4467
  %v4775 = vpop.f32.mrb[0].mxu0
  %v4776 = vadd.f32 0.0, %v4775
  %v4777 = vpop.f32.mrb[0].mxu0
  %v4778 = vpop.f32.mrb[0].mxu0
  %v4779 = vadd.f32 0.0, %v4778
  %v4780 = vpop.f32.mrb[0].mxu0
  %4781 = vmatprep.mubr.bf16.mxu0 0
  %4782 = vmatmul.mubr.bf16.gmra.mrb[0].mxu0 %v4470
  %v4783 = vpop.f32.mrb[0].mxu0
  %v4784 = vadd.f32 0.0, %v4783
  %v4785 = vpop.f32.mrb[0].mxu0
  %v4786 = vpop.f32.mrb[0].mxu0
  %v4787 = vadd.f32 0.0, %v4786
  %v4788 = vpop.f32.mrb[0].mxu0
  %4789 = vmatprep.mubr.bf16.mxu0 0
  %4790 = vmatmul.mubr.bf16.gmra.mrb[0].mxu0 %v4473
  %v4791 = vpop.f32.mrb[0].mxu0
  %v4792 = vadd.f32 0.0, %v4791
  %v4793 = vpop.f32.mrb[0].mxu0
  %v4794 = vpop.f32.mrb[0].mxu0
  %v4795 = vadd.f32 0.0, %v4794
  %v4796 = vpop.f32.mrb[0].mxu0
  %4797 = vmatprep.mubr.bf16.mxu0 0
  %4798 = vmatmul.mubr.bf16.gmra.mrb[0].mxu0 %v4476
  %v4799 = vpop.f32.mrb[0].mxu0
  %v4800 = vadd.f32 0.0, %v4799
  %v4801 = vpop.f32.mrb[0].mxu0
  %v4802 = vpop.f32.mrb[0].mxu0
  %v4803 = vadd.f32 0.0, %v4802
  %v4804 = vpop.f32.mrb[0].mxu0
  %4805 = vmatprep.mubr.bf16.mxu0 0
  %4806 = vmatmul.mubr.bf16.gmra.mrb[0].mxu0 %v4479
  %v4807 = vpop.f32.mrb[0].mxu0
  %v4808 = vadd.f32 0.0, %v4807
  %v4809 = vpop.f32.mrb[0].mxu0
  %v4810 = vpop.f32.mrb[0].mxu0
  %v4811 = vadd.f32 0.0, %v4810
  %v4812 = vpop.f32.mrb[0].mxu0
  %4813 = vmatprep.mubr.bf16.mxu0 0
  %4814 = vmatmul.mubr.bf16.gmra.mrb[0].mxu0 %v4482
  %v4815 = vpop.f32.mrb[0].mxu0
  %v4816 = vadd.f32 0.0, %v4815
  %v4817 = vpop.f32.mrb[0].mxu0
  %v4818 = vpop.f32.mrb[0].mxu0
  %v4819 = vadd.f32 0.0, %v4818
  %v4820 = vpop.f32.mrb[0].mxu0
  %4821 = vmatprep.mubr.bf16.mxu0 0
  %4822 = vmatmul.mubr.bf16.gmra.mrb[0].mxu0 %v4485
  %v4823 = vpop.f32.mrb[0].mxu0
  %v4824 = vadd.f32 0.0, %v4823
  %v4825 = vpop.f32.mrb[0].mxu0
  %v4826 = vpop.f32.mrb[0].mxu0
  %v4827 = vadd.f32 0.0, %v4826
  %v4828 = vpop.f32.mrb[0].mxu0
  %4829 = vmatprep.mubr.bf16.mxu0 0
  %4830 = vmatmul.mubr.bf16.gmra.mrb[0].mxu0 %v4488
  %v4831 = vpop.f32.mrb[0].mxu0
  %v4832 = vadd.f32 0.0, %v4831
  %v4833 = vpop.f32.mrb[0].mxu0
  %v4834 = vpop.f32.mrb[0].mxu0
  %v4835 = vpop.f32.mrb[0].mxu0
  %4836 = vdwg.mxu0
  %v4837 = vadd.f32 %v4133, %v4528
  %v4838 = vadd.f32 %v4134, %v4531
  %v4839 = vadd.f32 %v4135, %v4536
  %v4840 = vadd.f32 %v4136, %v4539
  %v4841 = vadd.f32 %v4137, %v4544
  %v4842 = vadd.f32 %v4138, %v4547
  %v4843 = vadd.f32 %v4139, %v4552
  %v4844 = vadd.f32 %v4140, %v4555
  %v4845 = vadd.f32 %v4141, %v4560
  %v4846 = vadd.f32 %v4142, %v4563
  %v4847 = vadd.f32 %v4143, %v4568
  %v4848 = vadd.f32 %v4144, %v4571
  %v4849 = vadd.f32 %v4145, %v4576
  %v4850 = vadd.f32 %v4146, %v4579
  %v4851 = vadd.f32 %v4147, %v4584
  %v4852 = vadd.f32 %v4148, %v4587
  %v4853 = vadd.f32 %v4149, %v4592
  %v4854 = vadd.f32 %v4150, %v4595
  %v4855 = vadd.f32 %v4151, %v4600
  %v4856 = vadd.f32 %v4152, %v4603
  %v4857 = vadd.f32 %v4153, %v4608
  %v4858 = vadd.f32 %v4154, %v4611
  %v4859 = vadd.f32 %v4155, %v4616
  %v4860 = vadd.f32 %v4156, %v4619
  %v4861 = vadd.f32 %v4157, %v4624
  %v4862 = vadd.f32 %v4158, %v4627
  %v4863 = vadd.f32 %v4159, %v4632
  %v4864 = vadd.f32 %v4160, %v4635
  %v4865 = vadd.f32 %v4161, %v4640
  %v4866 = vadd.f32 %v4162, %v4643
  %v4867 = vadd.f32 %v4163, %v4648
  %v4868 = vadd.f32 %v4164, %v4651
  %v4869 = vadd.f32 %v4165, %v4656
  %v4870 = vadd.f32 %v4166, %v4659
  %v4871 = vadd.f32 %v4167, %v4664
  %v4872 = vadd.f32 %v4168, %v4667
  %v4873 = vadd.f32 %v4169, %v4672
  %v4874 = vadd.f32 %v4170, %v4675
  %v4875 = vadd.f32 %v4171, %v4680
  %v4876 = vadd.f32 %v4172, %v4683
  %v4877 = vadd.f32 %v4173, %v4688
  %v4878 = vadd.f32 %v4174, %v4691
  %v4879 = vadd.f32 %v4175, %v4696
  %v4880 = vadd.f32 %v4176, %v4699
  %v4881 = vadd.f32 %v4177, %v4704
  %v4882 = vadd.f32 %v4178, %v4707
  %v4883 = vadd.f32 %v4179, %v4712
  %v4884 = vadd.f32 %v4180, %v4715
  %v4885 = vadd.f32 %v4181, %v4720
  %v4886 = vadd.f32 %v4182, %v4723
  %v4887 = vadd.f32 %v4183, %v4728
  %v4888 = vadd.f32 %v4184, %v4731
  %v4889 = vadd.f32 %v4185, %v4736
  %v4890 = vadd.f32 %v4186, %v4739
  %v4891 = vadd.f32 %v4187, %v4744
  %v4892 = vadd.f32 %v4188, %v4747
  %v4893 = vadd.f32 %v4189, %v4752
  %v4894 = vadd.f32 %v4190, %v4755
  %v4895 = vadd.f32 %v4191, %v4760
  %v4896 = vadd.f32 %v4192, %v4763
  %v4897 = vadd.f32 %v4193, %v4768
  %v4898 = vadd.f32 %v4194, %v4771
  %v4899 = vadd.f32 %v4195, %v4776
  %v4900 = vadd.f32 %v4196, %v4779
  %v4901 = vadd.f32 %v4197, %v4784
  %v4902 = vadd.f32 %v4198, %v4787
  %v4903 = vadd.f32 %v4199, %v4792
  %v4904 = vadd.f32 %v4200, %v4795
  %v4905 = vadd.f32 %v4201, %v4800
  %v4906 = vadd.f32 %v4202, %v4803
  %v4907 = vadd.f32 %v4203, %v4808
  %v4908 = vadd.f32 %v4204, %v4811
  %v4909 = vadd.f32 %v4205, %v4816
  %v4910 = vadd.f32 %v4206, %v4819
  %v4911 = vadd.f32 %v4207, %v4824
  %v4912 = vadd.f32 %v4208, %v4827
  %v4913 = vadd.f32 %v4209, %v4832
  %s4914 = scalar_lea.vmem %s1, 16
  %v4915 = vld [vmem:[%s4914] sm:$0x3]
  %vm4916 = vcmask 1044480
  %v4917 = vrot.slane %v108, 3
  %v4918 = vrot.slane %v109, 3
  %v4919 = vsel %vm4916, %v4917, %v4918
  %v4920 = vrot.slane %v110, 3
  %v4921 = vsel %vm4916, %v4918, %v4920
  %v4922 = vrot.slane %v111, 3
  %v4923 = vsel %vm4916, %v4920, %v4922
  %v4924 = vrot.slane %v112, 3
  %v4925 = vsel %vm4916, %v4922, %v4924
  %v4926 = vrot.slane %v113, 3
  %v4927 = vsel %vm4916, %v4924, %v4926
  %v4928 = vrot.slane %v114, 3
  %v4929 = vsel %vm4916, %v4926, %v4928
  %v4930 = vrot.slane %v115, 3
  %v4931 = vsel %vm4916, %v4928, %v4930
  %v4932 = vrot.slane %v116, 3
  %v4933 = vsel %vm4916, %v4930, %v4932
  %v4934 = vrot.slane %v117, 3
  %v4935 = vsel %vm4916, %v4932, %v4934
  %v4936 = vrot.slane %v118, 3
  %v4937 = vsel %vm4916, %v4934, %v4936
  %v4938 = vrot.slane %v119, 3
  %v4939 = vsel %vm4916, %v4936, %v4938
  %v4940 = vrot.slane %v120, 3
  %v4941 = vsel %vm4916, %v4938, %v4940
  %v4942 = vrot.slane %v121, 3
  %v4943 = vsel %vm4916, %v4940, %v4942
  %v4944 = vrot.slane %v122, 3
  %v4945 = vsel %vm4916, %v4942, %v4944
  %v4946 = vrot.slane %v123, 3
  %v4947 = vsel %vm4916, %v4944, %v4946
  %v4948 = vrot.slane %v124, 3
  %v4949 = vsel %vm4916, %v4946, %v4948
  %v4950 = vrot.slane %v125, 3
  %v4951 = vsel %vm4916, %v4948, %v4950
  %v4952 = vrot.slane %v126, 3
  %v4953 = vsel %vm4916, %v4950, %v4952
  %v4954 = vrot.slane %v127, 3
  %v4955 = vsel %vm4916, %v4952, %v4954
  %v4956 = vrot.slane %v128, 3
  %v4957 = vsel %vm4916, %v4954, %v4956
  %v4958 = vrot.slane %v129, 3
  %v4959 = vsel %vm4916, %v4956, %v4958
  %v4960 = vrot.slane %v130, 3
  %v4961 = vsel %vm4916, %v4958, %v4960
  %v4962 = vrot.slane %v131, 3
  %v4963 = vsel %vm4916, %v4960, %v4962
  %v4964 = vrot.slane %v132, 3
  %v4965 = vsel %vm4916, %v4962, %v4964
  %v4966 = vrot.slane %v133, 3
  %v4967 = vsel %vm4916, %v4964, %v4966
  %v4968 = vrot.slane %v134, 3
  %v4969 = vsel %vm4916, %v4966, %v4968
  %v4970 = vrot.slane %v135, 3
  %v4971 = vsel %vm4916, %v4968, %v4970
  %v4972 = vrot.slane %v136, 3
  %v4973 = vsel %vm4916, %v4970, %v4972
  %v4974 = vrot.slane %v137, 3
  %v4975 = vsel %vm4916, %v4972, %v4974
  %v4976 = vrot.slane %v138, 3
  %v4977 = vsel %vm4916, %v4974, %v4976
  %v4978 = vrot.slane %v139, 3
  %v4979 = vsel %vm4916, %v4976, %v4978
  %v4980 = vrot.slane %v140, 3
  %v4981 = vsel %vm4916, %v4978, %v4980
  %v4982 = vrot.slane %v141, 3
  %v4983 = vsel %vm4916, %v4980, %v4982
  %v4984 = vrot.slane %v142, 3
  %v4985 = vsel %vm4916, %v4982, %v4984
  %v4986 = vrot.slane %v143, 3
  %v4987 = vsel %vm4916, %v4984, %v4986
  %v4988 = vrot.slane %v146, 3
  %v4989 = vsel %vm4916, %v4986, %v4988
  %v4990 = vrot.slane %v2013, 3
  %v4991 = vsel %vm4916, %v4988, %v4990
  %v4992 = vrot.slane %v3774, 3
  %v4993 = vsel %vm4916, %v4990, %v4992
  %v4995 = vsel %vm461, %v4919, 0
  %v4998 = vsel %vm461, %v4921, 0
  %v5001 = vsel %vm461, %v4923, 0
  %v5004 = vsel %vm461, %v4925, 0
  %v5007 = vsel %vm461, %v4927, 0
  %v5010 = vsel %vm461, %v4929, 0
  %v5013 = vsel %vm461, %v4931, 0
  %v5016 = vsel %vm461, %v4933, 0
  %v5019 = vsel %vm461, %v4935, 0
  %v5022 = vsel %vm461, %v4937, 0
  %v5025 = vsel %vm461, %v4939, 0
  %v5028 = vsel %vm461, %v4941, 0
  %v5031 = vsel %vm461, %v4943, 0
  %v5034 = vsel %vm461, %v4945, 0
  %v5037 = vsel %vm461, %v4947, 0
  %v5040 = vsel %vm461, %v4949, 0
  %v5043 = vsel %vm461, %v4951, 0
  %v5046 = vsel %vm461, %v4953, 0
  %v5049 = vsel %vm461, %v4955, 0
  %v5052 = vsel %vm461, %v4957, 0
  %v5055 = vsel %vm461, %v4959, 0
  %v5058 = vsel %vm461, %v4961, 0
  %v5061 = vsel %vm461, %v4963, 0
  %v5064 = vsel %vm461, %v4965, 0
  %v5067 = vsel %vm461, %v4967, 0
  %v5070 = vsel %vm461, %v4969, 0
  %v5073 = vsel %vm461, %v4971, 0
  %v5076 = vsel %vm461, %v4973, 0
  %v5079 = vsel %vm461, %v4975, 0
  %v5082 = vsel %vm461, %v4977, 0
  %v5085 = vsel %vm461, %v4979, 0
  %v5088 = vsel %vm461, %v4981, 0
  %v5091 = vsel %vm461, %v4983, 0
  %v5094 = vsel %vm461, %v4985, 0
  %v5097 = vsel %vm461, %v4987, 0
  %v5100 = vsel %vm461, %v4989, 0
  %v5103 = vsel %vm461, %v4991, 0
  %v5106 = vsel %vm461, %v4993, 0
  %v5109 = vsel %vm461, %v4992, 0
  %v5112 = vsel %vm579, %v4915, 0
  %5114 = vmatprep.subr.bf16.mxu0 0
  %5115 = vmatpush1.bf16.msra.mxu0 %v5112
  %5116 = vmatprep.subr.bf16.mxu0 0
  %5117 = vmatpush1.bf16.msra.mxu0 0
  %5118 = vmatprep.subr.bf16.mxu0 0
  %5119 = vmatpush1.bf16.msra.mxu0 0
  %5120 = vmatprep.subr.bf16.mxu0 0
  %5121 = vmatpush1.bf16.msra.mxu0 0
  %5122 = vmatprep.subr.bf16.mxu0 0
  %5123 = vmatpush1.bf16.msra.mxu0 0
  %5124 = vmatprep.subr.bf16.mxu0 0
  %5125 = vmatpush1.bf16.msra.mxu0 0
  %5126 = vmatprep.subr.bf16.mxu0 0
  %5127 = vmatpush1.bf16.msra.mxu0 0
  %5128 = vmatprep.subr.bf16.mxu0 0
  %5129 = vmatpush1.bf16.msra.mxu0 0
  %5130 = vmatprep.subr.bf16.mxu0 0
  %5131 = vmatpush1.bf16.msra.mxu0 0
  %5132 = vmatprep.subr.bf16.mxu0 0
  %5133 = vmatpush1.bf16.msra.mxu0 0
  %5134 = vmatprep.subr.bf16.mxu0 0
  %5135 = vmatpush1.bf16.msra.mxu0 0
  %5136 = vmatprep.subr.bf16.mxu0 0
  %5137 = vmatpush1.bf16.msra.mxu0 0
  %5138 = vmatprep.subr.bf16.mxu0 0
  %5139 = vmatpush1.bf16.msra.mxu0 0
  %5140 = vmatprep.subr.bf16.mxu0 0
  %5141 = vmatpush1.bf16.msra.mxu0 0
  %5142 = vmatprep.subr.bf16.mxu0 0
  %5143 = vmatpush1.bf16.msra.mxu0 0
  %5144 = vmatprep.subr.bf16.mxu0 0
  %5145 = vmatpush1.bf16.msra.mxu0 0
  %5146 = vmatprep.mubr.bf16.mxu0 0
  %5147 = vmatmul.mubr.bf16.gmra.mrb[0].mxu0 %v4995
  %v5148 = vpop.f32.mrb[0].mxu0
  %v5149 = vadd.f32 0.0, %v5148
  %v5150 = vpop.f32.mrb[0].mxu0
  %v5151 = vpop.f32.mrb[0].mxu0
  %v5152 = vadd.f32 0.0, %v5151
  %v5153 = vpop.f32.mrb[0].mxu0
  %5154 = vmatprep.mubr.bf16.mxu0 0
  %5155 = vmatmul.mubr.bf16.gmra.mrb[0].mxu0 %v4998
  %v5156 = vpop.f32.mrb[0].mxu0
  %v5157 = vadd.f32 0.0, %v5156
  %v5158 = vpop.f32.mrb[0].mxu0
  %v5159 = vpop.f32.mrb[0].mxu0
  %v5160 = vadd.f32 0.0, %v5159
  %v5161 = vpop.f32.mrb[0].mxu0
  %5162 = vmatprep.mubr.bf16.mxu0 0
  %5163 = vmatmul.mubr.bf16.gmra.mrb[0].mxu0 %v5001
  %v5164 = vpop.f32.mrb[0].mxu0
  %v5165 = vadd.f32 0.0, %v5164
  %v5166 = vpop.f32.mrb[0].mxu0
  %v5167 = vpop.f32.mrb[0].mxu0
  %v5168 = vadd.f32 0.0, %v5167
  %v5169 = vpop.f32.mrb[0].mxu0
  %5170 = vmatprep.mubr.bf16.mxu0 0
  %5171 = vmatmul.mubr.bf16.gmra.mrb[0].mxu0 %v5004
  %v5172 = vpop.f32.mrb[0].mxu0
  %v5173 = vadd.f32 0.0, %v5172
  %v5174 = vpop.f32.mrb[0].mxu0
  %v5175 = vpop.f32.mrb[0].mxu0
  %v5176 = vadd.f32 0.0, %v5175
  %v5177 = vpop.f32.mrb[0].mxu0
  %5178 = vmatprep.mubr.bf16.mxu0 0
  %5179 = vmatmul.mubr.bf16.gmra.mrb[0].mxu0 %v5007
  %v5180 = vpop.f32.mrb[0].mxu0
  %v5181 = vadd.f32 0.0, %v5180
  %v5182 = vpop.f32.mrb[0].mxu0
  %v5183 = vpop.f32.mrb[0].mxu0
  %v5184 = vadd.f32 0.0, %v5183
  %v5185 = vpop.f32.mrb[0].mxu0
  %5186 = vmatprep.mubr.bf16.mxu0 0
  %5187 = vmatmul.mubr.bf16.gmra.mrb[0].mxu0 %v5010
  %v5188 = vpop.f32.mrb[0].mxu0
  %v5189 = vadd.f32 0.0, %v5188
  %v5190 = vpop.f32.mrb[0].mxu0
  %v5191 = vpop.f32.mrb[0].mxu0
  %v5192 = vadd.f32 0.0, %v5191
  %v5193 = vpop.f32.mrb[0].mxu0
  %5194 = vmatprep.mubr.bf16.mxu0 0
  %5195 = vmatmul.mubr.bf16.gmra.mrb[0].mxu0 %v5013
  %v5196 = vpop.f32.mrb[0].mxu0
  %v5197 = vadd.f32 0.0, %v5196
  %v5198 = vpop.f32.mrb[0].mxu0
  %v5199 = vpop.f32.mrb[0].mxu0
  %v5200 = vadd.f32 0.0, %v5199
  %v5201 = vpop.f32.mrb[0].mxu0
  %5202 = vmatprep.mubr.bf16.mxu0 0
  %5203 = vmatmul.mubr.bf16.gmra.mrb[0].mxu0 %v5016
  %v5204 = vpop.f32.mrb[0].mxu0
  %v5205 = vadd.f32 0.0, %v5204
  %v5206 = vpop.f32.mrb[0].mxu0
  %v5207 = vpop.f32.mrb[0].mxu0
  %v5208 = vadd.f32 0.0, %v5207
  %v5209 = vpop.f32.mrb[0].mxu0
  %5210 = vmatprep.mubr.bf16.mxu0 0
  %5211 = vmatmul.mubr.bf16.gmra.mrb[0].mxu0 %v5019
  %v5212 = vpop.f32.mrb[0].mxu0
  %v5213 = vadd.f32 0.0, %v5212
  %v5214 = vpop.f32.mrb[0].mxu0
  %v5215 = vpop.f32.mrb[0].mxu0
  %v5216 = vadd.f32 0.0, %v5215
  %v5217 = vpop.f32.mrb[0].mxu0
  %5218 = vmatprep.mubr.bf16.mxu0 0
  %5219 = vmatmul.mubr.bf16.gmra.mrb[0].mxu0 %v5022
  %v5220 = vpop.f32.mrb[0].mxu0
  %v5221 = vadd.f32 0.0, %v5220
  %v5222 = vpop.f32.mrb[0].mxu0
  %v5223 = vpop.f32.mrb[0].mxu0
  %v5224 = vadd.f32 0.0, %v5223
  %v5225 = vpop.f32.mrb[0].mxu0
  %5226 = vmatprep.mubr.bf16.mxu0 0
  %5227 = vmatmul.mubr.bf16.gmra.mrb[0].mxu0 %v5025
  %v5228 = vpop.f32.mrb[0].mxu0
  %v5229 = vadd.f32 0.0, %v5228
  %v5230 = vpop.f32.mrb[0].mxu0
  %v5231 = vpop.f32.mrb[0].mxu0
  %v5232 = vadd.f32 0.0, %v5231
  %v5233 = vpop.f32.mrb[0].mxu0
  %5234 = vmatprep.mubr.bf16.mxu0 0
  %5235 = vmatmul.mubr.bf16.gmra.mrb[0].mxu0 %v5028
  %v5236 = vpop.f32.mrb[0].mxu0
  %v5237 = vadd.f32 0.0, %v5236
  %v5238 = vpop.f32.mrb[0].mxu0
  %v5239 = vpop.f32.mrb[0].mxu0
  %v5240 = vadd.f32 0.0, %v5239
  %v5241 = vpop.f32.mrb[0].mxu0
  %5242 = vmatprep.mubr.bf16.mxu0 0
  %5243 = vmatmul.mubr.bf16.gmra.mrb[0].mxu0 %v5031
  %v5244 = vpop.f32.mrb[0].mxu0
  %v5245 = vadd.f32 0.0, %v5244
  %v5246 = vpop.f32.mrb[0].mxu0
  %v5247 = vpop.f32.mrb[0].mxu0
  %v5248 = vadd.f32 0.0, %v5247
  %v5249 = vpop.f32.mrb[0].mxu0
  %5250 = vmatprep.mubr.bf16.mxu0 0
  %5251 = vmatmul.mubr.bf16.gmra.mrb[0].mxu0 %v5034
  %v5252 = vpop.f32.mrb[0].mxu0
  %v5253 = vadd.f32 0.0, %v5252
  %v5254 = vpop.f32.mrb[0].mxu0
  %v5255 = vpop.f32.mrb[0].mxu0
  %v5256 = vadd.f32 0.0, %v5255
  %v5257 = vpop.f32.mrb[0].mxu0
  %5258 = vmatprep.mubr.bf16.mxu0 0
  %5259 = vmatmul.mubr.bf16.gmra.mrb[0].mxu0 %v5037
  %v5260 = vpop.f32.mrb[0].mxu0
  %v5261 = vadd.f32 0.0, %v5260
  %v5262 = vpop.f32.mrb[0].mxu0
  %v5263 = vpop.f32.mrb[0].mxu0
  %v5264 = vadd.f32 0.0, %v5263
  %v5265 = vpop.f32.mrb[0].mxu0
  %5266 = vmatprep.mubr.bf16.mxu0 0
  %5267 = vmatmul.mubr.bf16.gmra.mrb[0].mxu0 %v5040
  %v5268 = vpop.f32.mrb[0].mxu0
  %v5269 = vadd.f32 0.0, %v5268
  %v5270 = vpop.f32.mrb[0].mxu0
  %v5271 = vpop.f32.mrb[0].mxu0
  %v5272 = vadd.f32 0.0, %v5271
  %v5273 = vpop.f32.mrb[0].mxu0
  %5274 = vmatprep.mubr.bf16.mxu0 0
  %5275 = vmatmul.mubr.bf16.gmra.mrb[0].mxu0 %v5043
  %v5276 = vpop.f32.mrb[0].mxu0
  %v5277 = vadd.f32 0.0, %v5276
  %v5278 = vpop.f32.mrb[0].mxu0
  %v5279 = vpop.f32.mrb[0].mxu0
  %v5280 = vadd.f32 0.0, %v5279
  %v5281 = vpop.f32.mrb[0].mxu0
  %5282 = vmatprep.mubr.bf16.mxu0 0
  %5283 = vmatmul.mubr.bf16.gmra.mrb[0].mxu0 %v5046
  %v5284 = vpop.f32.mrb[0].mxu0
  %v5285 = vadd.f32 0.0, %v5284
  %v5286 = vpop.f32.mrb[0].mxu0
  %v5287 = vpop.f32.mrb[0].mxu0
  %v5288 = vadd.f32 0.0, %v5287
  %v5289 = vpop.f32.mrb[0].mxu0
  %5290 = vmatprep.mubr.bf16.mxu0 0
  %5291 = vmatmul.mubr.bf16.gmra.mrb[0].mxu0 %v5049
  %v5292 = vpop.f32.mrb[0].mxu0
  %v5293 = vadd.f32 0.0, %v5292
  %v5294 = vpop.f32.mrb[0].mxu0
  %v5295 = vpop.f32.mrb[0].mxu0
  %v5296 = vadd.f32 0.0, %v5295
  %v5297 = vpop.f32.mrb[0].mxu0
  %5298 = vmatprep.mubr.bf16.mxu0 0
  %5299 = vmatmul.mubr.bf16.gmra.mrb[0].mxu0 %v5052
  %v5300 = vpop.f32.mrb[0].mxu0
  %v5301 = vadd.f32 0.0, %v5300
  %v5302 = vpop.f32.mrb[0].mxu0
  %v5303 = vpop.f32.mrb[0].mxu0
  %v5304 = vadd.f32 0.0, %v5303
  %v5305 = vpop.f32.mrb[0].mxu0
  %5306 = vmatprep.mubr.bf16.mxu0 0
  %5307 = vmatmul.mubr.bf16.gmra.mrb[0].mxu0 %v5055
  %v5308 = vpop.f32.mrb[0].mxu0
  %v5309 = vadd.f32 0.0, %v5308
  %v5310 = vpop.f32.mrb[0].mxu0
  %v5311 = vpop.f32.mrb[0].mxu0
  %v5312 = vadd.f32 0.0, %v5311
  %v5313 = vpop.f32.mrb[0].mxu0
  %5314 = vmatprep.mubr.bf16.mxu0 0
  %5315 = vmatmul.mubr.bf16.gmra.mrb[0].mxu0 %v5058
  %v5316 = vpop.f32.mrb[0].mxu0
  %v5317 = vadd.f32 0.0, %v5316
  %v5318 = vpop.f32.mrb[0].mxu0
  %v5319 = vpop.f32.mrb[0].mxu0
  %v5320 = vadd.f32 0.0, %v5319
  %v5321 = vpop.f32.mrb[0].mxu0
  %5322 = vmatprep.mubr.bf16.mxu0 0
  %5323 = vmatmul.mubr.bf16.gmra.mrb[0].mxu0 %v5061
  %v5324 = vpop.f32.mrb[0].mxu0
  %v5325 = vadd.f32 0.0, %v5324
  %v5326 = vpop.f32.mrb[0].mxu0
  %v5327 = vpop.f32.mrb[0].mxu0
  %v5328 = vadd.f32 0.0, %v5327
  %v5329 = vpop.f32.mrb[0].mxu0
  %5330 = vmatprep.mubr.bf16.mxu0 0
  %5331 = vmatmul.mubr.bf16.gmra.mrb[0].mxu0 %v5064
  %v5332 = vpop.f32.mrb[0].mxu0
  %v5333 = vadd.f32 0.0, %v5332
  %v5334 = vpop.f32.mrb[0].mxu0
  %v5335 = vpop.f32.mrb[0].mxu0
  %v5336 = vadd.f32 0.0, %v5335
  %v5337 = vpop.f32.mrb[0].mxu0
  %5338 = vmatprep.mubr.bf16.mxu0 0
  %5339 = vmatmul.mubr.bf16.gmra.mrb[0].mxu0 %v5067
  %v5340 = vpop.f32.mrb[0].mxu0
  %v5341 = vadd.f32 0.0, %v5340
  %v5342 = vpop.f32.mrb[0].mxu0
  %v5343 = vpop.f32.mrb[0].mxu0
  %v5344 = vadd.f32 0.0, %v5343
  %v5345 = vpop.f32.mrb[0].mxu0
  %5346 = vmatprep.mubr.bf16.mxu0 0
  %5347 = vmatmul.mubr.bf16.gmra.mrb[0].mxu0 %v5070
  %v5348 = vpop.f32.mrb[0].mxu0
  %v5349 = vadd.f32 0.0, %v5348
  %v5350 = vpop.f32.mrb[0].mxu0
  %v5351 = vpop.f32.mrb[0].mxu0
  %v5352 = vadd.f32 0.0, %v5351
  %v5353 = vpop.f32.mrb[0].mxu0
  %5354 = vmatprep.mubr.bf16.mxu0 0
  %5355 = vmatmul.mubr.bf16.gmra.mrb[0].mxu0 %v5073
  %v5356 = vpop.f32.mrb[0].mxu0
  %v5357 = vadd.f32 0.0, %v5356
  %v5358 = vpop.f32.mrb[0].mxu0
  %v5359 = vpop.f32.mrb[0].mxu0
  %v5360 = vadd.f32 0.0, %v5359
  %v5361 = vpop.f32.mrb[0].mxu0
  %5362 = vmatprep.mubr.bf16.mxu0 0
  %5363 = vmatmul.mubr.bf16.gmra.mrb[0].mxu0 %v5076
  %v5364 = vpop.f32.mrb[0].mxu0
  %v5365 = vadd.f32 0.0, %v5364
  %v5366 = vpop.f32.mrb[0].mxu0
  %v5367 = vpop.f32.mrb[0].mxu0
  %v5368 = vadd.f32 0.0, %v5367
  %v5369 = vpop.f32.mrb[0].mxu0
  %5370 = vmatprep.mubr.bf16.mxu0 0
  %5371 = vmatmul.mubr.bf16.gmra.mrb[0].mxu0 %v5079
  %v5372 = vpop.f32.mrb[0].mxu0
  %v5373 = vadd.f32 0.0, %v5372
  %v5374 = vpop.f32.mrb[0].mxu0
  %v5375 = vpop.f32.mrb[0].mxu0
  %v5376 = vadd.f32 0.0, %v5375
  %v5377 = vpop.f32.mrb[0].mxu0
  %5378 = vmatprep.mubr.bf16.mxu0 0
  %5379 = vmatmul.mubr.bf16.gmra.mrb[0].mxu0 %v5082
  %v5380 = vpop.f32.mrb[0].mxu0
  %v5381 = vadd.f32 0.0, %v5380
  %v5382 = vpop.f32.mrb[0].mxu0
  %v5383 = vpop.f32.mrb[0].mxu0
  %v5384 = vadd.f32 0.0, %v5383
  %v5385 = vpop.f32.mrb[0].mxu0
  %5386 = vmatprep.mubr.bf16.mxu0 0
  %5387 = vmatmul.mubr.bf16.gmra.mrb[0].mxu0 %v5085
  %v5388 = vpop.f32.mrb[0].mxu0
  %v5389 = vadd.f32 0.0, %v5388
  %v5390 = vpop.f32.mrb[0].mxu0
  %v5391 = vpop.f32.mrb[0].mxu0
  %v5392 = vadd.f32 0.0, %v5391
  %v5393 = vpop.f32.mrb[0].mxu0
  %5394 = vmatprep.mubr.bf16.mxu0 0
  %5395 = vmatmul.mubr.bf16.gmra.mrb[0].mxu0 %v5088
  %v5396 = vpop.f32.mrb[0].mxu0
  %v5397 = vadd.f32 0.0, %v5396
  %v5398 = vpop.f32.mrb[0].mxu0
  %v5399 = vpop.f32.mrb[0].mxu0
  %v5400 = vadd.f32 0.0, %v5399
  %v5401 = vpop.f32.mrb[0].mxu0
  %5402 = vmatprep.mubr.bf16.mxu0 0
  %5403 = vmatmul.mubr.bf16.gmra.mrb[0].mxu0 %v5091
  %v5404 = vpop.f32.mrb[0].mxu0
  %v5405 = vadd.f32 0.0, %v5404
  %v5406 = vpop.f32.mrb[0].mxu0
  %v5407 = vpop.f32.mrb[0].mxu0
  %v5408 = vadd.f32 0.0, %v5407
  %v5409 = vpop.f32.mrb[0].mxu0
  %5410 = vmatprep.mubr.bf16.mxu0 0
  %5411 = vmatmul.mubr.bf16.gmra.mrb[0].mxu0 %v5094
  %v5412 = vpop.f32.mrb[0].mxu0
  %v5413 = vadd.f32 0.0, %v5412
  %v5414 = vpop.f32.mrb[0].mxu0
  %v5415 = vpop.f32.mrb[0].mxu0
  %v5416 = vadd.f32 0.0, %v5415
  %v5417 = vpop.f32.mrb[0].mxu0
  %5418 = vmatprep.mubr.bf16.mxu0 0
  %5419 = vmatmul.mubr.bf16.gmra.mrb[0].mxu0 %v5097
  %v5420 = vpop.f32.mrb[0].mxu0
  %v5421 = vadd.f32 0.0, %v5420
  %v5422 = vpop.f32.mrb[0].mxu0
  %v5423 = vpop.f32.mrb[0].mxu0
  %v5424 = vadd.f32 0.0, %v5423
  %v5425 = vpop.f32.mrb[0].mxu0
  %5426 = vmatprep.mubr.bf16.mxu0 0
  %5427 = vmatmul.mubr.bf16.gmra.mrb[0].mxu0 %v5100
  %v5428 = vpop.f32.mrb[0].mxu0
  %v5429 = vadd.f32 0.0, %v5428
  %v5430 = vpop.f32.mrb[0].mxu0
  %v5431 = vpop.f32.mrb[0].mxu0
  %v5432 = vadd.f32 0.0, %v5431
  %v5433 = vpop.f32.mrb[0].mxu0
  %5434 = vmatprep.mubr.bf16.mxu0 0
  %5435 = vmatmul.mubr.bf16.gmra.mrb[0].mxu0 %v5103
  %v5436 = vpop.f32.mrb[0].mxu0
  %v5437 = vadd.f32 0.0, %v5436
  %v5438 = vpop.f32.mrb[0].mxu0
  %v5439 = vpop.f32.mrb[0].mxu0
  %v5440 = vadd.f32 0.0, %v5439
  %v5441 = vpop.f32.mrb[0].mxu0
  %5442 = vmatprep.mubr.bf16.mxu0 0
  %5443 = vmatmul.mubr.bf16.gmra.mrb[0].mxu0 %v5106
  %v5444 = vpop.f32.mrb[0].mxu0
  %v5445 = vadd.f32 0.0, %v5444
  %v5446 = vpop.f32.mrb[0].mxu0
  %v5447 = vpop.f32.mrb[0].mxu0
  %v5448 = vadd.f32 0.0, %v5447
  %v5449 = vpop.f32.mrb[0].mxu0
  %5450 = vmatprep.mubr.bf16.mxu0 0
  %5451 = vmatmul.mubr.bf16.gmra.mrb[0].mxu0 %v5109
  %v5452 = vpop.f32.mrb[0].mxu0
  %v5453 = vadd.f32 0.0, %v5452
  %v5454 = vpop.f32.mrb[0].mxu0
  %v5455 = vpop.f32.mrb[0].mxu0
  %v5456 = vpop.f32.mrb[0].mxu0
  %5457 = vdwg.mxu0
  %v5458 = vadd.f32 %v4837, %v5149
  %v5459 = vadd.f32 %v4838, %v5152
  %v5460 = vadd.f32 %v4839, %v5157
  %v5461 = vadd.f32 %v4840, %v5160
  %v5462 = vadd.f32 %v4841, %v5165
  %v5463 = vadd.f32 %v4842, %v5168
  %v5464 = vadd.f32 %v4843, %v5173
  %v5465 = vadd.f32 %v4844, %v5176
  %v5466 = vadd.f32 %v4845, %v5181
  %v5467 = vadd.f32 %v4846, %v5184
  %v5468 = vadd.f32 %v4847, %v5189
  %v5469 = vadd.f32 %v4848, %v5192
  %v5470 = vadd.f32 %v4849, %v5197
  %v5471 = vadd.f32 %v4850, %v5200
  %v5472 = vadd.f32 %v4851, %v5205
  %v5473 = vadd.f32 %v4852, %v5208
  %v5474 = vadd.f32 %v4853, %v5213
  %v5475 = vadd.f32 %v4854, %v5216
  %v5476 = vadd.f32 %v4855, %v5221
  %v5477 = vadd.f32 %v4856, %v5224
  %v5478 = vadd.f32 %v4857, %v5229
  %v5479 = vadd.f32 %v4858, %v5232
  %v5480 = vadd.f32 %v4859, %v5237
  %v5481 = vadd.f32 %v4860, %v5240
  %v5482 = vadd.f32 %v4861, %v5245
  %v5483 = vadd.f32 %v4862, %v5248
  %v5484 = vadd.f32 %v4863, %v5253
  %v5485 = vadd.f32 %v4864, %v5256
  %v5486 = vadd.f32 %v4865, %v5261
  %v5487 = vadd.f32 %v4866, %v5264
  %v5488 = vadd.f32 %v4867, %v5269
  %v5489 = vadd.f32 %v4868, %v5272
  %v5490 = vadd.f32 %v4869, %v5277
  %v5491 = vadd.f32 %v4870, %v5280
  %v5492 = vadd.f32 %v4871, %v5285
  %v5493 = vadd.f32 %v4872, %v5288
  %v5494 = vadd.f32 %v4873, %v5293
  %v5495 = vadd.f32 %v4874, %v5296
  %v5496 = vadd.f32 %v4875, %v5301
  %v5497 = vadd.f32 %v4876, %v5304
  %v5498 = vadd.f32 %v4877, %v5309
  %v5499 = vadd.f32 %v4878, %v5312
  %v5500 = vadd.f32 %v4879, %v5317
  %v5501 = vadd.f32 %v4880, %v5320
  %v5502 = vadd.f32 %v4881, %v5325
  %v5503 = vadd.f32 %v4882, %v5328
  %v5504 = vadd.f32 %v4883, %v5333
  %v5505 = vadd.f32 %v4884, %v5336
  %v5506 = vadd.f32 %v4885, %v5341
  %v5507 = vadd.f32 %v4886, %v5344
  %v5508 = vadd.f32 %v4887, %v5349
  %v5509 = vadd.f32 %v4888, %v5352
  %v5510 = vadd.f32 %v4889, %v5357
  %v5511 = vadd.f32 %v4890, %v5360
  %v5512 = vadd.f32 %v4891, %v5365
  %v5513 = vadd.f32 %v4892, %v5368
  %v5514 = vadd.f32 %v4893, %v5373
  %v5515 = vadd.f32 %v4894, %v5376
  %v5516 = vadd.f32 %v4895, %v5381
  %v5517 = vadd.f32 %v4896, %v5384
  %v5518 = vadd.f32 %v4897, %v5389
  %v5519 = vadd.f32 %v4898, %v5392
  %v5520 = vadd.f32 %v4899, %v5397
  %v5521 = vadd.f32 %v4900, %v5400
  %v5522 = vadd.f32 %v4901, %v5405
  %v5523 = vadd.f32 %v4902, %v5408
  %v5524 = vadd.f32 %v4903, %v5413
  %v5525 = vadd.f32 %v4904, %v5416
  %v5526 = vadd.f32 %v4905, %v5421
  %v5527 = vadd.f32 %v4906, %v5424
  %v5528 = vadd.f32 %v4907, %v5429
  %v5529 = vadd.f32 %v4908, %v5432
  %v5530 = vadd.f32 %v4909, %v5437
  %v5531 = vadd.f32 %v4910, %v5440
  %v5532 = vadd.f32 %v4911, %v5445
  %v5533 = vadd.f32 %v4912, %v5448
  %v5534 = vadd.f32 %v4913, %v5453
  %v5535 = vld [vmem:[%s2] sm:$0x1]
  %v5537 = vlaneseq
  %v5538 = vshrl.u32 %v5537, 7
  %v5539 = vsub.s32 0, %v5538
  %v5540 = vrot.slane %v5535, %v5539
  %v5542 = vadd.f32 %v5458, %v5540
  %v5543 = vadd.f32 %v5459, %v5540
  %v5544 = vadd.f32 %v5460, %v5540
  %v5545 = vadd.f32 %v5461, %v5540
  %v5546 = vadd.f32 %v5462, %v5540
  %v5547 = vadd.f32 %v5463, %v5540
  %v5548 = vadd.f32 %v5464, %v5540
  %v5549 = vadd.f32 %v5465, %v5540
  %v5550 = vadd.f32 %v5466, %v5540
  %v5551 = vadd.f32 %v5467, %v5540
  %v5552 = vadd.f32 %v5468, %v5540
  %v5553 = vadd.f32 %v5469, %v5540
  %v5554 = vadd.f32 %v5470, %v5540
  %v5555 = vadd.f32 %v5471, %v5540
  %v5556 = vadd.f32 %v5472, %v5540
  %v5557 = vadd.f32 %v5473, %v5540
  %v5558 = vadd.f32 %v5474, %v5540
  %v5559 = vadd.f32 %v5475, %v5540
  %v5560 = vadd.f32 %v5476, %v5540
  %v5561 = vadd.f32 %v5477, %v5540
  %v5562 = vadd.f32 %v5478, %v5540
  %v5563 = vadd.f32 %v5479, %v5540
  %v5564 = vadd.f32 %v5480, %v5540
  %v5565 = vadd.f32 %v5481, %v5540
  %v5566 = vadd.f32 %v5482, %v5540
  %v5567 = vadd.f32 %v5483, %v5540
  %v5568 = vadd.f32 %v5484, %v5540
  %v5569 = vadd.f32 %v5485, %v5540
  %v5570 = vadd.f32 %v5486, %v5540
  %v5571 = vadd.f32 %v5487, %v5540
  %v5572 = vadd.f32 %v5488, %v5540
  %v5573 = vadd.f32 %v5489, %v5540
  %v5574 = vadd.f32 %v5490, %v5540
  %v5575 = vadd.f32 %v5491, %v5540
  %v5576 = vadd.f32 %v5492, %v5540
  %v5577 = vadd.f32 %v5493, %v5540
  %v5578 = vadd.f32 %v5494, %v5540
  %v5579 = vadd.f32 %v5495, %v5540
  %v5580 = vadd.f32 %v5496, %v5540
  %v5581 = vadd.f32 %v5497, %v5540
  %v5582 = vadd.f32 %v5498, %v5540
  %v5583 = vadd.f32 %v5499, %v5540
  %v5584 = vadd.f32 %v5500, %v5540
  %v5585 = vadd.f32 %v5501, %v5540
  %v5586 = vadd.f32 %v5502, %v5540
  %v5587 = vadd.f32 %v5503, %v5540
  %v5588 = vadd.f32 %v5504, %v5540
  %v5589 = vadd.f32 %v5505, %v5540
  %v5590 = vadd.f32 %v5506, %v5540
  %v5591 = vadd.f32 %v5507, %v5540
  %v5592 = vadd.f32 %v5508, %v5540
  %v5593 = vadd.f32 %v5509, %v5540
  %v5594 = vadd.f32 %v5510, %v5540
  %v5595 = vadd.f32 %v5511, %v5540
  %v5596 = vadd.f32 %v5512, %v5540
  %v5597 = vadd.f32 %v5513, %v5540
  %v5598 = vadd.f32 %v5514, %v5540
  %v5599 = vadd.f32 %v5515, %v5540
  %v5600 = vadd.f32 %v5516, %v5540
  %v5601 = vadd.f32 %v5517, %v5540
  %v5602 = vadd.f32 %v5518, %v5540
  %v5603 = vadd.f32 %v5519, %v5540
  %v5604 = vadd.f32 %v5520, %v5540
  %v5605 = vadd.f32 %v5521, %v5540
  %v5606 = vadd.f32 %v5522, %v5540
  %v5607 = vadd.f32 %v5523, %v5540
  %v5608 = vadd.f32 %v5524, %v5540
  %v5609 = vadd.f32 %v5525, %v5540
  %v5610 = vadd.f32 %v5526, %v5540
  %v5611 = vadd.f32 %v5527, %v5540
  %v5612 = vadd.f32 %v5528, %v5540
  %v5613 = vadd.f32 %v5529, %v5540
  %v5614 = vadd.f32 %v5530, %v5540
  %v5615 = vadd.f32 %v5531, %v5540
  %v5616 = vadd.f32 %v5532, %v5540
  %v5617 = vadd.f32 %v5533, %v5540
  %v5618 = vadd.f32 %v5534, %v5540
  %v5619 = vmax.f32 %v5542, 0.0
  %v5620 = vmax.f32 %v5543, 0.0
  %v5621 = vmax.f32 %v5544, 0.0
  %v5622 = vmax.f32 %v5545, 0.0
  %v5623 = vmax.f32 %v5546, 0.0
  %v5624 = vmax.f32 %v5547, 0.0
  %v5625 = vmax.f32 %v5548, 0.0
  %v5626 = vmax.f32 %v5549, 0.0
  %v5627 = vmax.f32 %v5550, 0.0
  %v5628 = vmax.f32 %v5551, 0.0
  %v5629 = vmax.f32 %v5552, 0.0
  %v5630 = vmax.f32 %v5553, 0.0
  %v5631 = vmax.f32 %v5554, 0.0
  %v5632 = vmax.f32 %v5555, 0.0
  %v5633 = vmax.f32 %v5556, 0.0
  %v5634 = vmax.f32 %v5557, 0.0
  %v5635 = vmax.f32 %v5558, 0.0
  %v5636 = vmax.f32 %v5559, 0.0
  %v5637 = vmax.f32 %v5560, 0.0
  %v5638 = vmax.f32 %v5561, 0.0
  %v5639 = vmax.f32 %v5562, 0.0
  %v5640 = vmax.f32 %v5563, 0.0
  %v5641 = vmax.f32 %v5564, 0.0
  %v5642 = vmax.f32 %v5565, 0.0
  %v5643 = vmax.f32 %v5566, 0.0
  %v5644 = vmax.f32 %v5567, 0.0
  %v5645 = vmax.f32 %v5568, 0.0
  %v5646 = vmax.f32 %v5569, 0.0
  %v5647 = vmax.f32 %v5570, 0.0
  %v5648 = vmax.f32 %v5571, 0.0
  %v5649 = vmax.f32 %v5572, 0.0
  %v5650 = vmax.f32 %v5573, 0.0
  %v5651 = vmax.f32 %v5574, 0.0
  %v5652 = vmax.f32 %v5575, 0.0
  %v5653 = vmax.f32 %v5576, 0.0
  %v5654 = vmax.f32 %v5577, 0.0
  %v5655 = vmax.f32 %v5578, 0.0
  %v5656 = vmax.f32 %v5579, 0.0
  %v5657 = vmax.f32 %v5580, 0.0
  %v5658 = vmax.f32 %v5581, 0.0
  %v5659 = vmax.f32 %v5582, 0.0
  %v5660 = vmax.f32 %v5583, 0.0
  %v5661 = vmax.f32 %v5584, 0.0
  %v5662 = vmax.f32 %v5585, 0.0
  %v5663 = vmax.f32 %v5586, 0.0
  %v5664 = vmax.f32 %v5587, 0.0
  %v5665 = vmax.f32 %v5588, 0.0
  %v5666 = vmax.f32 %v5589, 0.0
  %v5667 = vmax.f32 %v5590, 0.0
  %v5668 = vmax.f32 %v5591, 0.0
  %v5669 = vmax.f32 %v5592, 0.0
  %v5670 = vmax.f32 %v5593, 0.0
  %v5671 = vmax.f32 %v5594, 0.0
  %v5672 = vmax.f32 %v5595, 0.0
  %v5673 = vmax.f32 %v5596, 0.0
  %v5674 = vmax.f32 %v5597, 0.0
  %v5675 = vmax.f32 %v5598, 0.0
  %v5676 = vmax.f32 %v5599, 0.0
  %v5677 = vmax.f32 %v5600, 0.0
  %v5678 = vmax.f32 %v5601, 0.0
  %v5679 = vmax.f32 %v5602, 0.0
  %v5680 = vmax.f32 %v5603, 0.0
  %v5681 = vmax.f32 %v5604, 0.0
  %v5682 = vmax.f32 %v5605, 0.0
  %v5683 = vmax.f32 %v5606, 0.0
  %v5684 = vmax.f32 %v5607, 0.0
  %v5685 = vmax.f32 %v5608, 0.0
  %v5686 = vmax.f32 %v5609, 0.0
  %v5687 = vmax.f32 %v5610, 0.0
  %v5688 = vmax.f32 %v5611, 0.0
  %v5689 = vmax.f32 %v5612, 0.0
  %v5690 = vmax.f32 %v5613, 0.0
  %v5691 = vmax.f32 %v5614, 0.0
  %v5692 = vmax.f32 %v5615, 0.0
  %v5693 = vmax.f32 %v5616, 0.0
  %v5694 = vmax.f32 %v5617, 0.0
  %v5695 = vmax.f32 %v5618, 0.0
  %v5696 = vld [vmem:[%s3] sm:$0xff]
  %v5697 = vld [vmem:[%s3 + $0x8] sm:$0xff]
  %v5698 = vld [vmem:[%s3 + $0x10] sm:$0xff]
  %v5699 = vld [vmem:[%s3 + $0x18] sm:$0xff]
  %v5700 = vld [vmem:[%s3 + $0x20] sm:$0xff]
  %vm5701 = vcmask 850944
  %v5703 = vsel %vm5701, %v5700, 0
  %5705 = vmatprep.subr.mxu0 0.0
  %5706 = vmatpush1.msra.mxu0 %v5619
  %5707 = vmatprep.subr.mxu0 0.0
  %5708 = vmatpush1.msra.mxu0 %v5620
  %5709 = vmatprep.subr.mxu0 0.0
  %5710 = vmatpush1.msra.mxu0 %v5621
  %5711 = vmatprep.subr.mxu0 0.0
  %5712 = vmatpush1.msra.mxu0 %v5622
  %5713 = vmatprep.subr.mxu0 0.0
  %5714 = vmatpush1.msra.mxu0 %v5623
  %5715 = vmatprep.subr.mxu0 0.0
  %5716 = vmatpush1.msra.mxu0 %v5624
  %5717 = vmatprep.subr.mxu0 0.0
  %5718 = vmatpush1.msra.mxu0 %v5625
  %5719 = vmatprep.subr.mxu0 0.0
  %5720 = vmatpush1.msra.mxu0 %v5626
  %5721 = vmatprep.subr.mxu0 0.0
  %5722 = vmatpush1.msra.mxu0 %v5627
  %5723 = vmatprep.subr.mxu0 0.0
  %5724 = vmatpush1.msra.mxu0 %v5628
  %5725 = vmatprep.subr.mxu0 0.0
  %5726 = vmatpush1.msra.mxu0 %v5629
  %5727 = vmatprep.subr.mxu0 0.0
  %5728 = vmatpush1.msra.mxu0 %v5630
  %5729 = vmatprep.subr.mxu0 0.0
  %5730 = vmatpush1.msra.mxu0 %v5631
  %5731 = vmatprep.subr.mxu0 0.0
  %5732 = vmatpush1.msra.mxu0 %v5632
  %5733 = vmatprep.subr.mxu0 0.0
  %5734 = vmatpush1.msra.mxu0 %v5633
  %5735 = vmatprep.subr.mxu0 0.0
  %5736 = vmatpush1.msra.mxu0 %v5634
  %5737 = vmatprep.subr.mxu0 0.0
  %5738 = vmatpush1.msra.mxu0 %v5635
  %5739 = vmatprep.subr.mxu0 0.0
  %5740 = vmatpush1.msra.mxu0 %v5636
  %5741 = vmatprep.subr.mxu0 0.0
  %5742 = vmatpush1.msra.mxu0 %v5637
  %5743 = vmatprep.subr.mxu0 0.0
  %5744 = vmatpush1.msra.mxu0 %v5638
  %5745 = vmatprep.subr.mxu0 0.0
  %5746 = vmatpush1.msra.mxu0 %v5639
  %5747 = vmatprep.subr.mxu0 0.0
  %5748 = vmatpush1.msra.mxu0 %v5640
  %5749 = vmatprep.subr.mxu0 0.0
  %5750 = vmatpush1.msra.mxu0 %v5641
  %5751 = vmatprep.subr.mxu0 0.0
  %5752 = vmatpush1.msra.mxu0 %v5642
  %5753 = vmatprep.subr.mxu0 0.0
  %5754 = vmatpush1.msra.mxu0 %v5643
  %5755 = vmatprep.subr.mxu0 0.0
  %5756 = vmatpush1.msra.mxu0 %v5644
  %5757 = vmatprep.subr.mxu0 0.0
  %5758 = vmatpush1.msra.mxu0 %v5645
  %5759 = vmatprep.subr.mxu0 0.0
  %5760 = vmatpush1.msra.mxu0 %v5646
  %5761 = vmatprep.subr.mxu0 0.0
  %5762 = vmatpush1.msra.mxu0 %v5647
  %5763 = vmatprep.subr.mxu0 0.0
  %5764 = vmatpush1.msra.mxu0 %v5648
  %5765 = vmatprep.subr.mxu0 0.0
  %5766 = vmatpush1.msra.mxu0 %v5649
  %5767 = vmatprep.subr.mxu0 0.0
  %5768 = vmatpush1.msra.mxu0 %v5650
  %5769 = vmatprep.mubr.f32.mxu0 %v5697
  %5770 = vmatmul.mubr.f32.gmra.mrb[0].mxu0 %v5696
  %v5771 = vpop.f32.mrb[0].mxu0
  %v5772 = vadd.f32 0.0, %v5771
  %v5773 = vpop.f32.mrb[0].mxu0
  %5774 = vdwg.mxu0
  %5775 = vmatprep.subr.mxu0 0.0
  %5776 = vmatpush1.msra.mxu0 %v5651
  %5777 = vmatprep.subr.mxu0 0.0
  %5778 = vmatpush1.msra.mxu0 %v5652
  %5779 = vmatprep.subr.mxu0 0.0
  %5780 = vmatpush1.msra.mxu0 %v5653
  %5781 = vmatprep.subr.mxu0 0.0
  %5782 = vmatpush1.msra.mxu0 %v5654
  %5783 = vmatprep.subr.mxu0 0.0
  %5784 = vmatpush1.msra.mxu0 %v5655
  %5785 = vmatprep.subr.mxu0 0.0
  %5786 = vmatpush1.msra.mxu0 %v5656
  %5787 = vmatprep.subr.mxu0 0.0
  %5788 = vmatpush1.msra.mxu0 %v5657
  %5789 = vmatprep.subr.mxu0 0.0
  %5790 = vmatpush1.msra.mxu0 %v5658
  %5791 = vmatprep.subr.mxu0 0.0
  %5792 = vmatpush1.msra.mxu0 %v5659
  %5793 = vmatprep.subr.mxu0 0.0
  %5794 = vmatpush1.msra.mxu0 %v5660
  %5795 = vmatprep.subr.mxu0 0.0
  %5796 = vmatpush1.msra.mxu0 %v5661
  %5797 = vmatprep.subr.mxu0 0.0
  %5798 = vmatpush1.msra.mxu0 %v5662
  %5799 = vmatprep.subr.mxu0 0.0
  %5800 = vmatpush1.msra.mxu0 %v5663
  %5801 = vmatprep.subr.mxu0 0.0
  %5802 = vmatpush1.msra.mxu0 %v5664
  %5803 = vmatprep.subr.mxu0 0.0
  %5804 = vmatpush1.msra.mxu0 %v5665
  %5805 = vmatprep.subr.mxu0 0.0
  %5806 = vmatpush1.msra.mxu0 %v5666
  %5807 = vmatprep.subr.mxu0 0.0
  %5808 = vmatpush1.msra.mxu0 %v5667
  %5809 = vmatprep.subr.mxu0 0.0
  %5810 = vmatpush1.msra.mxu0 %v5668
  %5811 = vmatprep.subr.mxu0 0.0
  %5812 = vmatpush1.msra.mxu0 %v5669
  %5813 = vmatprep.subr.mxu0 0.0
  %5814 = vmatpush1.msra.mxu0 %v5670
  %5815 = vmatprep.subr.mxu0 0.0
  %5816 = vmatpush1.msra.mxu0 %v5671
  %5817 = vmatprep.subr.mxu0 0.0
  %5818 = vmatpush1.msra.mxu0 %v5672
  %5819 = vmatprep.subr.mxu0 0.0
  %5820 = vmatpush1.msra.mxu0 %v5673
  %5821 = vmatprep.subr.mxu0 0.0
  %5822 = vmatpush1.msra.mxu0 %v5674
  %5823 = vmatprep.subr.mxu0 0.0
  %5824 = vmatpush1.msra.mxu0 %v5675
  %5825 = vmatprep.subr.mxu0 0.0
  %5826 = vmatpush1.msra.mxu0 %v5676
  %5827 = vmatprep.subr.mxu0 0.0
  %5828 = vmatpush1.msra.mxu0 %v5677
  %5829 = vmatprep.subr.mxu0 0.0
  %5830 = vmatpush1.msra.mxu0 %v5678
  %5831 = vmatprep.subr.mxu0 0.0
  %5832 = vmatpush1.msra.mxu0 %v5679
  %5833 = vmatprep.subr.mxu0 0.0
  %5834 = vmatpush1.msra.mxu0 %v5680
  %5835 = vmatprep.subr.mxu0 0.0
  %5836 = vmatpush1.msra.mxu0 %v5681
  %5837 = vmatprep.subr.mxu0 0.0
  %5838 = vmatpush1.msra.mxu0 %v5682
  %5839 = vmatprep.mubr.f32.mxu0 %v5699
  %5840 = vmatmul.mubr.f32.gmra.mrb[0].mxu0 %v5698
  %v5841 = vpop.f32.mrb[0].mxu0
  %v5842 = vadd.f32 %v5772, %v5841
  %v5843 = vpop.f32.mrb[0].mxu0
  %5844 = vdwg.mxu0
  %5845 = vmatprep.subr.mxu0 0.0
  %5846 = vmatpush1.msra.mxu0 %v5683
  %5847 = vmatprep.subr.mxu0 0.0
  %5848 = vmatpush1.msra.mxu0 %v5684
  %5849 = vmatprep.subr.mxu0 0.0
  %5850 = vmatpush1.msra.mxu0 %v5685
  %5851 = vmatprep.subr.mxu0 0.0
  %5852 = vmatpush1.msra.mxu0 %v5686
  %5853 = vmatprep.subr.mxu0 0.0
  %5854 = vmatpush1.msra.mxu0 %v5687
  %5855 = vmatprep.subr.mxu0 0.0
  %5856 = vmatpush1.msra.mxu0 %v5688
  %5857 = vmatprep.subr.mxu0 0.0
  %5858 = vmatpush1.msra.mxu0 %v5689
  %5859 = vmatprep.subr.mxu0 0.0
  %5860 = vmatpush1.msra.mxu0 %v5690
  %5861 = vmatprep.subr.mxu0 0.0
  %5862 = vmatpush1.msra.mxu0 %v5691
  %5863 = vmatprep.subr.mxu0 0.0
  %5864 = vmatpush1.msra.mxu0 %v5692
  %5865 = vmatprep.subr.mxu0 0.0
  %5866 = vmatpush1.msra.mxu0 %v5693
  %5867 = vmatprep.subr.mxu0 0.0
  %5868 = vmatpush1.msra.mxu0 %v5694
  %5869 = vmatprep.subr.mxu0 0.0
  %5870 = vmatpush1.msra.mxu0 %v5695
  %5871 = vmatprep.subr.mxu0 0.0
  %5872 = vmatpush1.msra.mxu0 0.0
  %5873 = vmatprep.subr.mxu0 0.0
  %5874 = vmatpush1.msra.mxu0 0.0
  %5875 = vmatprep.subr.mxu0 0.0
  %5876 = vmatpush1.msra.mxu0 0.0
  %5877 = vmatprep.subr.mxu0 0.0
  %5878 = vmatpush1.msra.mxu0 0.0
  %5879 = vmatprep.subr.mxu0 0.0
  %5880 = vmatpush1.msra.mxu0 0.0
  %5881 = vmatprep.subr.mxu0 0.0
  %5882 = vmatpush1.msra.mxu0 0.0
  %5883 = vmatprep.subr.mxu0 0.0
  %5884 = vmatpush1.msra.mxu0 0.0
  %5885 = vmatprep.subr.mxu0 0.0
  %5886 = vmatpush1.msra.mxu0 0.0
  %5887 = vmatprep.subr.mxu0 0.0
  %5888 = vmatpush1.msra.mxu0 0.0
  %5889 = vmatprep.subr.mxu0 0.0
  %5890 = vmatpush1.msra.mxu0 0.0
  %5891 = vmatprep.subr.mxu0 0.0
  %5892 = vmatpush1.msra.mxu0 0.0
  %5893 = vmatprep.subr.mxu0 0.0
  %5894 = vmatpush1.msra.mxu0 0.0
  %5895 = vmatprep.subr.mxu0 0.0
  %5896 = vmatpush1.msra.mxu0 0.0
  %5897 = vmatprep.subr.mxu0 0.0
  %5898 = vmatpush1.msra.mxu0 0.0
  %5899 = vmatprep.subr.mxu0 0.0
  %5900 = vmatpush1.msra.mxu0 0.0
  %5901 = vmatprep.subr.mxu0 0.0
  %5902 = vmatpush1.msra.mxu0 0.0
  %5903 = vmatprep.subr.mxu0 0.0
  %5904 = vmatpush1.msra.mxu0 0.0
  %5905 = vmatprep.subr.mxu0 0.0
  %5906 = vmatpush1.msra.mxu0 0.0
  %5907 = vmatprep.subr.mxu0 0.0
  %5908 = vmatpush1.msra.mxu0 0.0
  %5909 = vmatprep.mubr.f32.mxu0 0.0
  %5910 = vmatmul.mubr.f32.gmra.mrb[0].mxu0 %v5703
  %v5911 = vpop.f32.mrb[0].mxu0
  %v5912 = vadd.f32 %v5842, %v5911
  %v5913 = vpop.f32.mrb[0].mxu0
  %5914 = vdwg.mxu0
  %v5915 = vld [vmem:[%s4] sm:$0xff]
  %v5916 = vld [vmem:[%s4 + $0x8] sm:$0xff]
  %v5917 = vld [vmem:[%s4 + $0x10] sm:$0xff]
  %v5918 = vld [vmem:[%s4 + $0x18] sm:$0xff]
  %v5919 = vld [vmem:[%s4 + $0x20] sm:$0xff]
  %v5920 = vld [vmem:[%s4 + $0x28] sm:$0xff]
  %v5921 = vld [vmem:[%s4 + $0x30] sm:$0xff]
  %v5922 = vld [vmem:[%s4 + $0x38] sm:$0xff]
  %v5923 = vld [vmem:[%s4 + $0x40] sm:$0xff]
  %v5924 = vld [vmem:[%s4 + $0x48] sm:$0xff]
  %v5925 = vld [vmem:[%s4 + $0x50] sm:$0xff]
  %v5926 = vld [vmem:[%s4 + $0x58] sm:$0xff]
  %v5927 = vld [vmem:[%s4 + $0x60] sm:$0xff]
  %v5928 = vld [vmem:[%s4 + $0x68] sm:$0xff]
  %v5929 = vld [vmem:[%s4 + $0x70] sm:$0xff]
  %v5930 = vld [vmem:[%s4 + $0x78] sm:$0xff]
  %v5931 = vld [vmem:[%s5] sm:$0x1]
  %v5933 = vlaneseq
  %v5934 = vshrl.u32 %v5933, 7
  %v5935 = vsub.s32 0, %v5934
  %v5936 = vrot.slane %v5931, %v5935
  %5938 = vmatprep.subr.mxu0 0.0
  %5939 = vmatpush1.msra.mxu0 %v5915
  %5940 = vmatprep.subr.mxu0 0.0
  %5941 = vmatpush1.msra.mxu0 %v5916
  %5942 = vmatprep.subr.mxu0 0.0
  %5943 = vmatpush1.msra.mxu0 %v5917
  %5944 = vmatprep.subr.mxu0 0.0
  %5945 = vmatpush1.msra.mxu0 %v5918
  %5946 = vmatprep.subr.mxu0 0.0
  %5947 = vmatpush1.msra.mxu0 %v5919
  %5948 = vmatprep.subr.mxu0 0.0
  %5949 = vmatpush1.msra.mxu0 %v5920
  %5950 = vmatprep.subr.mxu0 0.0
  %5951 = vmatpush1.msra.mxu0 %v5921
  %5952 = vmatprep.subr.mxu0 0.0
  %5953 = vmatpush1.msra.mxu0 %v5922
  %5954 = vmatprep.subr.mxu0 0.0
  %5955 = vmatpush1.msra.mxu0 %v5923
  %5956 = vmatprep.subr.mxu0 0.0
  %5957 = vmatpush1.msra.mxu0 %v5924
  %5958 = vmatprep.subr.mxu0 0.0
  %5959 = vmatpush1.msra.mxu0 %v5925
  %5960 = vmatprep.subr.mxu0 0.0
  %5961 = vmatpush1.msra.mxu0 %v5926
  %5962 = vmatprep.subr.mxu0 0.0
  %5963 = vmatpush1.msra.mxu0 %v5927
  %5964 = vmatprep.subr.mxu0 0.0
  %5965 = vmatpush1.msra.mxu0 %v5928
  %5966 = vmatprep.subr.mxu0 0.0
  %5967 = vmatpush1.msra.mxu0 %v5929
  %5968 = vmatprep.subr.mxu0 0.0
  %5969 = vmatpush1.msra.mxu0 %v5930
  %5970 = vmatprep.subr.mxu0 0.0
  %5971 = vmatpush1.msra.mxu0 0.0
  %5972 = vmatprep.subr.mxu0 0.0
  %5973 = vmatpush1.msra.mxu0 0.0
  %5974 = vmatprep.subr.mxu0 0.0
  %5975 = vmatpush1.msra.mxu0 0.0
  %5976 = vmatprep.subr.mxu0 0.0
  %5977 = vmatpush1.msra.mxu0 0.0
  %5978 = vmatprep.subr.mxu0 0.0
  %5979 = vmatpush1.msra.mxu0 0.0
  %5980 = vmatprep.subr.mxu0 0.0
  %5981 = vmatpush1.msra.mxu0 0.0
  %5982 = vmatprep.subr.mxu0 0.0
  %5983 = vmatpush1.msra.mxu0 0.0
  %5984 = vmatprep.subr.mxu0 0.0
  %5985 = vmatpush1.msra.mxu0 0.0
  %5986 = vmatprep.subr.mxu0 0.0
  %5987 = vmatpush1.msra.mxu0 0.0
  %5988 = vmatprep.subr.mxu0 0.0
  %5989 = vmatpush1.msra.mxu0 0.0
  %5990 = vmatprep.subr.mxu0 0.0
  %5991 = vmatpush1.msra.mxu0 0.0
  %5992 = vmatprep.subr.mxu0 0.0
  %5993 = vmatpush1.msra.mxu0 0.0
  %5994 = vmatprep.subr.mxu0 0.0
  %5995 = vmatpush1.msra.mxu0 0.0
  %5996 = vmatprep.subr.mxu0 0.0
  %5997 = vmatpush1.msra.mxu0 0.0
  %5998 = vmatprep.subr.mxu0 0.0
  %5999 = vmatpush1.msra.mxu0 0.0
  %6000 = vmatprep.subr.mxu0 0.0
  %6001 = vmatpush1.msra.mxu0 0.0
  %6002 = vmatprep.mubr.f32.mxu0 0.0
  %6003 = vmatmul.mubr.f32.gmra.mrb[0].mxu0 %v5912
  %v6004 = vpop.f32.mrb[0].mxu0
  %v6005 = vadd.f32 %v5936, %v6004
  %v6006 = vpop.f32.mrb[0].mxu0
  %6007 = vdwg.mxu0
  %6008 = vst [vmem:[%s6] sm:$0xff] %v6005
  // Predicated region
  $region26: #{linear_eval_forward.1} parent=0 // pred_check
    _
  $region27: #{linear_eval_forward.1} parent=0 // pred_check_branch
    %6010 = sbr.rel (0) target = $region29
  $region28: #{linear_eval_forward.1} parent=0 // pred_region
    _
  $region29: #{linear_eval_forward.1} parent=0 // pred_fallthru
    _
  // Predicated region
  $region30: #{linear_eval_forward.1} parent=0 // pred_check
    _
  $region31: #{linear_eval_forward.1} parent=0 // pred_check_branch
    %6012 = sbr.rel (0) target = $region33
  $region32: #{linear_eval_forward.1} parent=0 // pred_region
    _
  $region33: #{linear_eval_forward.1} parent=0 // pred_fallthru
    _

</llo_original>
